<compile_context>
chip_gen: v7x
topology: tpu7x:2x2x1
jax: 0.10.0
libtpu: 0.0.40
codegen_flags: <defaults>
</compile_context>

<pallas_src>
import jax
import jax.numpy as jnp
from jax.experimental import pallas as pl
from jax.experimental.pallas import tpu as pltpu


def _round_up(n, m):
    return ((n + m - 1) // m) * m


def _cdiv(a, b):
    return -(-a // b)


def mlp_kernel(x_ref, w1_ref, b1_ref, w2_ref, b2_ref, w3_ref, b3_ref, o_ref):
    # Cast to bf16 in-kernel (cheap VPU pack hidden under the x DMA) instead of
    # a separate wrapper-side HBM read/write pass.
    x = x_ref[...].astype(jnp.bfloat16)                               # (tile_b, in)

    # Linear(input_size, 128) + ReLU       (Dropout = identity at inference)
    h1 = jnp.dot(x, w1_ref[...], preferred_element_type=jnp.float32) + b1_ref[...]
    h1 = jnp.maximum(h1, 0.0)

    # Linear(128, 64 zero-padded to 128) + ReLU   (Dropout = identity)
    h2 = jnp.dot(h1.astype(jnp.bfloat16), w2_ref[...],
                 preferred_element_type=jnp.float32) + b2_ref[...]
    h2 = jnp.maximum(h2, 0.0)                                         # (tile_b, 128)

    # Linear(64, 1) + Sigmoid as a weighted lane reduce on the VPU/XLU.
    # Reshape (tile_b, 128) -> (g, 128, 128) is layout-preserving (trailing dims
    # unchanged); the reduce over the hidden axis then produces the lane-dense
    # (g, 128) output layout directly (no (tile_b, 1) column ever materializes).
    g, lanes = o_ref.shape                                            # (tile_b//128, 128)
    hp = h2.shape[-1]
    prod = h2.reshape(g, lanes, hp) * w3_ref[...].reshape(1, 1, hp)
    logits = jnp.sum(prod, axis=-1) + b3_ref[...]                     # (g, 128) f32
    # sigmoid: keep exp and the divide on the EUP slot.
    o_ref[...] = pl.reciprocal(1.0 + jnp.exp(-logits), approx=True).astype(o_ref.dtype)


def nhl_predictor_forward(x, params, tile_b=8192):
    """x: (B, input_size) float32 -> (B, 1) float32 (inference forward)."""
    w1, b1, w2, b2, w3, b3 = params
    B, in_size = x.shape
    h1_dim = w1.shape[1]                        # 128
    h2_dim = w2.shape[1]                        # 64
    hp = _round_up(h2_dim, 128)                 # 128: lane-dense h2 / final reduce

    # ---- weight prep (tiny, ~50 KB; constant-folds under jit) ------------------
    w1b = w1.astype(jnp.bfloat16)
    b1f = b1.reshape(1, h1_dim).astype(jnp.float32)
    w2b = jnp.zeros((h1_dim, hp), jnp.bfloat16).at[:, :h2_dim].set(w2.astype(jnp.bfloat16))
    b2f = jnp.zeros((1, hp), jnp.float32).at[:, :h2_dim].set(
        b2.reshape(1, h2_dim).astype(jnp.float32))
    w3f = jnp.zeros((1, hp), jnp.float32).at[:, :h2_dim].set(
        w3.reshape(1, h2_dim).astype(jnp.float32))
    b3f = b3.reshape(1, 1).astype(jnp.float32)

    # ---- row-tile selection -----------------------------------------------------
    # Multiple of 1024 so the (tile_b//128, 128) lane-dense output block satisfies
    # the (8, 128) tiling constraint.
    tile_b = max(1024, (int(tile_b) // 1024) * 1024)
    # VMEM cap: double-buffered f32 x blocks + ~2 KB/row f32 intermediates,
    # budgeted well under the default scoped VMEM limit (conservative for v7x).
    bytes_per_row = 2 * in_size * 4 + 2048
    vmem_cap = max(1024, ((24 * 1024 * 1024) // bytes_per_row) // 1024 * 1024)
    tile_b = min(tile_b, vmem_cap)
    # Don't over-tile tiny batches.
    tile_b = min(tile_b, max(1024, _round_up(B, 1024)))
    # Keep >= 2 grid steps for large batches so the "parallel" axis can use both
    # TensorCores on v7x.
    if B >= 2 * 1024:
        tile_b = min(tile_b, _round_up(_cdiv(B, 2), 1024))

    num_tiles = _cdiv(B, tile_b)                # ragged last block; no HBM pad pass
    pad_b = num_tiles * tile_b
    blk_rows = tile_b // 128

    const = lambda i: (0, 0)  # weights/biases: same block every step (VMEM-resident)

    out = pl.pallas_call(
        mlp_kernel,
        out_shape=jax.ShapeDtypeStruct((pad_b // 128, 128), jnp.float32),
        grid=(num_tiles,),
        in_specs=[
            pl.BlockSpec((tile_b, in_size), lambda i: (i, 0)),   # x (streamed f32)
            pl.BlockSpec((in_size, h1_dim), const),              # w1 (bf16)
            pl.BlockSpec((1, h1_dim), const),                    # b1 (f32)
            pl.BlockSpec((h1_dim, hp), const),                   # w2 (bf16, padded)
            pl.BlockSpec((1, hp), const),                        # b2 (f32, padded)
            pl.BlockSpec((1, hp), const),                        # w3 row (f32, padded)
            pl.BlockSpec((1, 1), const),                         # b3 (f32)
        ],
        out_specs=pl.BlockSpec((blk_rows, 128), lambda i: (i, 0)),
        compiler_params=pltpu.CompilerParams(
            dimension_semantics=("parallel",),
        ),
    )(x, w1b, b1f, w2b, b2f, w3f, b3f)

    # Rows beyond B stem from the ragged last x block (garbage) — crop them.
    return out.reshape(-1)[:B].reshape(B, 1)


def init_params(key, input_size):
    """Deterministic init mimicking PyTorch nn.Linear default U(-1/sqrt(fan_in), +)."""
    dims = [(input_size, 128), (128, 64), (64, 1)]
    params = []
    for i, (fan_in, fan_out) in enumerate(dims):
        kw, kb = jax.random.split(jax.random.fold_in(key, i))
        bound = 1.0 / (fan_in ** 0.5)
        w = jax.random.uniform(kw, (fan_in, fan_out), jnp.float32, -bound, bound)
        b = jax.random.uniform(kb, (1, fan_out), jnp.float32, -bound, bound)
        params += [w, b]
    return tuple(params)


def reference_forward(x, params):
    """Pure-JAX reference with the same bf16-input / f32-accum contract as the kernel."""
    w1, b1, w2, b2, w3, b3 = params
    h1 = jnp.dot(x.astype(jnp.bfloat16), w1.astype(jnp.bfloat16),
                 preferred_element_type=jnp.float32) + b1.reshape(1, -1)
    h1 = jnp.maximum(h1, 0.0)
    h2 = jnp.dot(h1.astype(jnp.bfloat16), w2.astype(jnp.bfloat16),
                 preferred_element_type=jnp.float32) + b2.reshape(1, -1)
    h2 = jnp.maximum(h2, 0.0)
    logits = jnp.sum(h2 * w3.reshape(1, -1), axis=-1, keepdims=True) + b3.reshape(1, 1)
    return jax.nn.sigmoid(logits)


if __name__ == "__main__":
    key = jax.random.PRNGKey(0)
    input_size = 32
    params = init_params(key, input_size)

    # Case 1: tiny batch -> single grid step with a heavily ragged x block.
    x_small = jax.random.normal(jax.random.fold_in(key, 100), (20, input_size), jnp.float32)
    out_small = jax.block_until_ready(nhl_predictor_forward(x_small, params))
    ref_small = reference_forward(x_small, params)
    assert out_small.shape == (20, 1), out_small.shape
    assert bool(jnp.all(jnp.isfinite(out_small)))
    assert jnp.allclose(out_small, ref_small, atol=2e-3, rtol=2e-3), \
        float(jnp.max(jnp.abs(out_small - ref_small)))

    # Case 2: multi-step grid (3 steps at tile_b=1024) with a ragged last block.
    x_big = jax.random.normal(jax.random.fold_in(key, 200), (2500, input_size), jnp.float32)
    out_big = jax.block_until_ready(nhl_predictor_forward(x_big, params, tile_b=1024))
    ref_big = reference_forward(x_big, params)
    assert out_big.shape == (2500, 1), out_big.shape
    assert bool(jnp.all(jnp.isfinite(out_big)))
    assert jnp.allclose(out_big, ref_big, atol=2e-3, rtol=2e-3), \
        float(jnp.max(jnp.abs(out_big - ref_big)))

    print("KERNEL_OK")
</pallas_src>

<mosaic_0001>
module attributes {stable_mosaic.version = 11 : i64} {
  func.func @mlp_kernel(%arg0: i32, %arg1: memref<1024x32xf32, #tpu.memory_space<vmem>>, %arg2: memref<32x128xbf16, #tpu.memory_space<vmem>>, %arg3: memref<1x128xf32, #tpu.memory_space<vmem>>, %arg4: memref<128x128xbf16, #tpu.memory_space<vmem>>, %arg5: memref<1x128xf32, #tpu.memory_space<vmem>>, %arg6: memref<1x128xf32, #tpu.memory_space<vmem>>, %arg7: memref<1x1xf32, #tpu.memory_space<vmem>>, %arg8: memref<8x128xf32, #tpu.memory_space<vmem>>) attributes {dimension_semantics = [#tpu.dimension_semantics<parallel>], iteration_bounds = array<i64: 1>, scalar_prefetch = 0 : i64, scratch_operands = 0 : i64, tpu.core_type = #tpu.core_type<tc>, window_params = [{transform_indices = @transform_0, window_bounds = array<i64: 1024, 32>}, {pipeline_mode = #tpu.pipeline_mode<synchronous>, transform_indices = @transform_1, window_bounds = array<i64: 32, 128>}, {pipeline_mode = #tpu.pipeline_mode<synchronous>, transform_indices = @transform_2, window_bounds = array<i64: 1, 128>}, {pipeline_mode = #tpu.pipeline_mode<synchronous>, transform_indices = @transform_3, window_bounds = array<i64: 128, 128>}, {pipeline_mode = #tpu.pipeline_mode<synchronous>, transform_indices = @transform_4, window_bounds = array<i64: 1, 128>}, {pipeline_mode = #tpu.pipeline_mode<synchronous>, transform_indices = @transform_5, window_bounds = array<i64: 1, 128>}, {pipeline_mode = #tpu.pipeline_mode<synchronous>, transform_indices = @transform_6, window_bounds = array<i64: 1, 1>}, {transform_indices = @transform_7, window_bounds = array<i64: 8, 128>}]} {
    %c0 = arith.constant 0 : index
    %c0_0 = arith.constant 0 : index
    %0 = vector.load %arg1[%c0, %c0_0] : memref<1024x32xf32, #tpu.memory_space<vmem>>, vector<1024x32xf32>
    %1 = arith.truncf %0 : vector<1024x32xf32> to vector<1024x32xbf16>
    %c0_1 = arith.constant 0 : index
    %c0_2 = arith.constant 0 : index
    %2 = vector.load %arg2[%c0_1, %c0_2] : memref<32x128xbf16, #tpu.memory_space<vmem>>, vector<32x128xbf16>
    %cst = arith.constant dense<0.000000e+00> : vector<1024x128xf32>
    %3 = tpu.matmul %1, %2, %cst {dimension_numbers = #tpu.dot_dimension_numbers<[1], [0], [0], [1], [0, 0, 1, 1], [], []>} : vector<1024x32xbf16>, vector<32x128xbf16>, vector<1024x128xf32> -> vector<1024x128xf32>
    %c0_3 = arith.constant 0 : index
    %c0_4 = arith.constant 0 : index
    %4 = vector.load %arg3[%c0_3, %c0_4] : memref<1x128xf32, #tpu.memory_space<vmem>>, vector<1x128xf32>
    %5 = vector.broadcast %4 : vector<1x128xf32> to vector<1024x128xf32>
    %6 = arith.addf %3, %5 : vector<1024x128xf32>
    %cst_5 = arith.constant 0.000000e+00 : f32
    %7 = vector.broadcast %cst_5 : f32 to vector<1024x128xf32>
    %8 = arith.maximumf %6, %7 : vector<1024x128xf32>
    %9 = arith.truncf %8 : vector<1024x128xf32> to vector<1024x128xbf16>
    %c0_6 = arith.constant 0 : index
    %c0_7 = arith.constant 0 : index
    %10 = vector.load %arg4[%c0_6, %c0_7] : memref<128x128xbf16, #tpu.memory_space<vmem>>, vector<128x128xbf16>
    %cst_8 = arith.constant dense<0.000000e+00> : vector<1024x128xf32>
    %11 = tpu.matmul %9, %10, %cst_8 {dimension_numbers = #tpu.dot_dimension_numbers<[1], [0], [0], [1], [0, 0, 1, 1], [], []>} : vector<1024x128xbf16>, vector<128x128xbf16>, vector<1024x128xf32> -> vector<1024x128xf32>
    %c0_9 = arith.constant 0 : index
    %c0_10 = arith.constant 0 : index
    %12 = vector.load %arg5[%c0_9, %c0_10] : memref<1x128xf32, #tpu.memory_space<vmem>>, vector<1x128xf32>
    %13 = vector.broadcast %12 : vector<1x128xf32> to vector<1024x128xf32>
    %14 = arith.addf %11, %13 : vector<1024x128xf32>
    %cst_11 = arith.constant 0.000000e+00 : f32
    %15 = vector.broadcast %cst_11 : f32 to vector<1024x128xf32>
    %16 = arith.maximumf %14, %15 : vector<1024x128xf32>
    %17 = vector.shape_cast %16 : vector<1024x128xf32> to vector<8x128x128xf32>
    %c0_12 = arith.constant 0 : index
    %c0_13 = arith.constant 0 : index
    %18 = vector.load %arg6[%c0_12, %c0_13] : memref<1x128xf32, #tpu.memory_space<vmem>>, vector<1x128xf32>
    %19 = vector.shape_cast %18 : vector<1x128xf32> to vector<1x1x128xf32>
    %20 = vector.broadcast %19 : vector<1x1x128xf32> to vector<8x128x128xf32>
    %21 = arith.mulf %17, %20 : vector<8x128x128xf32>
    %cst_14 = arith.constant dense<0.000000e+00> : vector<8x128xf32>
    %22 = vector.multi_reduction <add>, %21, %cst_14 [2] : vector<8x128x128xf32> to vector<8x128xf32>
    %c0_15 = arith.constant 0 : index
    %c0_16 = arith.constant 0 : index
    %23 = vector.load %arg7[%c0_15, %c0_16] : memref<1x1xf32, #tpu.memory_space<vmem>>, vector<1x1xf32>
    %24 = vector.broadcast %23 : vector<1x1xf32> to vector<8x128xf32>
    %25 = arith.addf %22, %24 : vector<8x128xf32>
    %cst_17 = arith.constant 0.000000e+00 : f32
    %26 = vector.broadcast %cst_17 : f32 to vector<8x128xf32>
    %27 = arith.subf %26, %25 : vector<8x128xf32>
    %28 = math.exp %27 : vector<8x128xf32>
    %cst_18 = arith.constant 1.000000e+00 : f32
    %29 = vector.broadcast %cst_18 : f32 to vector<8x128xf32>
    %30 = arith.addf %29, %28 : vector<8x128xf32>
    %31 = tpu.reciprocal %30 {approx = true} : vector<8x128xf32> -> vector<8x128xf32>
    %c0_19 = arith.constant 0 : index
    %c0_20 = arith.constant 0 : index
    %32 = vector.load %arg8[%c0_19, %c0_20] : memref<8x128xf32, #tpu.memory_space<vmem>>, vector<8x128xf32>
    tpu.vector_store %arg8[%c0_19, %c0_20], %31 {strides = array<i32>} : memref<8x128xf32, #tpu.memory_space<vmem>>, vector<8x128xf32>,
    return
  }
  func.func @transform_0(%arg0: i32) -> (i32, i32) {
    %c0_i32 = arith.constant 0 : i32
    %c0_i32_0 = arith.constant 0 : i32
    return %arg0, %c0_i32 : i32, i32
  }
  func.func @transform_1(%arg0: i32) -> (i32, i32) {
    %c0_i32 = arith.constant 0 : i32
    %c0_i32_0 = arith.constant 0 : i32
    %c0_i32_1 = arith.constant 0 : i32
    return %c0_i32, %c0_i32_0 : i32, i32
  }
  func.func @transform_2(%arg0: i32) -> (i32, i32) {
    %c0_i32 = arith.constant 0 : i32
    %c0_i32_0 = arith.constant 0 : i32
    %c0_i32_1 = arith.constant 0 : i32
    return %c0_i32, %c0_i32_0 : i32, i32
  }
  func.func @transform_3(%arg0: i32) -> (i32, i32) {
    %c0_i32 = arith.constant 0 : i32
    %c0_i32_0 = arith.constant 0 : i32
    %c0_i32_1 = arith.constant 0 : i32
    return %c0_i32, %c0_i32_0 : i32, i32
  }
  func.func @transform_4(%arg0: i32) -> (i32, i32) {
    %c0_i32 = arith.constant 0 : i32
    %c0_i32_0 = arith.constant 0 : i32
    %c0_i32_1 = arith.constant 0 : i32
    return %c0_i32, %c0_i32_0 : i32, i32
  }
  func.func @transform_5(%arg0: i32) -> (i32, i32) {
    %c0_i32 = arith.constant 0 : i32
    %c0_i32_0 = arith.constant 0 : i32
    %c0_i32_1 = arith.constant 0 : i32
    return %c0_i32, %c0_i32_0 : i32, i32
  }
  func.func @transform_6(%arg0: i32) -> (i32, i32) {
    %c0_i32 = arith.constant 0 : i32
    %c0_i32_0 = arith.constant 0 : i32
    %c0_i32_1 = arith.constant 0 : i32
    return %c0_i32, %c0_i32_0 : i32, i32
  }
  func.func @transform_7(%arg0: i32) -> (i32, i32) {
    %c0_i32 = arith.constant 0 : i32
    %c0_i32_0 = arith.constant 0 : i32
    return %arg0, %c0_i32 : i32, i32
  }
}

</mosaic_0001>

<llo_original>
// kernel: tpu_custom_call.1
$region0: #{tpu_custom_call.1}
  #allocation0 [shape = 'u32[]', space=smem, size = 0x4, offset = 0x4, fixed_abs, tag = 'smem constant byte address 0x4 - core index']
  #allocation1 [shape = 'u32[144,128]{1,0:T(1,128)}', space=vmem, size = 0x12000, scoped, tag = 'internal scratch']
  #allocation2 [shape = 'f32[1,1]{1,0:T(1,128)S(1)}', space=vmem, size = 0x200, scoped, tag = 'scoped memory for tpu_custom_call.1']
  %s0 = inlined_call_operand.hbm [shape: f32[20,32], index: 0, kind: input, shape index: {}]
  %s1 = inlined_call_operand.hbm [shape: bf16[32,128], index: 1, kind: input, shape index: {}]
  %s2 = inlined_call_operand.vmem [shape: f32[1,128], index: 2, kind: input, shape index: {}]
  %s3 = inlined_call_operand.hbm [shape: bf16[128,128], index: 3, kind: input, shape index: {}]
  %s4 = inlined_call_operand.vmem [shape: f32[1,128], index: 4, kind: input, shape index: {}]
  %s5 = inlined_call_operand.vmem [shape: f32[1,128], index: 5, kind: input, shape index: {}]
  %s6 = inlined_call_operand.<no memory space> [shape: f32[1,1], index: 6, kind: input, shape index: {}]
  %s7 = inlined_call_operand.hbm [shape: f32[8,128], index: 7, kind: output, shape index: {}]
  %s8 = sld [smem:[#allocation0]]
  $region50: #{tpu_custom_call.1} parent=0
    _
  %s10 = ssub.s32 1, %s8
  %s11 = scalar_select 0, %s10, %s8
  %v12 = vstv %s6
  %13 = vst [vmem:[#allocation2] sm:$0x1] %v12
  $region1: #{tpu_custom_call.1} parent=0
    #allocation3 [shape = 'u8[524288]{0}', space=vmem, size = 0x80000, scoped, tag = 'input window, operand 0, single buffered']
    #allocation4 [shape = 's32[1]{0}', space=sflag, size = 0x4, scoped, tag = 'scoped memory for tpu_custom_call.1']
    #allocation5 [shape = 's32[1]{0}', space=sflag, size = 0x4, scoped, tag = 'scoped memory for tpu_custom_call.1']
    #allocation6 [shape = 'u8[8192]{0}', space=vmem, size = 0x2000, scoped, tag = 'input window, operand 1, single buffered']
    #allocation7 [shape = 's32[1]{0}', space=sflag, size = 0x4, scoped, tag = 'scoped memory for tpu_custom_call.1']
    #allocation8 [shape = 'u8[32768]{0}', space=vmem, size = 0x8000, scoped, tag = 'input window, operand 3, single buffered']
    #allocation9 [shape = 'u8[4096]{0}', space=vmem, size = 0x1000, scoped, tag = 'output window, operand 0, single buffered']
    %14 = vsyncpa [#allocation4], 0
    %15 = vsyncpa [#allocation7], 0
    %16 = vsyncpa [#allocation5], 0
    // Predicated region
    $region2: #{tpu_custom_call.1} parent=1 // pred_check
      _
    $region3: #{tpu_custom_call.1} parent=1 // pred_check_branch
      %18 = sbr.rel (0) target = $region5
    $region4: #{tpu_custom_call.1} parent=1 // pred_region
      %s20 = ssub.s32 16384, 384
      %21 = vsyncadd [#allocation4], %s20
      %s22 = sshll.u32 [#allocation3], 4
      %s23 = int_to_ptr.vmem [resolvable:$true] %s22
      %28 = dma.hbm_to_vmem [thread:$0]  %s0, 384, %s23, [#allocation4], 128, 128, 8
    $region5: #{tpu_custom_call.1} parent=1 // pred_fallthru
      _
    // Predicated region
    $region6: #{tpu_custom_call.1} parent=1 // pred_check
      _
    $region7: #{tpu_custom_call.1} parent=1 // pred_check_branch
      %30 = sbr.rel (0) target = $region9
    $region8: #{tpu_custom_call.1} parent=1 // pred_region
      %s32 = ssub.s32 256, 256
      %33 = vsyncadd [#allocation7], %s32
      %s34 = sshll.u32 [#allocation6], 4
      %s35 = int_to_ptr.vmem [resolvable:$true] %s34
      %40 = dma.hbm_to_vmem [thread:$0]  %s1, 256, %s35, [#allocation7], 64, 64, 4
    $region9: #{tpu_custom_call.1} parent=1 // pred_fallthru
      _
    // Predicated region
    $region10: #{tpu_custom_call.1} parent=1 // pred_check
      _
    $region11: #{tpu_custom_call.1} parent=1 // pred_check_branch
      %42 = sbr.rel (0) target = $region13
    $region12: #{tpu_custom_call.1} parent=1 // pred_region
      _
    $region13: #{tpu_custom_call.1} parent=1 // pred_fallthru
      _
    // Predicated region
    $region14: #{tpu_custom_call.1} parent=1 // pred_check
      _
    $region15: #{tpu_custom_call.1} parent=1 // pred_check_branch
      %44 = sbr.rel (0) target = $region17
    $region16: #{tpu_custom_call.1} parent=1 // pred_region
      %s46 = ssub.s32 1024, 1024
      %47 = vsyncadd [#allocation7], %s46
      %s48 = sshll.u32 [#allocation8], 4
      %s49 = int_to_ptr.vmem [resolvable:$true] %s48
      %54 = dma.hbm_to_vmem [thread:$0]  %s3, 1024, %s49, [#allocation7], 64, 64, 4
    $region17: #{tpu_custom_call.1} parent=1 // pred_fallthru
      _
    // Predicated region
    $region18: #{tpu_custom_call.1} parent=1 // pred_check
      _
    $region19: #{tpu_custom_call.1} parent=1 // pred_check_branch
      %56 = sbr.rel (0) target = $region21
    $region20: #{tpu_custom_call.1} parent=1 // pred_region
      _
    $region21: #{tpu_custom_call.1} parent=1 // pred_fallthru
      _
    // Predicated region
    $region22: #{tpu_custom_call.1} parent=1 // pred_check
      _
    $region23: #{tpu_custom_call.1} parent=1 // pred_check_branch
      %58 = sbr.rel (0) target = $region25
    $region24: #{tpu_custom_call.1} parent=1 // pred_region
      _
    $region25: #{tpu_custom_call.1} parent=1 // pred_fallthru
      _
    // Predicated region
    $region26: #{tpu_custom_call.1} parent=1 // pred_check
      _
    $region27: #{tpu_custom_call.1} parent=1 // pred_check_branch
      %60 = sbr.rel (0) target = $region29
    $region28: #{tpu_custom_call.1} parent=1 // pred_region
      _
    $region29: #{tpu_custom_call.1} parent=1 // pred_fallthru
      _
    // Predicated region
    $region30: #{tpu_custom_call.1} parent=1 // pred_check
      _
    $region31: #{tpu_custom_call.1} parent=1 // pred_check_branch
      %62 = sbr.rel (0) target = $region33
    $region32: #{tpu_custom_call.1} parent=1 // pred_region
      %63 = dma.done [#allocation4], 16384
    $region33: #{tpu_custom_call.1} parent=1 // pred_fallthru
      _
    // Predicated region
    $region34: #{tpu_custom_call.1} parent=1 // pred_check
      _
    $region35: #{tpu_custom_call.1} parent=1 // pred_check_branch
      %65 = sbr.rel (0) target = $region37
    $region36: #{tpu_custom_call.1} parent=1 // pred_region
      %66 = dma.done [#allocation7], 256
    $region37: #{tpu_custom_call.1} parent=1 // pred_fallthru
      _
    // Predicated region
    $region38: #{tpu_custom_call.1} parent=1 // pred_check
      _
    $region39: #{tpu_custom_call.1} parent=1 // pred_check_branch
      %68 = sbr.rel (0) target = $region41
    $region40: #{tpu_custom_call.1} parent=1 // pred_region
      %69 = dma.done [#allocation7], 1024
    $region41: #{tpu_custom_call.1} parent=1 // pred_fallthru
      _
    %v71 = vld [vmem:[#allocation3] sm:$0xff]
    %v72 = vld [vmem:[#allocation3 + $0x8] sm:$0xff]
    %v73 = vld [vmem:[#allocation3 + $0x10] sm:$0xff]
    %v74 = vld [vmem:[#allocation3 + $0x18] sm:$0xff]
    %v75 = vld [vmem:[#allocation3 + $0x20] sm:$0xff]
    %v76 = vld [vmem:[#allocation3 + $0x28] sm:$0xff]
    %v77 = vld [vmem:[#allocation3 + $0x30] sm:$0xff]
    %v78 = vld [vmem:[#allocation3 + $0x38] sm:$0xff]
    %v79 = vld [vmem:[#allocation3 + $0x40] sm:$0xff]
    %v80 = vld [vmem:[#allocation3 + $0x48] sm:$0xff]
    %v81 = vld [vmem:[#allocation3 + $0x50] sm:$0xff]
    %v82 = vld [vmem:[#allocation3 + $0x58] sm:$0xff]
    %v83 = vld [vmem:[#allocation3 + $0x60] sm:$0xff]
    %v84 = vld [vmem:[#allocation3 + $0x68] sm:$0xff]
    %v85 = vld [vmem:[#allocation3 + $0x70] sm:$0xff]
    %v86 = vld [vmem:[#allocation3 + $0x78] sm:$0xff]
    %v87 = vld [vmem:[#allocation3 + $0x80] sm:$0xff]
    %v88 = vld [vmem:[#allocation3 + $0x88] sm:$0xff]
    %v89 = vld [vmem:[#allocation3 + $0x90] sm:$0xff]
    %v90 = vld [vmem:[#allocation3 + $0x98] sm:$0xff]
    %v91 = vld [vmem:[#allocation3 + $0xa0] sm:$0xff]
    %v92 = vld [vmem:[#allocation3 + $0xa8] sm:$0xff]
    %v93 = vld [vmem:[#allocation3 + $0xb0] sm:$0xff]
    %v94 = vld [vmem:[#allocation3 + $0xb8] sm:$0xff]
    %v95 = vld [vmem:[#allocation3 + $0xc0] sm:$0xff]
    %v96 = vld [vmem:[#allocation3 + $0xc8] sm:$0xff]
    %v97 = vld [vmem:[#allocation3 + $0xd0] sm:$0xff]
    %v98 = vld [vmem:[#allocation3 + $0xd8] sm:$0xff]
    %v99 = vld [vmem:[#allocation3 + $0xe0] sm:$0xff]
    %v100 = vld [vmem:[#allocation3 + $0xe8] sm:$0xff]
    %v101 = vld [vmem:[#allocation3 + $0xf0] sm:$0xff]
    %v102 = vld [vmem:[#allocation3 + $0xf8] sm:$0xff]
    %v103 = vld [vmem:[#allocation3 + $0x100] sm:$0xff]
    %v104 = vld [vmem:[#allocation3 + $0x108] sm:$0xff]
    %v105 = vld [vmem:[#allocation3 + $0x110] sm:$0xff]
    %v106 = vld [vmem:[#allocation3 + $0x118] sm:$0xff]
    %v107 = vld [vmem:[#allocation3 + $0x120] sm:$0xff]
    %v108 = vld [vmem:[#allocation3 + $0x128] sm:$0xff]
    %v109 = vld [vmem:[#allocation3 + $0x130] sm:$0xff]
    %v110 = vld [vmem:[#allocation3 + $0x138] sm:$0xff]
    %v111 = vld [vmem:[#allocation3 + $0x140] sm:$0xff]
    %v112 = vld [vmem:[#allocation3 + $0x148] sm:$0xff]
    %v113 = vld [vmem:[#allocation3 + $0x150] sm:$0xff]
    %v114 = vld [vmem:[#allocation3 + $0x158] sm:$0xff]
    %v115 = vld [vmem:[#allocation3 + $0x160] sm:$0xff]
    %v116 = vld [vmem:[#allocation3 + $0x168] sm:$0xff]
    %v117 = vld [vmem:[#allocation3 + $0x170] sm:$0xff]
    %v118 = vld [vmem:[#allocation3 + $0x178] sm:$0xff]
    %v119 = vld [vmem:[#allocation3 + $0x180] sm:$0xff]
    %v120 = vld [vmem:[#allocation3 + $0x188] sm:$0xff]
    %v121 = vld [vmem:[#allocation3 + $0x190] sm:$0xff]
    %v122 = vld [vmem:[#allocation3 + $0x198] sm:$0xff]
    %v123 = vld [vmem:[#allocation3 + $0x1a0] sm:$0xff]
    %v124 = vld [vmem:[#allocation3 + $0x1a8] sm:$0xff]
    %v125 = vld [vmem:[#allocation3 + $0x1b0] sm:$0xff]
    %v126 = vld [vmem:[#allocation3 + $0x1b8] sm:$0xff]
    %v127 = vld [vmem:[#allocation3 + $0x1c0] sm:$0xff]
    %v128 = vld [vmem:[#allocation3 + $0x1c8] sm:$0xff]
    %v129 = vld [vmem:[#allocation3 + $0x1d0] sm:$0xff]
    %v130 = vld [vmem:[#allocation3 + $0x1d8] sm:$0xff]
    %v131 = vld [vmem:[#allocation3 + $0x1e0] sm:$0xff]
    %v132 = vld [vmem:[#allocation3 + $0x1e8] sm:$0xff]
    %v133 = vld [vmem:[#allocation3 + $0x1f0] sm:$0xff]
    %v134 = vld [vmem:[#allocation3 + $0x1f8] sm:$0xff]
    %v135 = vld [vmem:[#allocation3 + $0x200] sm:$0xff]
    %v136 = vld [vmem:[#allocation3 + $0x208] sm:$0xff]
    %v137 = vld [vmem:[#allocation3 + $0x210] sm:$0xff]
    %v138 = vld [vmem:[#allocation3 + $0x218] sm:$0xff]
    %v139 = vld [vmem:[#allocation3 + $0x220] sm:$0xff]
    %v140 = vld [vmem:[#allocation3 + $0x228] sm:$0xff]
    %v141 = vld [vmem:[#allocation3 + $0x230] sm:$0xff]
    %v142 = vld [vmem:[#allocation3 + $0x238] sm:$0xff]
    %v143 = vld [vmem:[#allocation3 + $0x240] sm:$0xff]
    %v144 = vld [vmem:[#allocation3 + $0x248] sm:$0xff]
    %v145 = vld [vmem:[#allocation3 + $0x250] sm:$0xff]
    %v146 = vld [vmem:[#allocation3 + $0x258] sm:$0xff]
    %v147 = vld [vmem:[#allocation3 + $0x260] sm:$0xff]
    %v148 = vld [vmem:[#allocation3 + $0x268] sm:$0xff]
    %v149 = vld [vmem:[#allocation3 + $0x270] sm:$0xff]
    %v150 = vld [vmem:[#allocation3 + $0x278] sm:$0xff]
    %v151 = vld [vmem:[#allocation3 + $0x280] sm:$0xff]
    %v152 = vld [vmem:[#allocation3 + $0x288] sm:$0xff]
    %v153 = vld [vmem:[#allocation3 + $0x290] sm:$0xff]
    %v154 = vld [vmem:[#allocation3 + $0x298] sm:$0xff]
    %v155 = vld [vmem:[#allocation3 + $0x2a0] sm:$0xff]
    %v156 = vld [vmem:[#allocation3 + $0x2a8] sm:$0xff]
    %v157 = vld [vmem:[#allocation3 + $0x2b0] sm:$0xff]
    %v158 = vld [vmem:[#allocation3 + $0x2b8] sm:$0xff]
    %v159 = vld [vmem:[#allocation3 + $0x2c0] sm:$0xff]
    %v160 = vld [vmem:[#allocation3 + $0x2c8] sm:$0xff]
    %v161 = vld [vmem:[#allocation3 + $0x2d0] sm:$0xff]
    %v162 = vld [vmem:[#allocation3 + $0x2d8] sm:$0xff]
    %v163 = vld [vmem:[#allocation3 + $0x2e0] sm:$0xff]
    %v164 = vld [vmem:[#allocation3 + $0x2e8] sm:$0xff]
    %v165 = vld [vmem:[#allocation3 + $0x2f0] sm:$0xff]
    %v166 = vld [vmem:[#allocation3 + $0x2f8] sm:$0xff]
    %v167 = vld [vmem:[#allocation3 + $0x300] sm:$0xff]
    %v168 = vld [vmem:[#allocation3 + $0x308] sm:$0xff]
    %v169 = vld [vmem:[#allocation3 + $0x310] sm:$0xff]
    %v170 = vld [vmem:[#allocation3 + $0x318] sm:$0xff]
    %v171 = vld [vmem:[#allocation3 + $0x320] sm:$0xff]
    %v172 = vld [vmem:[#allocation3 + $0x328] sm:$0xff]
    %v173 = vld [vmem:[#allocation3 + $0x330] sm:$0xff]
    %v174 = vld [vmem:[#allocation3 + $0x338] sm:$0xff]
    %v175 = vld [vmem:[#allocation3 + $0x340] sm:$0xff]
    %v176 = vld [vmem:[#allocation3 + $0x348] sm:$0xff]
    %v177 = vld [vmem:[#allocation3 + $0x350] sm:$0xff]
    %v178 = vld [vmem:[#allocation3 + $0x358] sm:$0xff]
    %v179 = vld [vmem:[#allocation3 + $0x360] sm:$0xff]
    %v180 = vld [vmem:[#allocation3 + $0x368] sm:$0xff]
    %v181 = vld [vmem:[#allocation3 + $0x370] sm:$0xff]
    %v182 = vld [vmem:[#allocation3 + $0x378] sm:$0xff]
    %v183 = vld [vmem:[#allocation3 + $0x380] sm:$0xff]
    %v184 = vld [vmem:[#allocation3 + $0x388] sm:$0xff]
    %v185 = vld [vmem:[#allocation3 + $0x390] sm:$0xff]
    %v186 = vld [vmem:[#allocation3 + $0x398] sm:$0xff]
    %v187 = vld [vmem:[#allocation3 + $0x3a0] sm:$0xff]
    %v188 = vld [vmem:[#allocation3 + $0x3a8] sm:$0xff]
    %v189 = vld [vmem:[#allocation3 + $0x3b0] sm:$0xff]
    %v190 = vld [vmem:[#allocation3 + $0x3b8] sm:$0xff]
    %v191 = vld [vmem:[#allocation3 + $0x3c0] sm:$0xff]
    %v192 = vld [vmem:[#allocation3 + $0x3c8] sm:$0xff]
    %v193 = vld [vmem:[#allocation3 + $0x3d0] sm:$0xff]
    %v194 = vld [vmem:[#allocation3 + $0x3d8] sm:$0xff]
    %v195 = vld [vmem:[#allocation3 + $0x3e0] sm:$0xff]
    %v196 = vld [vmem:[#allocation3 + $0x3e8] sm:$0xff]
    %v197 = vld [vmem:[#allocation3 + $0x3f0] sm:$0xff]
    %v198 = vld [vmem:[#allocation3 + $0x3f8] sm:$0xff]
    %v199 = vpack.c.bf16 %v72, %v71
    %v200 = vpack.c.bf16 %v74, %v73
    %v201 = vpack.c.bf16 %v76, %v75
    %v202 = vpack.c.bf16 %v78, %v77
    %v203 = vpack.c.bf16 %v80, %v79
    %v204 = vpack.c.bf16 %v82, %v81
    %v205 = vpack.c.bf16 %v84, %v83
    %v206 = vpack.c.bf16 %v86, %v85
    %v207 = vpack.c.bf16 %v88, %v87
    %v208 = vpack.c.bf16 %v90, %v89
    %v209 = vpack.c.bf16 %v92, %v91
    %v210 = vpack.c.bf16 %v94, %v93
    %v211 = vpack.c.bf16 %v96, %v95
    %v212 = vpack.c.bf16 %v98, %v97
    %v213 = vpack.c.bf16 %v100, %v99
    %v214 = vpack.c.bf16 %v102, %v101
    %v215 = vpack.c.bf16 %v104, %v103
    %v216 = vpack.c.bf16 %v106, %v105
    %v217 = vpack.c.bf16 %v108, %v107
    %v218 = vpack.c.bf16 %v110, %v109
    %v219 = vpack.c.bf16 %v112, %v111
    %v220 = vpack.c.bf16 %v114, %v113
    %v221 = vpack.c.bf16 %v116, %v115
    %v222 = vpack.c.bf16 %v118, %v117
    %v223 = vpack.c.bf16 %v120, %v119
    %v224 = vpack.c.bf16 %v122, %v121
    %v225 = vpack.c.bf16 %v124, %v123
    %v226 = vpack.c.bf16 %v126, %v125
    %v227 = vpack.c.bf16 %v128, %v127
    %v228 = vpack.c.bf16 %v130, %v129
    %v229 = vpack.c.bf16 %v132, %v131
    %v230 = vpack.c.bf16 %v134, %v133
    %v231 = vpack.c.bf16 %v136, %v135
    %v232 = vpack.c.bf16 %v138, %v137
    %v233 = vpack.c.bf16 %v140, %v139
    %v234 = vpack.c.bf16 %v142, %v141
    %v235 = vpack.c.bf16 %v144, %v143
    %v236 = vpack.c.bf16 %v146, %v145
    %v237 = vpack.c.bf16 %v148, %v147
    %v238 = vpack.c.bf16 %v150, %v149
    %v239 = vpack.c.bf16 %v152, %v151
    %v240 = vpack.c.bf16 %v154, %v153
    %v241 = vpack.c.bf16 %v156, %v155
    %v242 = vpack.c.bf16 %v158, %v157
    %v243 = vpack.c.bf16 %v160, %v159
    %v244 = vpack.c.bf16 %v162, %v161
    %v245 = vpack.c.bf16 %v164, %v163
    %v246 = vpack.c.bf16 %v166, %v165
    %v247 = vpack.c.bf16 %v168, %v167
    %v248 = vpack.c.bf16 %v170, %v169
    %v249 = vpack.c.bf16 %v172, %v171
    %v250 = vpack.c.bf16 %v174, %v173
    %v251 = vpack.c.bf16 %v176, %v175
    %v252 = vpack.c.bf16 %v178, %v177
    %v253 = vpack.c.bf16 %v180, %v179
    %v254 = vpack.c.bf16 %v182, %v181
    %v255 = vpack.c.bf16 %v184, %v183
    %v256 = vpack.c.bf16 %v186, %v185
    %v257 = vpack.c.bf16 %v188, %v187
    %v258 = vpack.c.bf16 %v190, %v189
    %v259 = vpack.c.bf16 %v192, %v191
    %v260 = vpack.c.bf16 %v194, %v193
    %v261 = vpack.c.bf16 %v196, %v195
    %v262 = vpack.c.bf16 %v198, %v197
    %v263 = vld [vmem:[#allocation6] sm:$0xf]
    %v264 = vld [vmem:[#allocation6 + $0x4] sm:$0xf]
    %v265 = vld [vmem:[#allocation6 + $0x8] sm:$0xf]
    %v266 = vld [vmem:[#allocation6 + $0xc] sm:$0xf]
    %v267 = vld [vmem:[%s2] sm:$0x1]
    %v269 = vlaneseq
    %v270 = vshrl.u32 %v269, 7
    %v271 = vsub.s32 0, %v270
    %v272 = vrot.slane %v267, %v271
    %v278 = vunpack.c.l.b16 %v263
    %v279 = vunpack.c.l.b16 %v264
    %v280 = vunpack.c.l.b16 %v265
    %v281 = vunpack.c.l.b16 %v266
    %v282 = vpack.c.b16 %v279, %v278
    %v283 = vpack.c.b16 %v281, %v280
    %vm286 = vcmask 261120
    %v288 = vsel %vm286, %v199, 0
    %v291 = vsel %vm286, %v200, 0
    %v294 = vsel %vm286, %v201, 0
    %v297 = vsel %vm286, %v202, 0
    %v300 = vsel %vm286, %v203, 0
    %v303 = vsel %vm286, %v204, 0
    %v306 = vsel %vm286, %v205, 0
    %v309 = vsel %vm286, %v206, 0
    %v312 = vsel %vm286, %v207, 0
    %v315 = vsel %vm286, %v208, 0
    %v318 = vsel %vm286, %v209, 0
    %v321 = vsel %vm286, %v210, 0
    %v324 = vsel %vm286, %v211, 0
    %v327 = vsel %vm286, %v212, 0
    %v330 = vsel %vm286, %v213, 0
    %v333 = vsel %vm286, %v214, 0
    %v336 = vsel %vm286, %v215, 0
    %v339 = vsel %vm286, %v216, 0
    %v342 = vsel %vm286, %v217, 0
    %v345 = vsel %vm286, %v218, 0
    %v348 = vsel %vm286, %v219, 0
    %v351 = vsel %vm286, %v220, 0
    %v354 = vsel %vm286, %v221, 0
    %v357 = vsel %vm286, %v222, 0
    %v360 = vsel %vm286, %v223, 0
    %v363 = vsel %vm286, %v224, 0
    %v366 = vsel %vm286, %v225, 0
    %v369 = vsel %vm286, %v226, 0
    %v372 = vsel %vm286, %v227, 0
    %v375 = vsel %vm286, %v228, 0
    %v378 = vsel %vm286, %v229, 0
    %v381 = vsel %vm286, %v230, 0
    %v384 = vsel %vm286, %v231, 0
    %v387 = vsel %vm286, %v232, 0
    %v390 = vsel %vm286, %v233, 0
    %v393 = vsel %vm286, %v234, 0
    %v396 = vsel %vm286, %v235, 0
    %v399 = vsel %vm286, %v236, 0
    %v402 = vsel %vm286, %v237, 0
    %v405 = vsel %vm286, %v238, 0
    %v408 = vsel %vm286, %v239, 0
    %v411 = vsel %vm286, %v240, 0
    %v414 = vsel %vm286, %v241, 0
    %v417 = vsel %vm286, %v242, 0
    %v420 = vsel %vm286, %v243, 0
    %v423 = vsel %vm286, %v244, 0
    %v426 = vsel %vm286, %v245, 0
    %v429 = vsel %vm286, %v246, 0
    %v432 = vsel %vm286, %v247, 0
    %v435 = vsel %vm286, %v248, 0
    %v438 = vsel %vm286, %v249, 0
    %v441 = vsel %vm286, %v250, 0
    %v444 = vsel %vm286, %v251, 0
    %v447 = vsel %vm286, %v252, 0
    %v450 = vsel %vm286, %v253, 0
    %v453 = vsel %vm286, %v254, 0
    %v456 = vsel %vm286, %v255, 0
    %v459 = vsel %vm286, %v256, 0
    %v462 = vsel %vm286, %v257, 0
    %v465 = vsel %vm286, %v258, 0
    %v468 = vsel %vm286, %v259, 0
    %v471 = vsel %vm286, %v260, 0
    %v474 = vsel %vm286, %v261, 0
    %v477 = vsel %vm286, %v262, 0
    %479 = vmatprep.subr.bf16.mxu0 0
    %480 = vmatpush1.bf16.msra.mxu0 %v282
    %481 = vmatprep.subr.bf16.mxu0 0
    %482 = vmatpush1.bf16.msra.mxu0 %v283
    %483 = vmatprep.subr.bf16.mxu0 0
    %484 = vmatpush1.bf16.msra.mxu0 0
    %485 = vmatprep.subr.bf16.mxu0 0
    %486 = vmatpush1.bf16.msra.mxu0 0
    %487 = vmatprep.subr.bf16.mxu0 0
    %488 = vmatpush1.bf16.msra.mxu0 0
    %489 = vmatprep.subr.bf16.mxu0 0
    %490 = vmatpush1.bf16.msra.mxu0 0
    %491 = vmatprep.subr.bf16.mxu0 0
    %492 = vmatpush1.bf16.msra.mxu0 0
    %493 = vmatprep.subr.bf16.mxu0 0
    %494 = vmatpush1.bf16.msra.mxu0 0
    %495 = vmatprep.subr.bf16.mxu0 0
    %496 = vmatpush1.bf16.msra.mxu0 0
    %497 = vmatprep.subr.bf16.mxu0 0
    %498 = vmatpush1.bf16.msra.mxu0 0
    %499 = vmatprep.subr.bf16.mxu0 0
    %500 = vmatpush1.bf16.msra.mxu0 0
    %501 = vmatprep.subr.bf16.mxu0 0
    %502 = vmatpush1.bf16.msra.mxu0 0
    %503 = vmatprep.subr.bf16.mxu0 0
    %504 = vmatpush1.bf16.msra.mxu0 0
    %505 = vmatprep.subr.bf16.mxu0 0
    %506 = vmatpush1.bf16.msra.mxu0 0
    %507 = vmatprep.subr.bf16.mxu0 0
    %508 = vmatpush1.bf16.msra.mxu0 0
    %509 = vmatprep.subr.bf16.mxu0 0
    %510 = vmatpush1.bf16.msra.mxu0 0
    %511 = vmatprep.mubr.bf16.mxu0 0
    %512 = vmatmul.mubr.bf16.gmra.mrb[0].mxu0 %v288
    %v513 = vpop.f32.mrb[0].mxu0
    %v514 = vadd.f32 %v272, %v513
    %v515 = vpop.f32.mrb[0].mxu0
    %v516 = vpop.f32.mrb[0].mxu0
    %v517 = vadd.f32 %v272, %v516
    %v518 = vpop.f32.mrb[0].mxu0
    %519 = vmatprep.mubr.bf16.mxu0 0
    %520 = vmatmul.mubr.bf16.gmra.mrb[0].mxu0 %v291
    %v521 = vpop.f32.mrb[0].mxu0
    %v522 = vadd.f32 %v272, %v521
    %v523 = vpop.f32.mrb[0].mxu0
    %v524 = vpop.f32.mrb[0].mxu0
    %v525 = vadd.f32 %v272, %v524
    %v526 = vpop.f32.mrb[0].mxu0
    %527 = vmatprep.mubr.bf16.mxu0 0
    %528 = vmatmul.mubr.bf16.gmra.mrb[0].mxu0 %v294
    %v529 = vpop.f32.mrb[0].mxu0
    %v530 = vadd.f32 %v272, %v529
    %v531 = vpop.f32.mrb[0].mxu0
    %v532 = vpop.f32.mrb[0].mxu0
    %v533 = vadd.f32 %v272, %v532
    %v534 = vpop.f32.mrb[0].mxu0
    %535 = vmatprep.mubr.bf16.mxu0 0
    %536 = vmatmul.mubr.bf16.gmra.mrb[0].mxu0 %v297
    %v537 = vpop.f32.mrb[0].mxu0
    %v538 = vadd.f32 %v272, %v537
    %v539 = vpop.f32.mrb[0].mxu0
    %v540 = vpop.f32.mrb[0].mxu0
    %v541 = vadd.f32 %v272, %v540
    %v542 = vpop.f32.mrb[0].mxu0
    %543 = vmatprep.mubr.bf16.mxu0 0
    %544 = vmatmul.mubr.bf16.gmra.mrb[0].mxu0 %v300
    %v545 = vpop.f32.mrb[0].mxu0
    %v546 = vadd.f32 %v272, %v545
    %v547 = vpop.f32.mrb[0].mxu0
    %v548 = vpop.f32.mrb[0].mxu0
    %v549 = vadd.f32 %v272, %v548
    %v550 = vpop.f32.mrb[0].mxu0
    %551 = vmatprep.mubr.bf16.mxu0 0
    %552 = vmatmul.mubr.bf16.gmra.mrb[0].mxu0 %v303
    %v553 = vpop.f32.mrb[0].mxu0
    %v554 = vadd.f32 %v272, %v553
    %v555 = vpop.f32.mrb[0].mxu0
    %v556 = vpop.f32.mrb[0].mxu0
    %v557 = vadd.f32 %v272, %v556
    %v558 = vpop.f32.mrb[0].mxu0
    %559 = vmatprep.mubr.bf16.mxu0 0
    %560 = vmatmul.mubr.bf16.gmra.mrb[0].mxu0 %v306
    %v561 = vpop.f32.mrb[0].mxu0
    %v562 = vadd.f32 %v272, %v561
    %v563 = vpop.f32.mrb[0].mxu0
    %v564 = vpop.f32.mrb[0].mxu0
    %v565 = vadd.f32 %v272, %v564
    %v566 = vpop.f32.mrb[0].mxu0
    %567 = vmatprep.mubr.bf16.mxu0 0
    %568 = vmatmul.mubr.bf16.gmra.mrb[0].mxu0 %v309
    %v569 = vpop.f32.mrb[0].mxu0
    %v570 = vadd.f32 %v272, %v569
    %v571 = vpop.f32.mrb[0].mxu0
    %v572 = vpop.f32.mrb[0].mxu0
    %v573 = vadd.f32 %v272, %v572
    %v574 = vpop.f32.mrb[0].mxu0
    %575 = vmatprep.mubr.bf16.mxu0 0
    %576 = vmatmul.mubr.bf16.gmra.mrb[0].mxu0 %v312
    %v577 = vpop.f32.mrb[0].mxu0
    %v578 = vadd.f32 %v272, %v577
    %v579 = vpop.f32.mrb[0].mxu0
    %v580 = vpop.f32.mrb[0].mxu0
    %v581 = vadd.f32 %v272, %v580
    %v582 = vpop.f32.mrb[0].mxu0
    %583 = vmatprep.mubr.bf16.mxu0 0
    %584 = vmatmul.mubr.bf16.gmra.mrb[0].mxu0 %v315
    %v585 = vpop.f32.mrb[0].mxu0
    %v586 = vadd.f32 %v272, %v585
    %v587 = vpop.f32.mrb[0].mxu0
    %v588 = vpop.f32.mrb[0].mxu0
    %v589 = vadd.f32 %v272, %v588
    %v590 = vpop.f32.mrb[0].mxu0
    %591 = vmatprep.mubr.bf16.mxu0 0
    %592 = vmatmul.mubr.bf16.gmra.mrb[0].mxu0 %v318
    %v593 = vpop.f32.mrb[0].mxu0
    %v594 = vadd.f32 %v272, %v593
    %v595 = vpop.f32.mrb[0].mxu0
    %v596 = vpop.f32.mrb[0].mxu0
    %v597 = vadd.f32 %v272, %v596
    %v598 = vpop.f32.mrb[0].mxu0
    %599 = vmatprep.mubr.bf16.mxu0 0
    %600 = vmatmul.mubr.bf16.gmra.mrb[0].mxu0 %v321
    %v601 = vpop.f32.mrb[0].mxu0
    %v602 = vadd.f32 %v272, %v601
    %v603 = vpop.f32.mrb[0].mxu0
    %v604 = vpop.f32.mrb[0].mxu0
    %v605 = vadd.f32 %v272, %v604
    %v606 = vpop.f32.mrb[0].mxu0
    %607 = vmatprep.mubr.bf16.mxu0 0
    %608 = vmatmul.mubr.bf16.gmra.mrb[0].mxu0 %v324
    %v609 = vpop.f32.mrb[0].mxu0
    %v610 = vadd.f32 %v272, %v609
    %v611 = vpop.f32.mrb[0].mxu0
    %v612 = vpop.f32.mrb[0].mxu0
    %v613 = vadd.f32 %v272, %v612
    %v614 = vpop.f32.mrb[0].mxu0
    %615 = vmatprep.mubr.bf16.mxu0 0
    %616 = vmatmul.mubr.bf16.gmra.mrb[0].mxu0 %v327
    %v617 = vpop.f32.mrb[0].mxu0
    %v618 = vadd.f32 %v272, %v617
    %v619 = vpop.f32.mrb[0].mxu0
    %v620 = vpop.f32.mrb[0].mxu0
    %v621 = vadd.f32 %v272, %v620
    %v622 = vpop.f32.mrb[0].mxu0
    %623 = vmatprep.mubr.bf16.mxu0 0
    %624 = vmatmul.mubr.bf16.gmra.mrb[0].mxu0 %v330
    %v625 = vpop.f32.mrb[0].mxu0
    %v626 = vadd.f32 %v272, %v625
    %v627 = vpop.f32.mrb[0].mxu0
    %v628 = vpop.f32.mrb[0].mxu0
    %v629 = vadd.f32 %v272, %v628
    %v630 = vpop.f32.mrb[0].mxu0
    %631 = vmatprep.mubr.bf16.mxu0 0
    %632 = vmatmul.mubr.bf16.gmra.mrb[0].mxu0 %v333
    %v633 = vpop.f32.mrb[0].mxu0
    %v634 = vadd.f32 %v272, %v633
    %v635 = vpop.f32.mrb[0].mxu0
    %v636 = vpop.f32.mrb[0].mxu0
    %v637 = vadd.f32 %v272, %v636
    %v638 = vpop.f32.mrb[0].mxu0
    %639 = vmatprep.mubr.bf16.mxu0 0
    %640 = vmatmul.mubr.bf16.gmra.mrb[0].mxu0 %v336
    %v641 = vpop.f32.mrb[0].mxu0
    %v642 = vadd.f32 %v272, %v641
    %v643 = vpop.f32.mrb[0].mxu0
    %v644 = vpop.f32.mrb[0].mxu0
    %v645 = vadd.f32 %v272, %v644
    %v646 = vpop.f32.mrb[0].mxu0
    %647 = vmatprep.mubr.bf16.mxu0 0
    %648 = vmatmul.mubr.bf16.gmra.mrb[0].mxu0 %v339
    %v649 = vpop.f32.mrb[0].mxu0
    %v650 = vadd.f32 %v272, %v649
    %v651 = vpop.f32.mrb[0].mxu0
    %v652 = vpop.f32.mrb[0].mxu0
    %v653 = vadd.f32 %v272, %v652
    %v654 = vpop.f32.mrb[0].mxu0
    %655 = vmatprep.mubr.bf16.mxu0 0
    %656 = vmatmul.mubr.bf16.gmra.mrb[0].mxu0 %v342
    %v657 = vpop.f32.mrb[0].mxu0
    %v658 = vadd.f32 %v272, %v657
    %v659 = vpop.f32.mrb[0].mxu0
    %v660 = vpop.f32.mrb[0].mxu0
    %v661 = vadd.f32 %v272, %v660
    %v662 = vpop.f32.mrb[0].mxu0
    %663 = vmatprep.mubr.bf16.mxu0 0
    %664 = vmatmul.mubr.bf16.gmra.mrb[0].mxu0 %v345
    %v665 = vpop.f32.mrb[0].mxu0
    %v666 = vadd.f32 %v272, %v665
    %v667 = vpop.f32.mrb[0].mxu0
    %v668 = vpop.f32.mrb[0].mxu0
    %v669 = vadd.f32 %v272, %v668
    %v670 = vpop.f32.mrb[0].mxu0
    %671 = vmatprep.mubr.bf16.mxu0 0
    %672 = vmatmul.mubr.bf16.gmra.mrb[0].mxu0 %v348
    %v673 = vpop.f32.mrb[0].mxu0
    %v674 = vadd.f32 %v272, %v673
    %v675 = vpop.f32.mrb[0].mxu0
    %v676 = vpop.f32.mrb[0].mxu0
    %v677 = vadd.f32 %v272, %v676
    %v678 = vpop.f32.mrb[0].mxu0
    %679 = vmatprep.mubr.bf16.mxu0 0
    %680 = vmatmul.mubr.bf16.gmra.mrb[0].mxu0 %v351
    %v681 = vpop.f32.mrb[0].mxu0
    %v682 = vadd.f32 %v272, %v681
    %v683 = vpop.f32.mrb[0].mxu0
    %v684 = vpop.f32.mrb[0].mxu0
    %v685 = vadd.f32 %v272, %v684
    %v686 = vpop.f32.mrb[0].mxu0
    %687 = vmatprep.mubr.bf16.mxu0 0
    %688 = vmatmul.mubr.bf16.gmra.mrb[0].mxu0 %v354
    %v689 = vpop.f32.mrb[0].mxu0
    %v690 = vadd.f32 %v272, %v689
    %v691 = vpop.f32.mrb[0].mxu0
    %v692 = vpop.f32.mrb[0].mxu0
    %v693 = vadd.f32 %v272, %v692
    %v694 = vpop.f32.mrb[0].mxu0
    %695 = vmatprep.mubr.bf16.mxu0 0
    %696 = vmatmul.mubr.bf16.gmra.mrb[0].mxu0 %v357
    %v697 = vpop.f32.mrb[0].mxu0
    %v698 = vadd.f32 %v272, %v697
    %v699 = vpop.f32.mrb[0].mxu0
    %v700 = vpop.f32.mrb[0].mxu0
    %v701 = vadd.f32 %v272, %v700
    %v702 = vpop.f32.mrb[0].mxu0
    %703 = vmatprep.mubr.bf16.mxu0 0
    %704 = vmatmul.mubr.bf16.gmra.mrb[0].mxu0 %v360
    %v705 = vpop.f32.mrb[0].mxu0
    %v706 = vadd.f32 %v272, %v705
    %v707 = vpop.f32.mrb[0].mxu0
    %v708 = vpop.f32.mrb[0].mxu0
    %v709 = vadd.f32 %v272, %v708
    %v710 = vpop.f32.mrb[0].mxu0
    %711 = vmatprep.mubr.bf16.mxu0 0
    %712 = vmatmul.mubr.bf16.gmra.mrb[0].mxu0 %v363
    %v713 = vpop.f32.mrb[0].mxu0
    %v714 = vadd.f32 %v272, %v713
    %v715 = vpop.f32.mrb[0].mxu0
    %v716 = vpop.f32.mrb[0].mxu0
    %v717 = vadd.f32 %v272, %v716
    %v718 = vpop.f32.mrb[0].mxu0
    %719 = vmatprep.mubr.bf16.mxu0 0
    %720 = vmatmul.mubr.bf16.gmra.mrb[0].mxu0 %v366
    %v721 = vpop.f32.mrb[0].mxu0
    %v722 = vadd.f32 %v272, %v721
    %v723 = vpop.f32.mrb[0].mxu0
    %v724 = vpop.f32.mrb[0].mxu0
    %v725 = vadd.f32 %v272, %v724
    %v726 = vpop.f32.mrb[0].mxu0
    %727 = vmatprep.mubr.bf16.mxu0 0
    %728 = vmatmul.mubr.bf16.gmra.mrb[0].mxu0 %v369
    %v729 = vpop.f32.mrb[0].mxu0
    %v730 = vadd.f32 %v272, %v729
    %v731 = vpop.f32.mrb[0].mxu0
    %v732 = vpop.f32.mrb[0].mxu0
    %v733 = vadd.f32 %v272, %v732
    %v734 = vpop.f32.mrb[0].mxu0
    %735 = vmatprep.mubr.bf16.mxu0 0
    %736 = vmatmul.mubr.bf16.gmra.mrb[0].mxu0 %v372
    %v737 = vpop.f32.mrb[0].mxu0
    %v738 = vadd.f32 %v272, %v737
    %v739 = vpop.f32.mrb[0].mxu0
    %v740 = vpop.f32.mrb[0].mxu0
    %v741 = vadd.f32 %v272, %v740
    %v742 = vpop.f32.mrb[0].mxu0
    %743 = vmatprep.mubr.bf16.mxu0 0
    %744 = vmatmul.mubr.bf16.gmra.mrb[0].mxu0 %v375
    %v745 = vpop.f32.mrb[0].mxu0
    %v746 = vadd.f32 %v272, %v745
    %v747 = vpop.f32.mrb[0].mxu0
    %v748 = vpop.f32.mrb[0].mxu0
    %v749 = vadd.f32 %v272, %v748
    %v750 = vpop.f32.mrb[0].mxu0
    %751 = vmatprep.mubr.bf16.mxu0 0
    %752 = vmatmul.mubr.bf16.gmra.mrb[0].mxu0 %v378
    %v753 = vpop.f32.mrb[0].mxu0
    %v754 = vadd.f32 %v272, %v753
    %v755 = vpop.f32.mrb[0].mxu0
    %v756 = vpop.f32.mrb[0].mxu0
    %v757 = vadd.f32 %v272, %v756
    %v758 = vpop.f32.mrb[0].mxu0
    %759 = vmatprep.mubr.bf16.mxu0 0
    %760 = vmatmul.mubr.bf16.gmra.mrb[0].mxu0 %v381
    %v761 = vpop.f32.mrb[0].mxu0
    %v762 = vadd.f32 %v272, %v761
    %v763 = vpop.f32.mrb[0].mxu0
    %v764 = vpop.f32.mrb[0].mxu0
    %v765 = vadd.f32 %v272, %v764
    %v766 = vpop.f32.mrb[0].mxu0
    %767 = vmatprep.mubr.bf16.mxu0 0
    %768 = vmatmul.mubr.bf16.gmra.mrb[0].mxu0 %v384
    %v769 = vpop.f32.mrb[0].mxu0
    %v770 = vadd.f32 %v272, %v769
    %v771 = vpop.f32.mrb[0].mxu0
    %v772 = vpop.f32.mrb[0].mxu0
    %v773 = vadd.f32 %v272, %v772
    %v774 = vpop.f32.mrb[0].mxu0
    %775 = vmatprep.mubr.bf16.mxu0 0
    %776 = vmatmul.mubr.bf16.gmra.mrb[0].mxu0 %v387
    %v777 = vpop.f32.mrb[0].mxu0
    %v778 = vadd.f32 %v272, %v777
    %v779 = vpop.f32.mrb[0].mxu0
    %v780 = vpop.f32.mrb[0].mxu0
    %v781 = vadd.f32 %v272, %v780
    %v782 = vpop.f32.mrb[0].mxu0
    %783 = vmatprep.mubr.bf16.mxu0 0
    %784 = vmatmul.mubr.bf16.gmra.mrb[0].mxu0 %v390
    %v785 = vpop.f32.mrb[0].mxu0
    %v786 = vadd.f32 %v272, %v785
    %v787 = vpop.f32.mrb[0].mxu0
    %v788 = vpop.f32.mrb[0].mxu0
    %v789 = vadd.f32 %v272, %v788
    %v790 = vpop.f32.mrb[0].mxu0
    %791 = vmatprep.mubr.bf16.mxu0 0
    %792 = vmatmul.mubr.bf16.gmra.mrb[0].mxu0 %v393
    %v793 = vpop.f32.mrb[0].mxu0
    %v794 = vadd.f32 %v272, %v793
    %v795 = vpop.f32.mrb[0].mxu0
    %v796 = vpop.f32.mrb[0].mxu0
    %v797 = vadd.f32 %v272, %v796
    %v798 = vpop.f32.mrb[0].mxu0
    %799 = vmatprep.mubr.bf16.mxu0 0
    %800 = vmatmul.mubr.bf16.gmra.mrb[0].mxu0 %v396
    %v801 = vpop.f32.mrb[0].mxu0
    %v802 = vadd.f32 %v272, %v801
    %v803 = vpop.f32.mrb[0].mxu0
    %v804 = vpop.f32.mrb[0].mxu0
    %v805 = vadd.f32 %v272, %v804
    %v806 = vpop.f32.mrb[0].mxu0
    %807 = vmatprep.mubr.bf16.mxu0 0
    %808 = vmatmul.mubr.bf16.gmra.mrb[0].mxu0 %v399
    %v809 = vpop.f32.mrb[0].mxu0
    %v810 = vadd.f32 %v272, %v809
    %v811 = vpop.f32.mrb[0].mxu0
    %v812 = vpop.f32.mrb[0].mxu0
    %v813 = vadd.f32 %v272, %v812
    %v814 = vpop.f32.mrb[0].mxu0
    %815 = vmatprep.mubr.bf16.mxu0 0
    %816 = vmatmul.mubr.bf16.gmra.mrb[0].mxu0 %v402
    %v817 = vpop.f32.mrb[0].mxu0
    %v818 = vadd.f32 %v272, %v817
    %v819 = vpop.f32.mrb[0].mxu0
    %v820 = vpop.f32.mrb[0].mxu0
    %v821 = vadd.f32 %v272, %v820
    %v822 = vpop.f32.mrb[0].mxu0
    %823 = vmatprep.mubr.bf16.mxu0 0
    %824 = vmatmul.mubr.bf16.gmra.mrb[0].mxu0 %v405
    %v825 = vpop.f32.mrb[0].mxu0
    %v826 = vadd.f32 %v272, %v825
    %v827 = vpop.f32.mrb[0].mxu0
    %v828 = vpop.f32.mrb[0].mxu0
    %v829 = vadd.f32 %v272, %v828
    %v830 = vpop.f32.mrb[0].mxu0
    %831 = vmatprep.mubr.bf16.mxu0 0
    %832 = vmatmul.mubr.bf16.gmra.mrb[0].mxu0 %v408
    %v833 = vpop.f32.mrb[0].mxu0
    %v834 = vadd.f32 %v272, %v833
    %v835 = vpop.f32.mrb[0].mxu0
    %v836 = vpop.f32.mrb[0].mxu0
    %v837 = vadd.f32 %v272, %v836
    %v838 = vpop.f32.mrb[0].mxu0
    %839 = vmatprep.mubr.bf16.mxu0 0
    %840 = vmatmul.mubr.bf16.gmra.mrb[0].mxu0 %v411
    %v841 = vpop.f32.mrb[0].mxu0
    %v842 = vadd.f32 %v272, %v841
    %v843 = vpop.f32.mrb[0].mxu0
    %v844 = vpop.f32.mrb[0].mxu0
    %v845 = vadd.f32 %v272, %v844
    %v846 = vpop.f32.mrb[0].mxu0
    %847 = vmatprep.mubr.bf16.mxu0 0
    %848 = vmatmul.mubr.bf16.gmra.mrb[0].mxu0 %v414
    %v849 = vpop.f32.mrb[0].mxu0
    %v850 = vadd.f32 %v272, %v849
    %v851 = vpop.f32.mrb[0].mxu0
    %v852 = vpop.f32.mrb[0].mxu0
    %v853 = vadd.f32 %v272, %v852
    %v854 = vpop.f32.mrb[0].mxu0
    %855 = vmatprep.mubr.bf16.mxu0 0
    %856 = vmatmul.mubr.bf16.gmra.mrb[0].mxu0 %v417
    %v857 = vpop.f32.mrb[0].mxu0
    %v858 = vadd.f32 %v272, %v857
    %v859 = vpop.f32.mrb[0].mxu0
    %v860 = vpop.f32.mrb[0].mxu0
    %v861 = vadd.f32 %v272, %v860
    %v862 = vpop.f32.mrb[0].mxu0
    %863 = vmatprep.mubr.bf16.mxu0 0
    %864 = vmatmul.mubr.bf16.gmra.mrb[0].mxu0 %v420
    %v865 = vpop.f32.mrb[0].mxu0
    %v866 = vadd.f32 %v272, %v865
    %v867 = vpop.f32.mrb[0].mxu0
    %v868 = vpop.f32.mrb[0].mxu0
    %v869 = vadd.f32 %v272, %v868
    %v870 = vpop.f32.mrb[0].mxu0
    %871 = vmatprep.mubr.bf16.mxu0 0
    %872 = vmatmul.mubr.bf16.gmra.mrb[0].mxu0 %v423
    %v873 = vpop.f32.mrb[0].mxu0
    %v874 = vadd.f32 %v272, %v873
    %v875 = vpop.f32.mrb[0].mxu0
    %v876 = vpop.f32.mrb[0].mxu0
    %v877 = vadd.f32 %v272, %v876
    %v878 = vpop.f32.mrb[0].mxu0
    %879 = vmatprep.mubr.bf16.mxu0 0
    %880 = vmatmul.mubr.bf16.gmra.mrb[0].mxu0 %v426
    %v881 = vpop.f32.mrb[0].mxu0
    %v882 = vadd.f32 %v272, %v881
    %v883 = vpop.f32.mrb[0].mxu0
    %v884 = vpop.f32.mrb[0].mxu0
    %v885 = vadd.f32 %v272, %v884
    %v886 = vpop.f32.mrb[0].mxu0
    %887 = vmatprep.mubr.bf16.mxu0 0
    %888 = vmatmul.mubr.bf16.gmra.mrb[0].mxu0 %v429
    %v889 = vpop.f32.mrb[0].mxu0
    %v890 = vadd.f32 %v272, %v889
    %v891 = vpop.f32.mrb[0].mxu0
    %v892 = vpop.f32.mrb[0].mxu0
    %v893 = vadd.f32 %v272, %v892
    %v894 = vpop.f32.mrb[0].mxu0
    %895 = vmatprep.mubr.bf16.mxu0 0
    %896 = vmatmul.mubr.bf16.gmra.mrb[0].mxu0 %v432
    %v897 = vpop.f32.mrb[0].mxu0
    %v898 = vadd.f32 %v272, %v897
    %v899 = vpop.f32.mrb[0].mxu0
    %v900 = vpop.f32.mrb[0].mxu0
    %v901 = vadd.f32 %v272, %v900
    %v902 = vpop.f32.mrb[0].mxu0
    %903 = vmatprep.mubr.bf16.mxu0 0
    %904 = vmatmul.mubr.bf16.gmra.mrb[0].mxu0 %v435
    %v905 = vpop.f32.mrb[0].mxu0
    %v906 = vadd.f32 %v272, %v905
    %v907 = vpop.f32.mrb[0].mxu0
    %v908 = vpop.f32.mrb[0].mxu0
    %v909 = vadd.f32 %v272, %v908
    %v910 = vpop.f32.mrb[0].mxu0
    %911 = vmatprep.mubr.bf16.mxu0 0
    %912 = vmatmul.mubr.bf16.gmra.mrb[0].mxu0 %v438
    %v913 = vpop.f32.mrb[0].mxu0
    %v914 = vadd.f32 %v272, %v913
    %v915 = vpop.f32.mrb[0].mxu0
    %v916 = vpop.f32.mrb[0].mxu0
    %v917 = vadd.f32 %v272, %v916
    %v918 = vpop.f32.mrb[0].mxu0
    %919 = vmatprep.mubr.bf16.mxu0 0
    %920 = vmatmul.mubr.bf16.gmra.mrb[0].mxu0 %v441
    %v921 = vpop.f32.mrb[0].mxu0
    %v922 = vadd.f32 %v272, %v921
    %v923 = vpop.f32.mrb[0].mxu0
    %v924 = vpop.f32.mrb[0].mxu0
    %v925 = vadd.f32 %v272, %v924
    %v926 = vpop.f32.mrb[0].mxu0
    %927 = vmatprep.mubr.bf16.mxu0 0
    %928 = vmatmul.mubr.bf16.gmra.mrb[0].mxu0 %v444
    %v929 = vpop.f32.mrb[0].mxu0
    %v930 = vadd.f32 %v272, %v929
    %v931 = vpop.f32.mrb[0].mxu0
    %v932 = vpop.f32.mrb[0].mxu0
    %v933 = vadd.f32 %v272, %v932
    %v934 = vpop.f32.mrb[0].mxu0
    %935 = vmatprep.mubr.bf16.mxu0 0
    %936 = vmatmul.mubr.bf16.gmra.mrb[0].mxu0 %v447
    %v937 = vpop.f32.mrb[0].mxu0
    %v938 = vadd.f32 %v272, %v937
    %v939 = vpop.f32.mrb[0].mxu0
    %v940 = vpop.f32.mrb[0].mxu0
    %v941 = vadd.f32 %v272, %v940
    %v942 = vpop.f32.mrb[0].mxu0
    %943 = vmatprep.mubr.bf16.mxu0 0
    %944 = vmatmul.mubr.bf16.gmra.mrb[0].mxu0 %v450
    %v945 = vpop.f32.mrb[0].mxu0
    %v946 = vadd.f32 %v272, %v945
    %v947 = vpop.f32.mrb[0].mxu0
    %v948 = vpop.f32.mrb[0].mxu0
    %v949 = vadd.f32 %v272, %v948
    %v950 = vpop.f32.mrb[0].mxu0
    %951 = vmatprep.mubr.bf16.mxu0 0
    %952 = vmatmul.mubr.bf16.gmra.mrb[0].mxu0 %v453
    %v953 = vpop.f32.mrb[0].mxu0
    %v954 = vadd.f32 %v272, %v953
    %v955 = vpop.f32.mrb[0].mxu0
    %v956 = vpop.f32.mrb[0].mxu0
    %v957 = vadd.f32 %v272, %v956
    %v958 = vpop.f32.mrb[0].mxu0
    %959 = vmatprep.mubr.bf16.mxu0 0
    %960 = vmatmul.mubr.bf16.gmra.mrb[0].mxu0 %v456
    %v961 = vpop.f32.mrb[0].mxu0
    %v962 = vadd.f32 %v272, %v961
    %v963 = vpop.f32.mrb[0].mxu0
    %v964 = vpop.f32.mrb[0].mxu0
    %v965 = vadd.f32 %v272, %v964
    %v966 = vpop.f32.mrb[0].mxu0
    %967 = vmatprep.mubr.bf16.mxu0 0
    %968 = vmatmul.mubr.bf16.gmra.mrb[0].mxu0 %v459
    %v969 = vpop.f32.mrb[0].mxu0
    %v970 = vadd.f32 %v272, %v969
    %v971 = vpop.f32.mrb[0].mxu0
    %v972 = vpop.f32.mrb[0].mxu0
    %v973 = vadd.f32 %v272, %v972
    %v974 = vpop.f32.mrb[0].mxu0
    %975 = vmatprep.mubr.bf16.mxu0 0
    %976 = vmatmul.mubr.bf16.gmra.mrb[0].mxu0 %v462
    %v977 = vpop.f32.mrb[0].mxu0
    %v978 = vadd.f32 %v272, %v977
    %v979 = vpop.f32.mrb[0].mxu0
    %v980 = vpop.f32.mrb[0].mxu0
    %v981 = vadd.f32 %v272, %v980
    %v982 = vpop.f32.mrb[0].mxu0
    %983 = vmatprep.mubr.bf16.mxu0 0
    %984 = vmatmul.mubr.bf16.gmra.mrb[0].mxu0 %v465
    %v985 = vpop.f32.mrb[0].mxu0
    %v986 = vadd.f32 %v272, %v985
    %v987 = vpop.f32.mrb[0].mxu0
    %v988 = vpop.f32.mrb[0].mxu0
    %v989 = vadd.f32 %v272, %v988
    %v990 = vpop.f32.mrb[0].mxu0
    %991 = vmatprep.mubr.bf16.mxu0 0
    %992 = vmatmul.mubr.bf16.gmra.mrb[0].mxu0 %v468
    %v993 = vpop.f32.mrb[0].mxu0
    %v994 = vadd.f32 %v272, %v993
    %v995 = vpop.f32.mrb[0].mxu0
    %v996 = vpop.f32.mrb[0].mxu0
    %v997 = vadd.f32 %v272, %v996
    %v998 = vpop.f32.mrb[0].mxu0
    %999 = vmatprep.mubr.bf16.mxu0 0
    %1000 = vmatmul.mubr.bf16.gmra.mrb[0].mxu0 %v471
    %v1001 = vpop.f32.mrb[0].mxu0
    %v1002 = vadd.f32 %v272, %v1001
    %v1003 = vpop.f32.mrb[0].mxu0
    %v1004 = vpop.f32.mrb[0].mxu0
    %v1005 = vadd.f32 %v272, %v1004
    %v1006 = vpop.f32.mrb[0].mxu0
    %1007 = vmatprep.mubr.bf16.mxu0 0
    %1008 = vmatmul.mubr.bf16.gmra.mrb[0].mxu0 %v474
    %v1009 = vpop.f32.mrb[0].mxu0
    %v1010 = vadd.f32 %v272, %v1009
    %v1011 = vpop.f32.mrb[0].mxu0
    %v1012 = vpop.f32.mrb[0].mxu0
    %v1013 = vadd.f32 %v272, %v1012
    %v1014 = vpop.f32.mrb[0].mxu0
    %1015 = vmatprep.mubr.bf16.mxu0 0
    %1016 = vmatmul.mubr.bf16.gmra.mrb[0].mxu0 %v477
    %v1017 = vpop.f32.mrb[0].mxu0
    %v1018 = vadd.f32 %v272, %v1017
    %v1019 = vpop.f32.mrb[0].mxu0
    %v1020 = vpop.f32.mrb[0].mxu0
    %v1021 = vadd.f32 %v272, %v1020
    %v1022 = vpop.f32.mrb[0].mxu0
    %1023 = vdwg.mxu0
    %v1024 = vmax.f32 %v514, 0.0
    %v1025 = vmax.f32 %v517, 0.0
    %v1026 = vmax.f32 %v522, 0.0
    %v1027 = vmax.f32 %v525, 0.0
    %v1028 = vmax.f32 %v530, 0.0
    %v1029 = vmax.f32 %v533, 0.0
    %v1030 = vmax.f32 %v538, 0.0
    %v1031 = vmax.f32 %v541, 0.0
    %v1032 = vmax.f32 %v546, 0.0
    %v1033 = vmax.f32 %v549, 0.0
    %v1034 = vmax.f32 %v554, 0.0
    %v1035 = vmax.f32 %v557, 0.0
    %v1036 = vmax.f32 %v562, 0.0
    %v1037 = vmax.f32 %v565, 0.0
    %v1038 = vmax.f32 %v570, 0.0
    %v1039 = vmax.f32 %v573, 0.0
    %v1040 = vmax.f32 %v578, 0.0
    %v1041 = vmax.f32 %v581, 0.0
    %v1042 = vmax.f32 %v586, 0.0
    %v1043 = vmax.f32 %v589, 0.0
    %v1044 = vmax.f32 %v594, 0.0
    %v1045 = vmax.f32 %v597, 0.0
    %v1046 = vmax.f32 %v602, 0.0
    %v1047 = vmax.f32 %v605, 0.0
    %v1048 = vmax.f32 %v610, 0.0
    %v1049 = vmax.f32 %v613, 0.0
    %v1050 = vmax.f32 %v618, 0.0
    %v1051 = vmax.f32 %v621, 0.0
    %v1052 = vmax.f32 %v626, 0.0
    %v1053 = vmax.f32 %v629, 0.0
    %v1054 = vmax.f32 %v634, 0.0
    %v1055 = vmax.f32 %v637, 0.0
    %v1056 = vmax.f32 %v642, 0.0
    %v1057 = vmax.f32 %v645, 0.0
    %v1058 = vmax.f32 %v650, 0.0
    %v1059 = vmax.f32 %v653, 0.0
    %v1060 = vmax.f32 %v658, 0.0
    %v1061 = vmax.f32 %v661, 0.0
    %v1062 = vmax.f32 %v666, 0.0
    %v1063 = vmax.f32 %v669, 0.0
    %v1064 = vmax.f32 %v674, 0.0
    %v1065 = vmax.f32 %v677, 0.0
    %v1066 = vmax.f32 %v682, 0.0
    %v1067 = vmax.f32 %v685, 0.0
    %v1068 = vmax.f32 %v690, 0.0
    %v1069 = vmax.f32 %v693, 0.0
    %v1070 = vmax.f32 %v698, 0.0
    %v1071 = vmax.f32 %v701, 0.0
    %v1072 = vmax.f32 %v706, 0.0
    %v1073 = vmax.f32 %v709, 0.0
    %v1074 = vmax.f32 %v714, 0.0
    %v1075 = vmax.f32 %v717, 0.0
    %v1076 = vmax.f32 %v722, 0.0
    %v1077 = vmax.f32 %v725, 0.0
    %v1078 = vmax.f32 %v730, 0.0
    %v1079 = vmax.f32 %v733, 0.0
    %v1080 = vmax.f32 %v738, 0.0
    %v1081 = vmax.f32 %v741, 0.0
    %v1082 = vmax.f32 %v746, 0.0
    %v1083 = vmax.f32 %v749, 0.0
    %v1084 = vmax.f32 %v754, 0.0
    %v1085 = vmax.f32 %v757, 0.0
    %v1086 = vmax.f32 %v762, 0.0
    %v1087 = vmax.f32 %v765, 0.0
    %v1088 = vmax.f32 %v770, 0.0
    %v1089 = vmax.f32 %v773, 0.0
    %v1090 = vmax.f32 %v778, 0.0
    %v1091 = vmax.f32 %v781, 0.0
    %v1092 = vmax.f32 %v786, 0.0
    %v1093 = vmax.f32 %v789, 0.0
    %v1094 = vmax.f32 %v794, 0.0
    %v1095 = vmax.f32 %v797, 0.0
    %v1096 = vmax.f32 %v802, 0.0
    %v1097 = vmax.f32 %v805, 0.0
    %v1098 = vmax.f32 %v810, 0.0
    %v1099 = vmax.f32 %v813, 0.0
    %v1100 = vmax.f32 %v818, 0.0
    %v1101 = vmax.f32 %v821, 0.0
    %v1102 = vmax.f32 %v826, 0.0
    %v1103 = vmax.f32 %v829, 0.0
    %v1104 = vmax.f32 %v834, 0.0
    %v1105 = vmax.f32 %v837, 0.0
    %v1106 = vmax.f32 %v842, 0.0
    %v1107 = vmax.f32 %v845, 0.0
    %v1108 = vmax.f32 %v850, 0.0
    %v1109 = vmax.f32 %v853, 0.0
    %v1110 = vmax.f32 %v858, 0.0
    %v1111 = vmax.f32 %v861, 0.0
    %v1112 = vmax.f32 %v866, 0.0
    %v1113 = vmax.f32 %v869, 0.0
    %v1114 = vmax.f32 %v874, 0.0
    %v1115 = vmax.f32 %v877, 0.0
    %v1116 = vmax.f32 %v882, 0.0
    %v1117 = vmax.f32 %v885, 0.0
    %v1118 = vmax.f32 %v890, 0.0
    %v1119 = vmax.f32 %v893, 0.0
    %v1120 = vmax.f32 %v898, 0.0
    %v1121 = vmax.f32 %v901, 0.0
    %v1122 = vmax.f32 %v906, 0.0
    %v1123 = vmax.f32 %v909, 0.0
    %v1124 = vmax.f32 %v914, 0.0
    %v1125 = vmax.f32 %v917, 0.0
    %v1126 = vmax.f32 %v922, 0.0
    %v1127 = vmax.f32 %v925, 0.0
    %v1128 = vmax.f32 %v930, 0.0
    %v1129 = vmax.f32 %v933, 0.0
    %v1130 = vmax.f32 %v938, 0.0
    %v1131 = vmax.f32 %v941, 0.0
    %v1132 = vmax.f32 %v946, 0.0
    %v1133 = vmax.f32 %v949, 0.0
    %v1134 = vmax.f32 %v954, 0.0
    %v1135 = vmax.f32 %v957, 0.0
    %v1136 = vmax.f32 %v962, 0.0
    %v1137 = vmax.f32 %v965, 0.0
    %v1138 = vmax.f32 %v970, 0.0
    %v1139 = vmax.f32 %v973, 0.0
    %v1140 = vmax.f32 %v978, 0.0
    %v1141 = vmax.f32 %v981, 0.0
    %v1142 = vmax.f32 %v986, 0.0
    %v1143 = vmax.f32 %v989, 0.0
    %v1144 = vmax.f32 %v994, 0.0
    %v1145 = vmax.f32 %v997, 0.0
    %v1146 = vmax.f32 %v1002, 0.0
    %v1147 = vmax.f32 %v1005, 0.0
    %v1148 = vmax.f32 %v1010, 0.0
    %v1149 = vmax.f32 %v1013, 0.0
    %v1150 = vmax.f32 %v1018, 0.0
    %v1151 = vmax.f32 %v1021, 0.0
    %v1152 = vpack.c.bf16 %v1025, %v1024
    %v1153 = vpack.c.bf16 %v1027, %v1026
    %v1154 = vpack.c.bf16 %v1029, %v1028
    %v1155 = vpack.c.bf16 %v1031, %v1030
    %v1156 = vpack.c.bf16 %v1033, %v1032
    %v1157 = vpack.c.bf16 %v1035, %v1034
    %v1158 = vpack.c.bf16 %v1037, %v1036
    %v1159 = vpack.c.bf16 %v1039, %v1038
    %v1160 = vpack.c.bf16 %v1041, %v1040
    %v1161 = vpack.c.bf16 %v1043, %v1042
    %v1162 = vpack.c.bf16 %v1045, %v1044
    %v1163 = vpack.c.bf16 %v1047, %v1046
    %v1164 = vpack.c.bf16 %v1049, %v1048
    %v1165 = vpack.c.bf16 %v1051, %v1050
    %v1166 = vpack.c.bf16 %v1053, %v1052
    %v1167 = vpack.c.bf16 %v1055, %v1054
    %v1168 = vpack.c.bf16 %v1057, %v1056
    %v1169 = vpack.c.bf16 %v1059, %v1058
    %v1170 = vpack.c.bf16 %v1061, %v1060
    %v1171 = vpack.c.bf16 %v1063, %v1062
    %v1172 = vpack.c.bf16 %v1065, %v1064
    %v1173 = vpack.c.bf16 %v1067, %v1066
    %v1174 = vpack.c.bf16 %v1069, %v1068
    %v1175 = vpack.c.bf16 %v1071, %v1070
    %v1176 = vpack.c.bf16 %v1073, %v1072
    %v1177 = vpack.c.bf16 %v1075, %v1074
    %v1178 = vpack.c.bf16 %v1077, %v1076
    %v1179 = vpack.c.bf16 %v1079, %v1078
    %v1180 = vpack.c.bf16 %v1081, %v1080
    %v1181 = vpack.c.bf16 %v1083, %v1082
    %v1182 = vpack.c.bf16 %v1085, %v1084
    %v1183 = vpack.c.bf16 %v1087, %v1086
    %v1184 = vpack.c.bf16 %v1089, %v1088
    %v1185 = vpack.c.bf16 %v1091, %v1090
    %v1186 = vpack.c.bf16 %v1093, %v1092
    %v1187 = vpack.c.bf16 %v1095, %v1094
    %v1188 = vpack.c.bf16 %v1097, %v1096
    %v1189 = vpack.c.bf16 %v1099, %v1098
    %v1190 = vpack.c.bf16 %v1101, %v1100
    %v1191 = vpack.c.bf16 %v1103, %v1102
    %v1192 = vpack.c.bf16 %v1105, %v1104
    %v1193 = vpack.c.bf16 %v1107, %v1106
    %v1194 = vpack.c.bf16 %v1109, %v1108
    %v1195 = vpack.c.bf16 %v1111, %v1110
    %v1196 = vpack.c.bf16 %v1113, %v1112
    %v1197 = vpack.c.bf16 %v1115, %v1114
    %v1198 = vpack.c.bf16 %v1117, %v1116
    %v1199 = vpack.c.bf16 %v1119, %v1118
    %v1200 = vpack.c.bf16 %v1121, %v1120
    %v1201 = vpack.c.bf16 %v1123, %v1122
    %v1202 = vpack.c.bf16 %v1125, %v1124
    %v1203 = vpack.c.bf16 %v1127, %v1126
    %v1204 = vpack.c.bf16 %v1129, %v1128
    %v1205 = vpack.c.bf16 %v1131, %v1130
    %v1206 = vpack.c.bf16 %v1133, %v1132
    %v1207 = vpack.c.bf16 %v1135, %v1134
    %v1208 = vpack.c.bf16 %v1137, %v1136
    %v1209 = vpack.c.bf16 %v1139, %v1138
    %v1210 = vpack.c.bf16 %v1141, %v1140
    %v1211 = vpack.c.bf16 %v1143, %v1142
    %v1212 = vpack.c.bf16 %v1145, %v1144
    %v1213 = vpack.c.bf16 %v1147, %v1146
    %v1214 = vpack.c.bf16 %v1149, %v1148
    %v1215 = vpack.c.bf16 %v1151, %v1150
    %v1216 = vld [vmem:[#allocation8] sm:$0xf]
    %v1217 = vld [vmem:[#allocation8 + $0x4] sm:$0xf]
    %v1218 = vld [vmem:[#allocation8 + $0x8] sm:$0xf]
    %v1219 = vld [vmem:[#allocation8 + $0xc] sm:$0xf]
    %v1220 = vld [vmem:[#allocation8 + $0x10] sm:$0xf]
    %v1221 = vld [vmem:[#allocation8 + $0x14] sm:$0xf]
    %v1222 = vld [vmem:[#allocation8 + $0x18] sm:$0xf]
    %v1223 = vld [vmem:[#allocation8 + $0x1c] sm:$0xf]
    %v1224 = vld [vmem:[#allocation8 + $0x20] sm:$0xf]
    %v1225 = vld [vmem:[#allocation8 + $0x24] sm:$0xf]
    %v1226 = vld [vmem:[#allocation8 + $0x28] sm:$0xf]
    %v1227 = vld [vmem:[#allocation8 + $0x2c] sm:$0xf]
    %v1228 = vld [vmem:[#allocation8 + $0x30] sm:$0xf]
    %v1229 = vld [vmem:[#allocation8 + $0x34] sm:$0xf]
    %v1230 = vld [vmem:[#allocation8 + $0x38] sm:$0xf]
    %v1231 = vld [vmem:[#allocation8 + $0x3c] sm:$0xf]
    %v1232 = vld [vmem:[%s4] sm:$0x1]
    %v1234 = vlaneseq
    %v1235 = vshrl.u32 %v1234, 7
    %v1236 = vsub.s32 0, %v1235
    %v1237 = vrot.slane %v1232, %v1236
    %v1255 = vunpack.c.l.b16 %v1216
    %v1256 = vunpack.c.l.b16 %v1217
    %v1257 = vunpack.c.l.b16 %v1218
    %v1258 = vunpack.c.l.b16 %v1219
    %v1259 = vunpack.c.l.b16 %v1220
    %v1260 = vunpack.c.l.b16 %v1221
    %v1261 = vunpack.c.l.b16 %v1222
    %v1262 = vunpack.c.l.b16 %v1223
    %v1263 = vunpack.c.l.b16 %v1224
    %v1264 = vunpack.c.l.b16 %v1225
    %v1265 = vunpack.c.l.b16 %v1226
    %v1266 = vunpack.c.l.b16 %v1227
    %v1267 = vunpack.c.l.b16 %v1228
    %v1268 = vunpack.c.l.b16 %v1229
    %v1269 = vunpack.c.l.b16 %v1230
    %v1270 = vunpack.c.l.b16 %v1231
    %v1271 = vpack.c.b16 %v1256, %v1255
    %v1272 = vpack.c.b16 %v1258, %v1257
    %v1273 = vpack.c.b16 %v1260, %v1259
    %v1274 = vpack.c.b16 %v1262, %v1261
    %v1275 = vpack.c.b16 %v1264, %v1263
    %v1276 = vpack.c.b16 %v1266, %v1265
    %v1277 = vpack.c.b16 %v1268, %v1267
    %v1278 = vpack.c.b16 %v1270, %v1269
    %1287 = vmatprep.subr.bf16.mxu0 0
    %1288 = vmatpush1.bf16.msra.mxu0 %v1271
    %1289 = vmatprep.subr.bf16.mxu0 0
    %1290 = vmatpush1.bf16.msra.mxu0 %v1272
    %1291 = vmatprep.subr.bf16.mxu0 0
    %1292 = vmatpush1.bf16.msra.mxu0 %v1273
    %1293 = vmatprep.subr.bf16.mxu0 0
    %1294 = vmatpush1.bf16.msra.mxu0 %v1274
    %1295 = vmatprep.subr.bf16.mxu0 0
    %1296 = vmatpush1.bf16.msra.mxu0 %v1275
    %1297 = vmatprep.subr.bf16.mxu0 0
    %1298 = vmatpush1.bf16.msra.mxu0 %v1276
    %1299 = vmatprep.subr.bf16.mxu0 0
    %1300 = vmatpush1.bf16.msra.mxu0 %v1277
    %1301 = vmatprep.subr.bf16.mxu0 0
    %1302 = vmatpush1.bf16.msra.mxu0 %v1278
    %1303 = vmatprep.subr.bf16.mxu0 0
    %1304 = vmatpush1.bf16.msra.mxu0 0
    %1305 = vmatprep.subr.bf16.mxu0 0
    %1306 = vmatpush1.bf16.msra.mxu0 0
    %1307 = vmatprep.subr.bf16.mxu0 0
    %1308 = vmatpush1.bf16.msra.mxu0 0
    %1309 = vmatprep.subr.bf16.mxu0 0
    %1310 = vmatpush1.bf16.msra.mxu0 0
    %1311 = vmatprep.subr.bf16.mxu0 0
    %1312 = vmatpush1.bf16.msra.mxu0 0
    %1313 = vmatprep.subr.bf16.mxu0 0
    %1314 = vmatpush1.bf16.msra.mxu0 0
    %1315 = vmatprep.subr.bf16.mxu0 0
    %1316 = vmatpush1.bf16.msra.mxu0 0
    %1317 = vmatprep.subr.bf16.mxu0 0
    %1318 = vmatpush1.bf16.msra.mxu0 0
    %1319 = vmatprep.mubr.bf16.mxu0 0
    %1320 = vmatmul.mubr.bf16.gmra.mrb[0].mxu0 %v1152
    %v1321 = vpop.f32.mrb[0].mxu0
    %v1322 = vadd.f32 %v1237, %v1321
    %v1323 = vpop.f32.mrb[0].mxu0
    %v1324 = vpop.f32.mrb[0].mxu0
    %v1325 = vadd.f32 %v1237, %v1324
    %v1326 = vpop.f32.mrb[0].mxu0
    %1327 = vmatprep.mubr.bf16.mxu0 0
    %1328 = vmatmul.mubr.bf16.gmra.mrb[0].mxu0 %v1153
    %v1329 = vpop.f32.mrb[0].mxu0
    %v1330 = vadd.f32 %v1237, %v1329
    %v1331 = vpop.f32.mrb[0].mxu0
    %v1332 = vpop.f32.mrb[0].mxu0
    %v1333 = vadd.f32 %v1237, %v1332
    %v1334 = vpop.f32.mrb[0].mxu0
    %1335 = vmatprep.mubr.bf16.mxu0 0
    %1336 = vmatmul.mubr.bf16.gmra.mrb[0].mxu0 %v1154
    %v1337 = vpop.f32.mrb[0].mxu0
    %v1338 = vadd.f32 %v1237, %v1337
    %v1339 = vpop.f32.mrb[0].mxu0
    %v1340 = vpop.f32.mrb[0].mxu0
    %v1341 = vadd.f32 %v1237, %v1340
    %v1342 = vpop.f32.mrb[0].mxu0
    %1343 = vmatprep.mubr.bf16.mxu0 0
    %1344 = vmatmul.mubr.bf16.gmra.mrb[0].mxu0 %v1155
    %v1345 = vpop.f32.mrb[0].mxu0
    %v1346 = vadd.f32 %v1237, %v1345
    %v1347 = vpop.f32.mrb[0].mxu0
    %v1348 = vpop.f32.mrb[0].mxu0
    %v1349 = vadd.f32 %v1237, %v1348
    %v1350 = vpop.f32.mrb[0].mxu0
    %1351 = vmatprep.mubr.bf16.mxu0 0
    %1352 = vmatmul.mubr.bf16.gmra.mrb[0].mxu0 %v1156
    %v1353 = vpop.f32.mrb[0].mxu0
    %v1354 = vadd.f32 %v1237, %v1353
    %v1355 = vpop.f32.mrb[0].mxu0
    %v1356 = vpop.f32.mrb[0].mxu0
    %v1357 = vadd.f32 %v1237, %v1356
    %v1358 = vpop.f32.mrb[0].mxu0
    %1359 = vmatprep.mubr.bf16.mxu0 0
    %1360 = vmatmul.mubr.bf16.gmra.mrb[0].mxu0 %v1157
    %v1361 = vpop.f32.mrb[0].mxu0
    %v1362 = vadd.f32 %v1237, %v1361
    %v1363 = vpop.f32.mrb[0].mxu0
    %v1364 = vpop.f32.mrb[0].mxu0
    %v1365 = vadd.f32 %v1237, %v1364
    %v1366 = vpop.f32.mrb[0].mxu0
    %1367 = vmatprep.mubr.bf16.mxu0 0
    %1368 = vmatmul.mubr.bf16.gmra.mrb[0].mxu0 %v1158
    %v1369 = vpop.f32.mrb[0].mxu0
    %v1370 = vadd.f32 %v1237, %v1369
    %v1371 = vpop.f32.mrb[0].mxu0
    %v1372 = vpop.f32.mrb[0].mxu0
    %v1373 = vadd.f32 %v1237, %v1372
    %v1374 = vpop.f32.mrb[0].mxu0
    %1375 = vmatprep.mubr.bf16.mxu0 0
    %1376 = vmatmul.mubr.bf16.gmra.mrb[0].mxu0 %v1159
    %v1377 = vpop.f32.mrb[0].mxu0
    %v1378 = vadd.f32 %v1237, %v1377
    %v1379 = vpop.f32.mrb[0].mxu0
    %v1380 = vpop.f32.mrb[0].mxu0
    %v1381 = vadd.f32 %v1237, %v1380
    %v1382 = vpop.f32.mrb[0].mxu0
    %1383 = vmatprep.mubr.bf16.mxu0 0
    %1384 = vmatmul.mubr.bf16.gmra.mrb[0].mxu0 %v1160
    %v1385 = vpop.f32.mrb[0].mxu0
    %v1386 = vadd.f32 %v1237, %v1385
    %v1387 = vpop.f32.mrb[0].mxu0
    %v1388 = vpop.f32.mrb[0].mxu0
    %v1389 = vadd.f32 %v1237, %v1388
    %v1390 = vpop.f32.mrb[0].mxu0
    %1391 = vmatprep.mubr.bf16.mxu0 0
    %1392 = vmatmul.mubr.bf16.gmra.mrb[0].mxu0 %v1161
    %v1393 = vpop.f32.mrb[0].mxu0
    %v1394 = vadd.f32 %v1237, %v1393
    %v1395 = vpop.f32.mrb[0].mxu0
    %v1396 = vpop.f32.mrb[0].mxu0
    %v1397 = vadd.f32 %v1237, %v1396
    %v1398 = vpop.f32.mrb[0].mxu0
    %1399 = vmatprep.mubr.bf16.mxu0 0
    %1400 = vmatmul.mubr.bf16.gmra.mrb[0].mxu0 %v1162
    %v1401 = vpop.f32.mrb[0].mxu0
    %v1402 = vadd.f32 %v1237, %v1401
    %v1403 = vpop.f32.mrb[0].mxu0
    %v1404 = vpop.f32.mrb[0].mxu0
    %v1405 = vadd.f32 %v1237, %v1404
    %v1406 = vpop.f32.mrb[0].mxu0
    %1407 = vmatprep.mubr.bf16.mxu0 0
    %1408 = vmatmul.mubr.bf16.gmra.mrb[0].mxu0 %v1163
    %v1409 = vpop.f32.mrb[0].mxu0
    %v1410 = vadd.f32 %v1237, %v1409
    %v1411 = vpop.f32.mrb[0].mxu0
    %v1412 = vpop.f32.mrb[0].mxu0
    %v1413 = vadd.f32 %v1237, %v1412
    %v1414 = vpop.f32.mrb[0].mxu0
    %1415 = vmatprep.mubr.bf16.mxu0 0
    %1416 = vmatmul.mubr.bf16.gmra.mrb[0].mxu0 %v1164
    %v1417 = vpop.f32.mrb[0].mxu0
    %v1418 = vadd.f32 %v1237, %v1417
    %v1419 = vpop.f32.mrb[0].mxu0
    %v1420 = vpop.f32.mrb[0].mxu0
    %v1421 = vadd.f32 %v1237, %v1420
    %v1422 = vpop.f32.mrb[0].mxu0
    %1423 = vmatprep.mubr.bf16.mxu0 0
    %1424 = vmatmul.mubr.bf16.gmra.mrb[0].mxu0 %v1165
    %v1425 = vpop.f32.mrb[0].mxu0
    %v1426 = vadd.f32 %v1237, %v1425
    %v1427 = vpop.f32.mrb[0].mxu0
    %v1428 = vpop.f32.mrb[0].mxu0
    %v1429 = vadd.f32 %v1237, %v1428
    %v1430 = vpop.f32.mrb[0].mxu0
    %1431 = vmatprep.mubr.bf16.mxu0 0
    %1432 = vmatmul.mubr.bf16.gmra.mrb[0].mxu0 %v1166
    %v1433 = vpop.f32.mrb[0].mxu0
    %v1434 = vadd.f32 %v1237, %v1433
    %v1435 = vpop.f32.mrb[0].mxu0
    %v1436 = vpop.f32.mrb[0].mxu0
    %v1437 = vadd.f32 %v1237, %v1436
    %v1438 = vpop.f32.mrb[0].mxu0
    %1439 = vmatprep.mubr.bf16.mxu0 0
    %1440 = vmatmul.mubr.bf16.gmra.mrb[0].mxu0 %v1167
    %v1441 = vpop.f32.mrb[0].mxu0
    %v1442 = vadd.f32 %v1237, %v1441
    %v1443 = vpop.f32.mrb[0].mxu0
    %v1444 = vpop.f32.mrb[0].mxu0
    %v1445 = vadd.f32 %v1237, %v1444
    %v1446 = vpop.f32.mrb[0].mxu0
    %1447 = vmatprep.mubr.bf16.mxu0 0
    %1448 = vmatmul.mubr.bf16.gmra.mrb[0].mxu0 %v1168
    %v1449 = vpop.f32.mrb[0].mxu0
    %v1450 = vadd.f32 %v1237, %v1449
    %v1451 = vpop.f32.mrb[0].mxu0
    %v1452 = vpop.f32.mrb[0].mxu0
    %v1453 = vadd.f32 %v1237, %v1452
    %v1454 = vpop.f32.mrb[0].mxu0
    %1455 = vmatprep.mubr.bf16.mxu0 0
    %1456 = vmatmul.mubr.bf16.gmra.mrb[0].mxu0 %v1169
    %v1457 = vpop.f32.mrb[0].mxu0
    %v1458 = vadd.f32 %v1237, %v1457
    %v1459 = vpop.f32.mrb[0].mxu0
    %v1460 = vpop.f32.mrb[0].mxu0
    %v1461 = vadd.f32 %v1237, %v1460
    %v1462 = vpop.f32.mrb[0].mxu0
    %1463 = vmatprep.mubr.bf16.mxu0 0
    %1464 = vmatmul.mubr.bf16.gmra.mrb[0].mxu0 %v1170
    %v1465 = vpop.f32.mrb[0].mxu0
    %v1466 = vadd.f32 %v1237, %v1465
    %v1467 = vpop.f32.mrb[0].mxu0
    %v1468 = vpop.f32.mrb[0].mxu0
    %v1469 = vadd.f32 %v1237, %v1468
    %v1470 = vpop.f32.mrb[0].mxu0
    %1471 = vmatprep.mubr.bf16.mxu0 0
    %1472 = vmatmul.mubr.bf16.gmra.mrb[0].mxu0 %v1171
    %v1473 = vpop.f32.mrb[0].mxu0
    %v1474 = vadd.f32 %v1237, %v1473
    %v1475 = vpop.f32.mrb[0].mxu0
    %v1476 = vpop.f32.mrb[0].mxu0
    %v1477 = vadd.f32 %v1237, %v1476
    %v1478 = vpop.f32.mrb[0].mxu0
    %1479 = vmatprep.mubr.bf16.mxu0 0
    %1480 = vmatmul.mubr.bf16.gmra.mrb[0].mxu0 %v1172
    %v1481 = vpop.f32.mrb[0].mxu0
    %v1482 = vadd.f32 %v1237, %v1481
    %v1483 = vpop.f32.mrb[0].mxu0
    %v1484 = vpop.f32.mrb[0].mxu0
    %v1485 = vadd.f32 %v1237, %v1484
    %v1486 = vpop.f32.mrb[0].mxu0
    %1487 = vmatprep.mubr.bf16.mxu0 0
    %1488 = vmatmul.mubr.bf16.gmra.mrb[0].mxu0 %v1173
    %v1489 = vpop.f32.mrb[0].mxu0
    %v1490 = vadd.f32 %v1237, %v1489
    %v1491 = vpop.f32.mrb[0].mxu0
    %v1492 = vpop.f32.mrb[0].mxu0
    %v1493 = vadd.f32 %v1237, %v1492
    %v1494 = vpop.f32.mrb[0].mxu0
    %1495 = vmatprep.mubr.bf16.mxu0 0
    %1496 = vmatmul.mubr.bf16.gmra.mrb[0].mxu0 %v1174
    %v1497 = vpop.f32.mrb[0].mxu0
    %v1498 = vadd.f32 %v1237, %v1497
    %v1499 = vpop.f32.mrb[0].mxu0
    %v1500 = vpop.f32.mrb[0].mxu0
    %v1501 = vadd.f32 %v1237, %v1500
    %v1502 = vpop.f32.mrb[0].mxu0
    %1503 = vmatprep.mubr.bf16.mxu0 0
    %1504 = vmatmul.mubr.bf16.gmra.mrb[0].mxu0 %v1175
    %v1505 = vpop.f32.mrb[0].mxu0
    %v1506 = vadd.f32 %v1237, %v1505
    %v1507 = vpop.f32.mrb[0].mxu0
    %v1508 = vpop.f32.mrb[0].mxu0
    %v1509 = vadd.f32 %v1237, %v1508
    %v1510 = vpop.f32.mrb[0].mxu0
    %1511 = vmatprep.mubr.bf16.mxu0 0
    %1512 = vmatmul.mubr.bf16.gmra.mrb[0].mxu0 %v1176
    %v1513 = vpop.f32.mrb[0].mxu0
    %v1514 = vadd.f32 %v1237, %v1513
    %v1515 = vpop.f32.mrb[0].mxu0
    %v1516 = vpop.f32.mrb[0].mxu0
    %v1517 = vadd.f32 %v1237, %v1516
    %v1518 = vpop.f32.mrb[0].mxu0
    %1519 = vmatprep.mubr.bf16.mxu0 0
    %1520 = vmatmul.mubr.bf16.gmra.mrb[0].mxu0 %v1177
    %v1521 = vpop.f32.mrb[0].mxu0
    %v1522 = vadd.f32 %v1237, %v1521
    %v1523 = vpop.f32.mrb[0].mxu0
    %v1524 = vpop.f32.mrb[0].mxu0
    %v1525 = vadd.f32 %v1237, %v1524
    %v1526 = vpop.f32.mrb[0].mxu0
    %1527 = vmatprep.mubr.bf16.mxu0 0
    %1528 = vmatmul.mubr.bf16.gmra.mrb[0].mxu0 %v1178
    %v1529 = vpop.f32.mrb[0].mxu0
    %v1530 = vadd.f32 %v1237, %v1529
    %v1531 = vpop.f32.mrb[0].mxu0
    %v1532 = vpop.f32.mrb[0].mxu0
    %v1533 = vadd.f32 %v1237, %v1532
    %v1534 = vpop.f32.mrb[0].mxu0
    %1535 = vmatprep.mubr.bf16.mxu0 0
    %1536 = vmatmul.mubr.bf16.gmra.mrb[0].mxu0 %v1179
    %v1537 = vpop.f32.mrb[0].mxu0
    %v1538 = vadd.f32 %v1237, %v1537
    %v1539 = vpop.f32.mrb[0].mxu0
    %v1540 = vpop.f32.mrb[0].mxu0
    %v1541 = vadd.f32 %v1237, %v1540
    %v1542 = vpop.f32.mrb[0].mxu0
    %1543 = vmatprep.mubr.bf16.mxu0 0
    %1544 = vmatmul.mubr.bf16.gmra.mrb[0].mxu0 %v1180
    %v1545 = vpop.f32.mrb[0].mxu0
    %v1546 = vadd.f32 %v1237, %v1545
    %v1547 = vpop.f32.mrb[0].mxu0
    %v1548 = vpop.f32.mrb[0].mxu0
    %v1549 = vadd.f32 %v1237, %v1548
    %v1550 = vpop.f32.mrb[0].mxu0
    %1551 = vmatprep.mubr.bf16.mxu0 0
    %1552 = vmatmul.mubr.bf16.gmra.mrb[0].mxu0 %v1181
    %v1553 = vpop.f32.mrb[0].mxu0
    %v1554 = vadd.f32 %v1237, %v1553
    %v1555 = vpop.f32.mrb[0].mxu0
    %v1556 = vpop.f32.mrb[0].mxu0
    %v1557 = vadd.f32 %v1237, %v1556
    %v1558 = vpop.f32.mrb[0].mxu0
    %1559 = vmatprep.mubr.bf16.mxu0 0
    %1560 = vmatmul.mubr.bf16.gmra.mrb[0].mxu0 %v1182
    %v1561 = vpop.f32.mrb[0].mxu0
    %v1562 = vadd.f32 %v1237, %v1561
    %v1563 = vpop.f32.mrb[0].mxu0
    %v1564 = vpop.f32.mrb[0].mxu0
    %v1565 = vadd.f32 %v1237, %v1564
    %v1566 = vpop.f32.mrb[0].mxu0
    %1567 = vmatprep.mubr.bf16.mxu0 0
    %1568 = vmatmul.mubr.bf16.gmra.mrb[0].mxu0 %v1183
    %v1569 = vpop.f32.mrb[0].mxu0
    %v1570 = vadd.f32 %v1237, %v1569
    %v1571 = vpop.f32.mrb[0].mxu0
    %v1572 = vpop.f32.mrb[0].mxu0
    %v1573 = vadd.f32 %v1237, %v1572
    %v1574 = vpop.f32.mrb[0].mxu0
    %1575 = vmatprep.mubr.bf16.mxu0 0
    %1576 = vmatmul.mubr.bf16.gmra.mrb[0].mxu0 %v1184
    %v1577 = vpop.f32.mrb[0].mxu0
    %v1578 = vadd.f32 %v1237, %v1577
    %v1579 = vpop.f32.mrb[0].mxu0
    %v1580 = vpop.f32.mrb[0].mxu0
    %v1581 = vadd.f32 %v1237, %v1580
    %v1582 = vpop.f32.mrb[0].mxu0
    %1583 = vmatprep.mubr.bf16.mxu0 0
    %1584 = vmatmul.mubr.bf16.gmra.mrb[0].mxu0 %v1185
    %v1585 = vpop.f32.mrb[0].mxu0
    %v1586 = vadd.f32 %v1237, %v1585
    %v1587 = vpop.f32.mrb[0].mxu0
    %v1588 = vpop.f32.mrb[0].mxu0
    %v1589 = vadd.f32 %v1237, %v1588
    %v1590 = vpop.f32.mrb[0].mxu0
    %1591 = vmatprep.mubr.bf16.mxu0 0
    %1592 = vmatmul.mubr.bf16.gmra.mrb[0].mxu0 %v1186
    %v1593 = vpop.f32.mrb[0].mxu0
    %v1594 = vadd.f32 %v1237, %v1593
    %v1595 = vpop.f32.mrb[0].mxu0
    %v1596 = vpop.f32.mrb[0].mxu0
    %v1597 = vadd.f32 %v1237, %v1596
    %v1598 = vpop.f32.mrb[0].mxu0
    %1599 = vmatprep.mubr.bf16.mxu0 0
    %1600 = vmatmul.mubr.bf16.gmra.mrb[0].mxu0 %v1187
    %v1601 = vpop.f32.mrb[0].mxu0
    %v1602 = vadd.f32 %v1237, %v1601
    %v1603 = vpop.f32.mrb[0].mxu0
    %v1604 = vpop.f32.mrb[0].mxu0
    %v1605 = vadd.f32 %v1237, %v1604
    %v1606 = vpop.f32.mrb[0].mxu0
    %1607 = vmatprep.mubr.bf16.mxu0 0
    %1608 = vmatmul.mubr.bf16.gmra.mrb[0].mxu0 %v1188
    %v1609 = vpop.f32.mrb[0].mxu0
    %v1610 = vadd.f32 %v1237, %v1609
    %v1611 = vpop.f32.mrb[0].mxu0
    %v1612 = vpop.f32.mrb[0].mxu0
    %v1613 = vadd.f32 %v1237, %v1612
    %v1614 = vpop.f32.mrb[0].mxu0
    %1615 = vmatprep.mubr.bf16.mxu0 0
    %1616 = vmatmul.mubr.bf16.gmra.mrb[0].mxu0 %v1189
    %v1617 = vpop.f32.mrb[0].mxu0
    %v1618 = vadd.f32 %v1237, %v1617
    %v1619 = vpop.f32.mrb[0].mxu0
    %v1620 = vpop.f32.mrb[0].mxu0
    %v1621 = vadd.f32 %v1237, %v1620
    %v1622 = vpop.f32.mrb[0].mxu0
    %1623 = vmatprep.mubr.bf16.mxu0 0
    %1624 = vmatmul.mubr.bf16.gmra.mrb[0].mxu0 %v1190
    %v1625 = vpop.f32.mrb[0].mxu0
    %v1626 = vadd.f32 %v1237, %v1625
    %v1627 = vpop.f32.mrb[0].mxu0
    %v1628 = vpop.f32.mrb[0].mxu0
    %v1629 = vadd.f32 %v1237, %v1628
    %v1630 = vpop.f32.mrb[0].mxu0
    %1631 = vmatprep.mubr.bf16.mxu0 0
    %1632 = vmatmul.mubr.bf16.gmra.mrb[0].mxu0 %v1191
    %v1633 = vpop.f32.mrb[0].mxu0
    %v1634 = vadd.f32 %v1237, %v1633
    %v1635 = vpop.f32.mrb[0].mxu0
    %v1636 = vpop.f32.mrb[0].mxu0
    %v1637 = vadd.f32 %v1237, %v1636
    %v1638 = vpop.f32.mrb[0].mxu0
    %1639 = vmatprep.mubr.bf16.mxu0 0
    %1640 = vmatmul.mubr.bf16.gmra.mrb[0].mxu0 %v1192
    %v1641 = vpop.f32.mrb[0].mxu0
    %v1642 = vadd.f32 %v1237, %v1641
    %v1643 = vpop.f32.mrb[0].mxu0
    %v1644 = vpop.f32.mrb[0].mxu0
    %v1645 = vadd.f32 %v1237, %v1644
    %v1646 = vpop.f32.mrb[0].mxu0
    %1647 = vmatprep.mubr.bf16.mxu0 0
    %1648 = vmatmul.mubr.bf16.gmra.mrb[0].mxu0 %v1193
    %v1649 = vpop.f32.mrb[0].mxu0
    %v1650 = vadd.f32 %v1237, %v1649
    %v1651 = vpop.f32.mrb[0].mxu0
    %v1652 = vpop.f32.mrb[0].mxu0
    %v1653 = vadd.f32 %v1237, %v1652
    %v1654 = vpop.f32.mrb[0].mxu0
    %1655 = vmatprep.mubr.bf16.mxu0 0
    %1656 = vmatmul.mubr.bf16.gmra.mrb[0].mxu0 %v1194
    %v1657 = vpop.f32.mrb[0].mxu0
    %v1658 = vadd.f32 %v1237, %v1657
    %v1659 = vpop.f32.mrb[0].mxu0
    %v1660 = vpop.f32.mrb[0].mxu0
    %v1661 = vadd.f32 %v1237, %v1660
    %v1662 = vpop.f32.mrb[0].mxu0
    %1663 = vmatprep.mubr.bf16.mxu0 0
    %1664 = vmatmul.mubr.bf16.gmra.mrb[0].mxu0 %v1195
    %v1665 = vpop.f32.mrb[0].mxu0
    %v1666 = vadd.f32 %v1237, %v1665
    %v1667 = vpop.f32.mrb[0].mxu0
    %v1668 = vpop.f32.mrb[0].mxu0
    %v1669 = vadd.f32 %v1237, %v1668
    %v1670 = vpop.f32.mrb[0].mxu0
    %1671 = vmatprep.mubr.bf16.mxu0 0
    %1672 = vmatmul.mubr.bf16.gmra.mrb[0].mxu0 %v1196
    %v1673 = vpop.f32.mrb[0].mxu0
    %v1674 = vadd.f32 %v1237, %v1673
    %v1675 = vpop.f32.mrb[0].mxu0
    %v1676 = vpop.f32.mrb[0].mxu0
    %v1677 = vadd.f32 %v1237, %v1676
    %v1678 = vpop.f32.mrb[0].mxu0
    %1679 = vmatprep.mubr.bf16.mxu0 0
    %1680 = vmatmul.mubr.bf16.gmra.mrb[0].mxu0 %v1197
    %v1681 = vpop.f32.mrb[0].mxu0
    %v1682 = vadd.f32 %v1237, %v1681
    %v1683 = vpop.f32.mrb[0].mxu0
    %v1684 = vpop.f32.mrb[0].mxu0
    %v1685 = vadd.f32 %v1237, %v1684
    %v1686 = vpop.f32.mrb[0].mxu0
    %1687 = vmatprep.mubr.bf16.mxu0 0
    %1688 = vmatmul.mubr.bf16.gmra.mrb[0].mxu0 %v1198
    %v1689 = vpop.f32.mrb[0].mxu0
    %v1690 = vadd.f32 %v1237, %v1689
    %v1691 = vpop.f32.mrb[0].mxu0
    %v1692 = vpop.f32.mrb[0].mxu0
    %v1693 = vadd.f32 %v1237, %v1692
    %v1694 = vpop.f32.mrb[0].mxu0
    %1695 = vmatprep.mubr.bf16.mxu0 0
    %1696 = vmatmul.mubr.bf16.gmra.mrb[0].mxu0 %v1199
    %v1697 = vpop.f32.mrb[0].mxu0
    %v1698 = vadd.f32 %v1237, %v1697
    %v1699 = vpop.f32.mrb[0].mxu0
    %v1700 = vpop.f32.mrb[0].mxu0
    %v1701 = vadd.f32 %v1237, %v1700
    %v1702 = vpop.f32.mrb[0].mxu0
    %1703 = vmatprep.mubr.bf16.mxu0 0
    %1704 = vmatmul.mubr.bf16.gmra.mrb[0].mxu0 %v1200
    %v1705 = vpop.f32.mrb[0].mxu0
    %v1706 = vadd.f32 %v1237, %v1705
    %v1707 = vpop.f32.mrb[0].mxu0
    %v1708 = vpop.f32.mrb[0].mxu0
    %v1709 = vadd.f32 %v1237, %v1708
    %v1710 = vpop.f32.mrb[0].mxu0
    %1711 = vmatprep.mubr.bf16.mxu0 0
    %1712 = vmatmul.mubr.bf16.gmra.mrb[0].mxu0 %v1201
    %v1713 = vpop.f32.mrb[0].mxu0
    %v1714 = vadd.f32 %v1237, %v1713
    %v1715 = vpop.f32.mrb[0].mxu0
    %v1716 = vpop.f32.mrb[0].mxu0
    %v1717 = vadd.f32 %v1237, %v1716
    %v1718 = vpop.f32.mrb[0].mxu0
    %1719 = vmatprep.mubr.bf16.mxu0 0
    %1720 = vmatmul.mubr.bf16.gmra.mrb[0].mxu0 %v1202
    %v1721 = vpop.f32.mrb[0].mxu0
    %v1722 = vadd.f32 %v1237, %v1721
    %v1723 = vpop.f32.mrb[0].mxu0
    %v1724 = vpop.f32.mrb[0].mxu0
    %v1725 = vadd.f32 %v1237, %v1724
    %v1726 = vpop.f32.mrb[0].mxu0
    %1727 = vmatprep.mubr.bf16.mxu0 0
    %1728 = vmatmul.mubr.bf16.gmra.mrb[0].mxu0 %v1203
    %v1729 = vpop.f32.mrb[0].mxu0
    %v1730 = vadd.f32 %v1237, %v1729
    %v1731 = vpop.f32.mrb[0].mxu0
    %v1732 = vpop.f32.mrb[0].mxu0
    %v1733 = vadd.f32 %v1237, %v1732
    %v1734 = vpop.f32.mrb[0].mxu0
    %1735 = vmatprep.mubr.bf16.mxu0 0
    %1736 = vmatmul.mubr.bf16.gmra.mrb[0].mxu0 %v1204
    %v1737 = vpop.f32.mrb[0].mxu0
    %v1738 = vadd.f32 %v1237, %v1737
    %v1739 = vpop.f32.mrb[0].mxu0
    %v1740 = vpop.f32.mrb[0].mxu0
    %v1741 = vadd.f32 %v1237, %v1740
    %v1742 = vpop.f32.mrb[0].mxu0
    %1743 = vmatprep.mubr.bf16.mxu0 0
    %1744 = vmatmul.mubr.bf16.gmra.mrb[0].mxu0 %v1205
    %v1745 = vpop.f32.mrb[0].mxu0
    %v1746 = vadd.f32 %v1237, %v1745
    %v1747 = vpop.f32.mrb[0].mxu0
    %v1748 = vpop.f32.mrb[0].mxu0
    %v1749 = vadd.f32 %v1237, %v1748
    %v1750 = vpop.f32.mrb[0].mxu0
    %1751 = vmatprep.mubr.bf16.mxu0 0
    %1752 = vmatmul.mubr.bf16.gmra.mrb[0].mxu0 %v1206
    %v1753 = vpop.f32.mrb[0].mxu0
    %v1754 = vadd.f32 %v1237, %v1753
    %v1755 = vpop.f32.mrb[0].mxu0
    %v1756 = vpop.f32.mrb[0].mxu0
    %v1757 = vadd.f32 %v1237, %v1756
    %v1758 = vpop.f32.mrb[0].mxu0
    %1759 = vmatprep.mubr.bf16.mxu0 0
    %1760 = vmatmul.mubr.bf16.gmra.mrb[0].mxu0 %v1207
    %v1761 = vpop.f32.mrb[0].mxu0
    %v1762 = vadd.f32 %v1237, %v1761
    %v1763 = vpop.f32.mrb[0].mxu0
    %v1764 = vpop.f32.mrb[0].mxu0
    %v1765 = vadd.f32 %v1237, %v1764
    %v1766 = vpop.f32.mrb[0].mxu0
    %1767 = vmatprep.mubr.bf16.mxu0 0
    %1768 = vmatmul.mubr.bf16.gmra.mrb[0].mxu0 %v1208
    %v1769 = vpop.f32.mrb[0].mxu0
    %v1770 = vadd.f32 %v1237, %v1769
    %v1771 = vpop.f32.mrb[0].mxu0
    %v1772 = vpop.f32.mrb[0].mxu0
    %v1773 = vadd.f32 %v1237, %v1772
    %v1774 = vpop.f32.mrb[0].mxu0
    %1775 = vmatprep.mubr.bf16.mxu0 0
    %1776 = vmatmul.mubr.bf16.gmra.mrb[0].mxu0 %v1209
    %v1777 = vpop.f32.mrb[0].mxu0
    %v1778 = vadd.f32 %v1237, %v1777
    %v1779 = vpop.f32.mrb[0].mxu0
    %v1780 = vpop.f32.mrb[0].mxu0
    %v1781 = vadd.f32 %v1237, %v1780
    %v1782 = vpop.f32.mrb[0].mxu0
    %1783 = vmatprep.mubr.bf16.mxu0 0
    %1784 = vmatmul.mubr.bf16.gmra.mrb[0].mxu0 %v1210
    %v1785 = vpop.f32.mrb[0].mxu0
    %v1786 = vadd.f32 %v1237, %v1785
    %v1787 = vpop.f32.mrb[0].mxu0
    %v1788 = vpop.f32.mrb[0].mxu0
    %v1789 = vadd.f32 %v1237, %v1788
    %v1790 = vpop.f32.mrb[0].mxu0
    %1791 = vmatprep.mubr.bf16.mxu0 0
    %1792 = vmatmul.mubr.bf16.gmra.mrb[0].mxu0 %v1211
    %v1793 = vpop.f32.mrb[0].mxu0
    %v1794 = vadd.f32 %v1237, %v1793
    %v1795 = vpop.f32.mrb[0].mxu0
    %v1796 = vpop.f32.mrb[0].mxu0
    %v1797 = vadd.f32 %v1237, %v1796
    %v1798 = vpop.f32.mrb[0].mxu0
    %1799 = vmatprep.mubr.bf16.mxu0 0
    %1800 = vmatmul.mubr.bf16.gmra.mrb[0].mxu0 %v1212
    %v1801 = vpop.f32.mrb[0].mxu0
    %v1802 = vadd.f32 %v1237, %v1801
    %v1803 = vpop.f32.mrb[0].mxu0
    %v1804 = vpop.f32.mrb[0].mxu0
    %v1805 = vadd.f32 %v1237, %v1804
    %v1806 = vpop.f32.mrb[0].mxu0
    %1807 = vmatprep.mubr.bf16.mxu0 0
    %1808 = vmatmul.mubr.bf16.gmra.mrb[0].mxu0 %v1213
    %v1809 = vpop.f32.mrb[0].mxu0
    %v1810 = vadd.f32 %v1237, %v1809
    %v1811 = vpop.f32.mrb[0].mxu0
    %v1812 = vpop.f32.mrb[0].mxu0
    %v1813 = vadd.f32 %v1237, %v1812
    %v1814 = vpop.f32.mrb[0].mxu0
    %1815 = vmatprep.mubr.bf16.mxu0 0
    %1816 = vmatmul.mubr.bf16.gmra.mrb[0].mxu0 %v1214
    %v1817 = vpop.f32.mrb[0].mxu0
    %v1818 = vadd.f32 %v1237, %v1817
    %v1819 = vpop.f32.mrb[0].mxu0
    %v1820 = vpop.f32.mrb[0].mxu0
    %v1821 = vadd.f32 %v1237, %v1820
    %v1822 = vpop.f32.mrb[0].mxu0
    %1823 = vmatprep.mubr.bf16.mxu0 0
    %1824 = vmatmul.mubr.bf16.gmra.mrb[0].mxu0 %v1215
    %v1825 = vpop.f32.mrb[0].mxu0
    %v1826 = vadd.f32 %v1237, %v1825
    %v1827 = vpop.f32.mrb[0].mxu0
    %v1828 = vpop.f32.mrb[0].mxu0
    %v1829 = vadd.f32 %v1237, %v1828
    %v1830 = vpop.f32.mrb[0].mxu0
    %1831 = vdwg.mxu0
    %v1832 = vmax.f32 %v1322, 0.0
    %v1833 = vmax.f32 %v1325, 0.0
    %v1834 = vmax.f32 %v1330, 0.0
    %v1835 = vmax.f32 %v1333, 0.0
    %v1836 = vmax.f32 %v1338, 0.0
    %v1837 = vmax.f32 %v1341, 0.0
    %v1838 = vmax.f32 %v1346, 0.0
    %v1839 = vmax.f32 %v1349, 0.0
    %v1840 = vmax.f32 %v1354, 0.0
    %v1841 = vmax.f32 %v1357, 0.0
    %v1842 = vmax.f32 %v1362, 0.0
    %v1843 = vmax.f32 %v1365, 0.0
    %v1844 = vmax.f32 %v1370, 0.0
    %v1845 = vmax.f32 %v1373, 0.0
    %v1846 = vmax.f32 %v1378, 0.0
    %v1847 = vmax.f32 %v1381, 0.0
    %v1848 = vmax.f32 %v1386, 0.0
    %v1849 = vmax.f32 %v1389, 0.0
    %v1850 = vmax.f32 %v1394, 0.0
    %v1851 = vmax.f32 %v1397, 0.0
    %v1852 = vmax.f32 %v1402, 0.0
    %v1853 = vmax.f32 %v1405, 0.0
    %v1854 = vmax.f32 %v1410, 0.0
    %v1855 = vmax.f32 %v1413, 0.0
    %v1856 = vmax.f32 %v1418, 0.0
    %v1857 = vmax.f32 %v1421, 0.0
    %v1858 = vmax.f32 %v1426, 0.0
    %v1859 = vmax.f32 %v1429, 0.0
    %v1860 = vmax.f32 %v1434, 0.0
    %v1861 = vmax.f32 %v1437, 0.0
    %v1862 = vmax.f32 %v1442, 0.0
    %v1863 = vmax.f32 %v1445, 0.0
    %v1864 = vmax.f32 %v1450, 0.0
    %v1865 = vmax.f32 %v1453, 0.0
    %v1866 = vmax.f32 %v1458, 0.0
    %v1867 = vmax.f32 %v1461, 0.0
    %v1868 = vmax.f32 %v1466, 0.0
    %v1869 = vmax.f32 %v1469, 0.0
    %v1870 = vmax.f32 %v1474, 0.0
    %v1871 = vmax.f32 %v1477, 0.0
    %v1872 = vmax.f32 %v1482, 0.0
    %v1873 = vmax.f32 %v1485, 0.0
    %v1874 = vmax.f32 %v1490, 0.0
    %v1875 = vmax.f32 %v1493, 0.0
    %v1876 = vmax.f32 %v1498, 0.0
    %v1877 = vmax.f32 %v1501, 0.0
    %v1878 = vmax.f32 %v1506, 0.0
    %v1879 = vmax.f32 %v1509, 0.0
    %v1880 = vmax.f32 %v1514, 0.0
    %v1881 = vmax.f32 %v1517, 0.0
    %v1882 = vmax.f32 %v1522, 0.0
    %v1883 = vmax.f32 %v1525, 0.0
    %v1884 = vmax.f32 %v1530, 0.0
    %v1885 = vmax.f32 %v1533, 0.0
    %v1886 = vmax.f32 %v1538, 0.0
    %v1887 = vmax.f32 %v1541, 0.0
    %v1888 = vmax.f32 %v1546, 0.0
    %v1889 = vmax.f32 %v1549, 0.0
    %v1890 = vmax.f32 %v1554, 0.0
    %v1891 = vmax.f32 %v1557, 0.0
    %v1892 = vmax.f32 %v1562, 0.0
    %v1893 = vmax.f32 %v1565, 0.0
    %v1894 = vmax.f32 %v1570, 0.0
    %v1895 = vmax.f32 %v1573, 0.0
    %v1896 = vmax.f32 %v1578, 0.0
    %v1897 = vmax.f32 %v1581, 0.0
    %v1898 = vmax.f32 %v1586, 0.0
    %v1899 = vmax.f32 %v1589, 0.0
    %v1900 = vmax.f32 %v1594, 0.0
    %v1901 = vmax.f32 %v1597, 0.0
    %v1902 = vmax.f32 %v1602, 0.0
    %v1903 = vmax.f32 %v1605, 0.0
    %v1904 = vmax.f32 %v1610, 0.0
    %v1905 = vmax.f32 %v1613, 0.0
    %v1906 = vmax.f32 %v1618, 0.0
    %v1907 = vmax.f32 %v1621, 0.0
    %v1908 = vmax.f32 %v1626, 0.0
    %v1909 = vmax.f32 %v1629, 0.0
    %v1910 = vmax.f32 %v1634, 0.0
    %v1911 = vmax.f32 %v1637, 0.0
    %v1912 = vmax.f32 %v1642, 0.0
    %v1913 = vmax.f32 %v1645, 0.0
    %v1914 = vmax.f32 %v1650, 0.0
    %v1915 = vmax.f32 %v1653, 0.0
    %v1916 = vmax.f32 %v1658, 0.0
    %v1917 = vmax.f32 %v1661, 0.0
    %v1918 = vmax.f32 %v1666, 0.0
    %v1919 = vmax.f32 %v1669, 0.0
    %v1920 = vmax.f32 %v1674, 0.0
    %v1921 = vmax.f32 %v1677, 0.0
    %v1922 = vmax.f32 %v1682, 0.0
    %v1923 = vmax.f32 %v1685, 0.0
    %v1924 = vmax.f32 %v1690, 0.0
    %v1925 = vmax.f32 %v1693, 0.0
    %v1926 = vmax.f32 %v1698, 0.0
    %v1927 = vmax.f32 %v1701, 0.0
    %v1928 = vmax.f32 %v1706, 0.0
    %v1929 = vmax.f32 %v1709, 0.0
    %v1930 = vmax.f32 %v1714, 0.0
    %v1931 = vmax.f32 %v1717, 0.0
    %v1932 = vmax.f32 %v1722, 0.0
    %v1933 = vmax.f32 %v1725, 0.0
    %v1934 = vmax.f32 %v1730, 0.0
    %v1935 = vmax.f32 %v1733, 0.0
    %v1936 = vmax.f32 %v1738, 0.0
    %v1937 = vmax.f32 %v1741, 0.0
    %v1938 = vmax.f32 %v1746, 0.0
    %v1939 = vmax.f32 %v1749, 0.0
    %v1940 = vmax.f32 %v1754, 0.0
    %v1941 = vmax.f32 %v1757, 0.0
    %v1942 = vmax.f32 %v1762, 0.0
    %v1943 = vmax.f32 %v1765, 0.0
    %v1944 = vmax.f32 %v1770, 0.0
    %v1945 = vmax.f32 %v1773, 0.0
    %v1946 = vmax.f32 %v1778, 0.0
    %v1947 = vmax.f32 %v1781, 0.0
    %v1948 = vmax.f32 %v1786, 0.0
    %v1949 = vmax.f32 %v1789, 0.0
    %v1950 = vmax.f32 %v1794, 0.0
    %v1951 = vmax.f32 %v1797, 0.0
    %v1952 = vmax.f32 %v1802, 0.0
    %v1953 = vmax.f32 %v1805, 0.0
    %v1954 = vmax.f32 %v1810, 0.0
    %v1955 = vmax.f32 %v1813, 0.0
    %v1956 = vmax.f32 %v1818, 0.0
    %v1957 = vmax.f32 %v1821, 0.0
    %v1958 = vmax.f32 %v1826, 0.0
    %v1959 = vmax.f32 %v1829, 0.0
    %v1960 = vld [vmem:[%s5] sm:$0x1]
    %v1962 = vlaneseq
    %v1963 = vshrl.u32 %v1962, 7
    %v1964 = vsub.s32 0, %v1963
    %v1965 = vrot.slane %v1960, %v1964
    %v1967 = vmul.f32 %v1832, %v1965
    %v1968 = vmul.f32 %v1833, %v1965
    %v1969 = vmul.f32 %v1834, %v1965
    %v1970 = vmul.f32 %v1835, %v1965
    %v1971 = vmul.f32 %v1836, %v1965
    %v1972 = vmul.f32 %v1837, %v1965
    %v1973 = vmul.f32 %v1838, %v1965
    %v1974 = vmul.f32 %v1839, %v1965
    %v1975 = vmul.f32 %v1840, %v1965
    %v1976 = vmul.f32 %v1841, %v1965
    %v1977 = vmul.f32 %v1842, %v1965
    %v1978 = vmul.f32 %v1843, %v1965
    %v1979 = vmul.f32 %v1844, %v1965
    %v1980 = vmul.f32 %v1845, %v1965
    %v1981 = vmul.f32 %v1846, %v1965
    %v1982 = vmul.f32 %v1847, %v1965
    %v1983 = vmul.f32 %v1848, %v1965
    %v1984 = vmul.f32 %v1849, %v1965
    %v1985 = vmul.f32 %v1850, %v1965
    %v1986 = vmul.f32 %v1851, %v1965
    %v1987 = vmul.f32 %v1852, %v1965
    %v1988 = vmul.f32 %v1853, %v1965
    %v1989 = vmul.f32 %v1854, %v1965
    %v1990 = vmul.f32 %v1855, %v1965
    %v1991 = vmul.f32 %v1856, %v1965
    %v1992 = vmul.f32 %v1857, %v1965
    %v1993 = vmul.f32 %v1858, %v1965
    %v1994 = vmul.f32 %v1859, %v1965
    %v1995 = vmul.f32 %v1860, %v1965
    %v1996 = vmul.f32 %v1861, %v1965
    %v1997 = vmul.f32 %v1862, %v1965
    %v1998 = vmul.f32 %v1863, %v1965
    %v1999 = vmul.f32 %v1864, %v1965
    %v2000 = vmul.f32 %v1865, %v1965
    %v2001 = vmul.f32 %v1866, %v1965
    %v2002 = vmul.f32 %v1867, %v1965
    %v2003 = vmul.f32 %v1868, %v1965
    %v2004 = vmul.f32 %v1869, %v1965
    %v2005 = vmul.f32 %v1870, %v1965
    %v2006 = vmul.f32 %v1871, %v1965
    %v2007 = vmul.f32 %v1872, %v1965
    %v2008 = vmul.f32 %v1873, %v1965
    %v2009 = vmul.f32 %v1874, %v1965
    %v2010 = vmul.f32 %v1875, %v1965
    %v2011 = vmul.f32 %v1876, %v1965
    %v2012 = vmul.f32 %v1877, %v1965
    %v2013 = vmul.f32 %v1878, %v1965
    %v2014 = vmul.f32 %v1879, %v1965
    %v2015 = vmul.f32 %v1880, %v1965
    %v2016 = vmul.f32 %v1881, %v1965
    %v2017 = vmul.f32 %v1882, %v1965
    %v2018 = vmul.f32 %v1883, %v1965
    %v2019 = vmul.f32 %v1884, %v1965
    %v2020 = vmul.f32 %v1885, %v1965
    %v2021 = vmul.f32 %v1886, %v1965
    %v2022 = vmul.f32 %v1887, %v1965
    %v2023 = vmul.f32 %v1888, %v1965
    %v2024 = vmul.f32 %v1889, %v1965
    %v2025 = vmul.f32 %v1890, %v1965
    %v2026 = vmul.f32 %v1891, %v1965
    %v2027 = vmul.f32 %v1892, %v1965
    %v2028 = vmul.f32 %v1893, %v1965
    %v2029 = vmul.f32 %v1894, %v1965
    %v2030 = vmul.f32 %v1895, %v1965
    %v2031 = vmul.f32 %v1896, %v1965
    %v2032 = vmul.f32 %v1897, %v1965
    %v2033 = vmul.f32 %v1898, %v1965
    %v2034 = vmul.f32 %v1899, %v1965
    %v2035 = vmul.f32 %v1900, %v1965
    %v2036 = vmul.f32 %v1901, %v1965
    %v2037 = vmul.f32 %v1902, %v1965
    %v2038 = vmul.f32 %v1903, %v1965
    %v2039 = vmul.f32 %v1904, %v1965
    %v2040 = vmul.f32 %v1905, %v1965
    %v2041 = vmul.f32 %v1906, %v1965
    %v2042 = vmul.f32 %v1907, %v1965
    %v2043 = vmul.f32 %v1908, %v1965
    %v2044 = vmul.f32 %v1909, %v1965
    %v2045 = vmul.f32 %v1910, %v1965
    %v2046 = vmul.f32 %v1911, %v1965
    %v2047 = vmul.f32 %v1912, %v1965
    %v2048 = vmul.f32 %v1913, %v1965
    %v2049 = vmul.f32 %v1914, %v1965
    %v2050 = vmul.f32 %v1915, %v1965
    %v2051 = vmul.f32 %v1916, %v1965
    %v2052 = vmul.f32 %v1917, %v1965
    %v2053 = vmul.f32 %v1918, %v1965
    %v2054 = vmul.f32 %v1919, %v1965
    %v2055 = vmul.f32 %v1920, %v1965
    %v2056 = vmul.f32 %v1921, %v1965
    %v2057 = vmul.f32 %v1922, %v1965
    %v2058 = vmul.f32 %v1923, %v1965
    %v2059 = vmul.f32 %v1924, %v1965
    %v2060 = vmul.f32 %v1925, %v1965
    %v2061 = vmul.f32 %v1926, %v1965
    %v2062 = vmul.f32 %v1927, %v1965
    %v2063 = vmul.f32 %v1928, %v1965
    %v2064 = vmul.f32 %v1929, %v1965
    %v2065 = vmul.f32 %v1930, %v1965
    %v2066 = vmul.f32 %v1931, %v1965
    %v2067 = vmul.f32 %v1932, %v1965
    %v2068 = vmul.f32 %v1933, %v1965
    %v2069 = vmul.f32 %v1934, %v1965
    %v2070 = vmul.f32 %v1935, %v1965
    %v2071 = vmul.f32 %v1936, %v1965
    %v2072 = vmul.f32 %v1937, %v1965
    %v2073 = vmul.f32 %v1938, %v1965
    %v2074 = vmul.f32 %v1939, %v1965
    %v2075 = vmul.f32 %v1940, %v1965
    %v2076 = vmul.f32 %v1941, %v1965
    %v2077 = vmul.f32 %v1942, %v1965
    %v2078 = vmul.f32 %v1943, %v1965
    %v2079 = vmul.f32 %v1944, %v1965
    %v2080 = vmul.f32 %v1945, %v1965
    %v2081 = vmul.f32 %v1946, %v1965
    %v2082 = vmul.f32 %v1947, %v1965
    %v2083 = vmul.f32 %v1948, %v1965
    %v2084 = vmul.f32 %v1949, %v1965
    %v2085 = vmul.f32 %v1950, %v1965
    %v2086 = vmul.f32 %v1951, %v1965
    %v2087 = vmul.f32 %v1952, %v1965
    %v2088 = vmul.f32 %v1953, %v1965
    %v2089 = vmul.f32 %v1954, %v1965
    %v2090 = vmul.f32 %v1955, %v1965
    %v2091 = vmul.f32 %v1956, %v1965
    %v2092 = vmul.f32 %v1957, %v1965
    %v2093 = vmul.f32 %v1958, %v1965
    %v2094 = vmul.f32 %v1959, %v1965
    %2095 = vadd.xlane.f32.xlu0 %v1967
    %v2096 = vpop.xlane.xlu0 %2095
    %2097 = vadd.xlane.f32.xlu0 %v1968
    %v2098 = vpop.xlane.xlu0 %2097
    %2099 = vadd.xlane.f32.xlu0 %v1969
    %v2100 = vpop.xlane.xlu0 %2099
    %2101 = vadd.xlane.f32.xlu0 %v1970
    %v2102 = vpop.xlane.xlu0 %2101
    %2103 = vadd.xlane.f32.xlu0 %v1971
    %v2104 = vpop.xlane.xlu0 %2103
    %2105 = vadd.xlane.f32.xlu0 %v1972
    %v2106 = vpop.xlane.xlu0 %2105
    %2107 = vadd.xlane.f32.xlu0 %v1973
    %v2108 = vpop.xlane.xlu0 %2107
    %2109 = vadd.xlane.f32.xlu0 %v1974
    %v2110 = vpop.xlane.xlu0 %2109
    %2111 = vadd.xlane.f32.xlu0 %v1975
    %v2112 = vpop.xlane.xlu0 %2111
    %2113 = vadd.xlane.f32.xlu0 %v1976
    %v2114 = vpop.xlane.xlu0 %2113
    %2115 = vadd.xlane.f32.xlu0 %v1977
    %v2116 = vpop.xlane.xlu0 %2115
    %2117 = vadd.xlane.f32.xlu0 %v1978
    %v2118 = vpop.xlane.xlu0 %2117
    %2119 = vadd.xlane.f32.xlu0 %v1979
    %v2120 = vpop.xlane.xlu0 %2119
    %2121 = vadd.xlane.f32.xlu0 %v1980
    %v2122 = vpop.xlane.xlu0 %2121
    %2123 = vadd.xlane.f32.xlu0 %v1981
    %v2124 = vpop.xlane.xlu0 %2123
    %2125 = vadd.xlane.f32.xlu0 %v1982
    %v2126 = vpop.xlane.xlu0 %2125
    %2127 = vadd.xlane.f32.xlu0 %v1983
    %v2128 = vpop.xlane.xlu0 %2127
    %2129 = vadd.xlane.f32.xlu0 %v1984
    %v2130 = vpop.xlane.xlu0 %2129
    %2131 = vadd.xlane.f32.xlu0 %v1985
    %v2132 = vpop.xlane.xlu0 %2131
    %2133 = vadd.xlane.f32.xlu0 %v1986
    %v2134 = vpop.xlane.xlu0 %2133
    %2135 = vadd.xlane.f32.xlu0 %v1987
    %v2136 = vpop.xlane.xlu0 %2135
    %2137 = vadd.xlane.f32.xlu0 %v1988
    %v2138 = vpop.xlane.xlu0 %2137
    %2139 = vadd.xlane.f32.xlu0 %v1989
    %v2140 = vpop.xlane.xlu0 %2139
    %2141 = vadd.xlane.f32.xlu0 %v1990
    %v2142 = vpop.xlane.xlu0 %2141
    %2143 = vadd.xlane.f32.xlu0 %v1991
    %v2144 = vpop.xlane.xlu0 %2143
    %2145 = vadd.xlane.f32.xlu0 %v1992
    %v2146 = vpop.xlane.xlu0 %2145
    %2147 = vadd.xlane.f32.xlu0 %v1993
    %v2148 = vpop.xlane.xlu0 %2147
    %2149 = vadd.xlane.f32.xlu0 %v1994
    %v2150 = vpop.xlane.xlu0 %2149
    %2151 = vadd.xlane.f32.xlu0 %v1995
    %v2152 = vpop.xlane.xlu0 %2151
    %2153 = vadd.xlane.f32.xlu0 %v1996
    %v2154 = vpop.xlane.xlu0 %2153
    %2155 = vadd.xlane.f32.xlu0 %v1997
    %v2156 = vpop.xlane.xlu0 %2155
    %2157 = vadd.xlane.f32.xlu0 %v1998
    %v2158 = vpop.xlane.xlu0 %2157
    %2159 = vadd.xlane.f32.xlu0 %v1999
    %v2160 = vpop.xlane.xlu0 %2159
    %2161 = vadd.xlane.f32.xlu0 %v2000
    %v2162 = vpop.xlane.xlu0 %2161
    %2163 = vadd.xlane.f32.xlu0 %v2001
    %v2164 = vpop.xlane.xlu0 %2163
    %2165 = vadd.xlane.f32.xlu0 %v2002
    %v2166 = vpop.xlane.xlu0 %2165
    %2167 = vadd.xlane.f32.xlu0 %v2003
    %v2168 = vpop.xlane.xlu0 %2167
    %2169 = vadd.xlane.f32.xlu0 %v2004
    %v2170 = vpop.xlane.xlu0 %2169
    %2171 = vadd.xlane.f32.xlu0 %v2005
    %v2172 = vpop.xlane.xlu0 %2171
    %2173 = vadd.xlane.f32.xlu0 %v2006
    %v2174 = vpop.xlane.xlu0 %2173
    %2175 = vadd.xlane.f32.xlu0 %v2007
    %v2176 = vpop.xlane.xlu0 %2175
    %2177 = vadd.xlane.f32.xlu0 %v2008
    %v2178 = vpop.xlane.xlu0 %2177
    %2179 = vadd.xlane.f32.xlu0 %v2009
    %v2180 = vpop.xlane.xlu0 %2179
    %2181 = vadd.xlane.f32.xlu0 %v2010
    %v2182 = vpop.xlane.xlu0 %2181
    %2183 = vadd.xlane.f32.xlu0 %v2011
    %v2184 = vpop.xlane.xlu0 %2183
    %2185 = vadd.xlane.f32.xlu0 %v2012
    %v2186 = vpop.xlane.xlu0 %2185
    %2187 = vadd.xlane.f32.xlu0 %v2013
    %v2188 = vpop.xlane.xlu0 %2187
    %2189 = vadd.xlane.f32.xlu0 %v2014
    %v2190 = vpop.xlane.xlu0 %2189
    %2191 = vadd.xlane.f32.xlu0 %v2015
    %v2192 = vpop.xlane.xlu0 %2191
    %2193 = vadd.xlane.f32.xlu0 %v2016
    %v2194 = vpop.xlane.xlu0 %2193
    %2195 = vadd.xlane.f32.xlu0 %v2017
    %v2196 = vpop.xlane.xlu0 %2195
    %2197 = vadd.xlane.f32.xlu0 %v2018
    %v2198 = vpop.xlane.xlu0 %2197
    %2199 = vadd.xlane.f32.xlu0 %v2019
    %v2200 = vpop.xlane.xlu0 %2199
    %2201 = vadd.xlane.f32.xlu0 %v2020
    %v2202 = vpop.xlane.xlu0 %2201
    %2203 = vadd.xlane.f32.xlu0 %v2021
    %v2204 = vpop.xlane.xlu0 %2203
    %2205 = vadd.xlane.f32.xlu0 %v2022
    %v2206 = vpop.xlane.xlu0 %2205
    %2207 = vadd.xlane.f32.xlu0 %v2023
    %v2208 = vpop.xlane.xlu0 %2207
    %2209 = vadd.xlane.f32.xlu0 %v2024
    %v2210 = vpop.xlane.xlu0 %2209
    %2211 = vadd.xlane.f32.xlu0 %v2025
    %v2212 = vpop.xlane.xlu0 %2211
    %2213 = vadd.xlane.f32.xlu0 %v2026
    %v2214 = vpop.xlane.xlu0 %2213
    %2215 = vadd.xlane.f32.xlu0 %v2027
    %v2216 = vpop.xlane.xlu0 %2215
    %2217 = vadd.xlane.f32.xlu0 %v2028
    %v2218 = vpop.xlane.xlu0 %2217
    %2219 = vadd.xlane.f32.xlu0 %v2029
    %v2220 = vpop.xlane.xlu0 %2219
    %2221 = vadd.xlane.f32.xlu0 %v2030
    %v2222 = vpop.xlane.xlu0 %2221
    %2223 = vadd.xlane.f32.xlu0 %v2031
    %v2224 = vpop.xlane.xlu0 %2223
    %2225 = vadd.xlane.f32.xlu0 %v2032
    %v2226 = vpop.xlane.xlu0 %2225
    %2227 = vadd.xlane.f32.xlu0 %v2033
    %v2228 = vpop.xlane.xlu0 %2227
    %2229 = vadd.xlane.f32.xlu0 %v2034
    %v2230 = vpop.xlane.xlu0 %2229
    %2231 = vadd.xlane.f32.xlu0 %v2035
    %v2232 = vpop.xlane.xlu0 %2231
    %2233 = vadd.xlane.f32.xlu0 %v2036
    %v2234 = vpop.xlane.xlu0 %2233
    %2235 = vadd.xlane.f32.xlu0 %v2037
    %v2236 = vpop.xlane.xlu0 %2235
    %2237 = vadd.xlane.f32.xlu0 %v2038
    %v2238 = vpop.xlane.xlu0 %2237
    %2239 = vadd.xlane.f32.xlu0 %v2039
    %v2240 = vpop.xlane.xlu0 %2239
    %2241 = vadd.xlane.f32.xlu0 %v2040
    %v2242 = vpop.xlane.xlu0 %2241
    %2243 = vadd.xlane.f32.xlu0 %v2041
    %v2244 = vpop.xlane.xlu0 %2243
    %2245 = vadd.xlane.f32.xlu0 %v2042
    %v2246 = vpop.xlane.xlu0 %2245
    %2247 = vadd.xlane.f32.xlu0 %v2043
    %v2248 = vpop.xlane.xlu0 %2247
    %2249 = vadd.xlane.f32.xlu0 %v2044
    %v2250 = vpop.xlane.xlu0 %2249
    %2251 = vadd.xlane.f32.xlu0 %v2045
    %v2252 = vpop.xlane.xlu0 %2251
    %2253 = vadd.xlane.f32.xlu0 %v2046
    %v2254 = vpop.xlane.xlu0 %2253
    %2255 = vadd.xlane.f32.xlu0 %v2047
    %v2256 = vpop.xlane.xlu0 %2255
    %2257 = vadd.xlane.f32.xlu0 %v2048
    %v2258 = vpop.xlane.xlu0 %2257
    %2259 = vadd.xlane.f32.xlu0 %v2049
    %v2260 = vpop.xlane.xlu0 %2259
    %2261 = vadd.xlane.f32.xlu0 %v2050
    %v2262 = vpop.xlane.xlu0 %2261
    %2263 = vadd.xlane.f32.xlu0 %v2051
    %v2264 = vpop.xlane.xlu0 %2263
    %2265 = vadd.xlane.f32.xlu0 %v2052
    %v2266 = vpop.xlane.xlu0 %2265
    %2267 = vadd.xlane.f32.xlu0 %v2053
    %v2268 = vpop.xlane.xlu0 %2267
    %2269 = vadd.xlane.f32.xlu0 %v2054
    %v2270 = vpop.xlane.xlu0 %2269
    %2271 = vadd.xlane.f32.xlu0 %v2055
    %v2272 = vpop.xlane.xlu0 %2271
    %2273 = vadd.xlane.f32.xlu0 %v2056
    %v2274 = vpop.xlane.xlu0 %2273
    %2275 = vadd.xlane.f32.xlu0 %v2057
    %v2276 = vpop.xlane.xlu0 %2275
    %2277 = vadd.xlane.f32.xlu0 %v2058
    %v2278 = vpop.xlane.xlu0 %2277
    %2279 = vadd.xlane.f32.xlu0 %v2059
    %v2280 = vpop.xlane.xlu0 %2279
    %2281 = vadd.xlane.f32.xlu0 %v2060
    %v2282 = vpop.xlane.xlu0 %2281
    %2283 = vadd.xlane.f32.xlu0 %v2061
    %v2284 = vpop.xlane.xlu0 %2283
    %2285 = vadd.xlane.f32.xlu0 %v2062
    %v2286 = vpop.xlane.xlu0 %2285
    %2287 = vadd.xlane.f32.xlu0 %v2063
    %v2288 = vpop.xlane.xlu0 %2287
    %2289 = vadd.xlane.f32.xlu0 %v2064
    %v2290 = vpop.xlane.xlu0 %2289
    %2291 = vadd.xlane.f32.xlu0 %v2065
    %v2292 = vpop.xlane.xlu0 %2291
    %2293 = vadd.xlane.f32.xlu0 %v2066
    %v2294 = vpop.xlane.xlu0 %2293
    %2295 = vadd.xlane.f32.xlu0 %v2067
    %v2296 = vpop.xlane.xlu0 %2295
    %2297 = vadd.xlane.f32.xlu0 %v2068
    %v2298 = vpop.xlane.xlu0 %2297
    %2299 = vadd.xlane.f32.xlu0 %v2069
    %v2300 = vpop.xlane.xlu0 %2299
    %2301 = vadd.xlane.f32.xlu0 %v2070
    %v2302 = vpop.xlane.xlu0 %2301
    %2303 = vadd.xlane.f32.xlu0 %v2071
    %v2304 = vpop.xlane.xlu0 %2303
    %2305 = vadd.xlane.f32.xlu0 %v2072
    %v2306 = vpop.xlane.xlu0 %2305
    %2307 = vadd.xlane.f32.xlu0 %v2073
    %v2308 = vpop.xlane.xlu0 %2307
    %2309 = vadd.xlane.f32.xlu0 %v2074
    %v2310 = vpop.xlane.xlu0 %2309
    %2311 = vadd.xlane.f32.xlu0 %v2075
    %v2312 = vpop.xlane.xlu0 %2311
    %2313 = vadd.xlane.f32.xlu0 %v2076
    %v2314 = vpop.xlane.xlu0 %2313
    %2315 = vadd.xlane.f32.xlu0 %v2077
    %v2316 = vpop.xlane.xlu0 %2315
    %2317 = vadd.xlane.f32.xlu0 %v2078
    %v2318 = vpop.xlane.xlu0 %2317
    %2319 = vadd.xlane.f32.xlu0 %v2079
    %v2320 = vpop.xlane.xlu0 %2319
    %2321 = vadd.xlane.f32.xlu0 %v2080
    %v2322 = vpop.xlane.xlu0 %2321
    %2323 = vadd.xlane.f32.xlu0 %v2081
    %v2324 = vpop.xlane.xlu0 %2323
    %2325 = vadd.xlane.f32.xlu0 %v2082
    %v2326 = vpop.xlane.xlu0 %2325
    %2327 = vadd.xlane.f32.xlu0 %v2083
    %v2328 = vpop.xlane.xlu0 %2327
    %2329 = vadd.xlane.f32.xlu0 %v2084
    %v2330 = vpop.xlane.xlu0 %2329
    %2331 = vadd.xlane.f32.xlu0 %v2085
    %v2332 = vpop.xlane.xlu0 %2331
    %2333 = vadd.xlane.f32.xlu0 %v2086
    %v2334 = vpop.xlane.xlu0 %2333
    %2335 = vadd.xlane.f32.xlu0 %v2087
    %v2336 = vpop.xlane.xlu0 %2335
    %2337 = vadd.xlane.f32.xlu0 %v2088
    %v2338 = vpop.xlane.xlu0 %2337
    %2339 = vadd.xlane.f32.xlu0 %v2089
    %v2340 = vpop.xlane.xlu0 %2339
    %2341 = vadd.xlane.f32.xlu0 %v2090
    %v2342 = vpop.xlane.xlu0 %2341
    %2343 = vadd.xlane.f32.xlu0 %v2091
    %v2344 = vpop.xlane.xlu0 %2343
    %2345 = vadd.xlane.f32.xlu0 %v2092
    %v2346 = vpop.xlane.xlu0 %2345
    %2347 = vadd.xlane.f32.xlu0 %v2093
    %v2348 = vpop.xlane.xlu0 %2347
    %2349 = vadd.xlane.f32.xlu0 %v2094
    %v2350 = vpop.xlane.xlu0 %2349
    %v2351 = vld [vmem:[#allocation2] sm:$0x1]
    %v2353 = vlaneseq
    %v2354 = vshrl.u32 %v2353, 7
    %v2355 = vsub.s32 0, %v2354
    %v2356 = vrot.slane %v2351, %v2355
    %2357 = vset.pattern.permute.xlu0 0
    %2358 = vperm.xlu0 %2357, %v2356
    %v2359 = vpop.permute.xlu0 %2358
    %v2361 = vadd.f32 %v2096, %v2359
    %v2362 = vadd.f32 %v2098, %v2359
    %v2363 = vadd.f32 %v2100, %v2359
    %v2364 = vadd.f32 %v2102, %v2359
    %v2365 = vadd.f32 %v2104, %v2359
    %v2366 = vadd.f32 %v2106, %v2359
    %v2367 = vadd.f32 %v2108, %v2359
    %v2368 = vadd.f32 %v2110, %v2359
    %v2369 = vadd.f32 %v2112, %v2359
    %v2370 = vadd.f32 %v2114, %v2359
    %v2371 = vadd.f32 %v2116, %v2359
    %v2372 = vadd.f32 %v2118, %v2359
    %v2373 = vadd.f32 %v2120, %v2359
    %v2374 = vadd.f32 %v2122, %v2359
    %v2375 = vadd.f32 %v2124, %v2359
    %v2376 = vadd.f32 %v2126, %v2359
    %v2377 = vadd.f32 %v2128, %v2359
    %v2378 = vadd.f32 %v2130, %v2359
    %v2379 = vadd.f32 %v2132, %v2359
    %v2380 = vadd.f32 %v2134, %v2359
    %v2381 = vadd.f32 %v2136, %v2359
    %v2382 = vadd.f32 %v2138, %v2359
    %v2383 = vadd.f32 %v2140, %v2359
    %v2384 = vadd.f32 %v2142, %v2359
    %v2385 = vadd.f32 %v2144, %v2359
    %v2386 = vadd.f32 %v2146, %v2359
    %v2387 = vadd.f32 %v2148, %v2359
    %v2388 = vadd.f32 %v2150, %v2359
    %v2389 = vadd.f32 %v2152, %v2359
    %v2390 = vadd.f32 %v2154, %v2359
    %v2391 = vadd.f32 %v2156, %v2359
    %v2392 = vadd.f32 %v2158, %v2359
    %v2393 = vadd.f32 %v2160, %v2359
    %v2394 = vadd.f32 %v2162, %v2359
    %v2395 = vadd.f32 %v2164, %v2359
    %v2396 = vadd.f32 %v2166, %v2359
    %v2397 = vadd.f32 %v2168, %v2359
    %v2398 = vadd.f32 %v2170, %v2359
    %v2399 = vadd.f32 %v2172, %v2359
    %v2400 = vadd.f32 %v2174, %v2359
    %v2401 = vadd.f32 %v2176, %v2359
    %v2402 = vadd.f32 %v2178, %v2359
    %v2403 = vadd.f32 %v2180, %v2359
    %v2404 = vadd.f32 %v2182, %v2359
    %v2405 = vadd.f32 %v2184, %v2359
    %v2406 = vadd.f32 %v2186, %v2359
    %v2407 = vadd.f32 %v2188, %v2359
    %v2408 = vadd.f32 %v2190, %v2359
    %v2409 = vadd.f32 %v2192, %v2359
    %v2410 = vadd.f32 %v2194, %v2359
    %v2411 = vadd.f32 %v2196, %v2359
    %v2412 = vadd.f32 %v2198, %v2359
    %v2413 = vadd.f32 %v2200, %v2359
    %v2414 = vadd.f32 %v2202, %v2359
    %v2415 = vadd.f32 %v2204, %v2359
    %v2416 = vadd.f32 %v2206, %v2359
    %v2417 = vadd.f32 %v2208, %v2359
    %v2418 = vadd.f32 %v2210, %v2359
    %v2419 = vadd.f32 %v2212, %v2359
    %v2420 = vadd.f32 %v2214, %v2359
    %v2421 = vadd.f32 %v2216, %v2359
    %v2422 = vadd.f32 %v2218, %v2359
    %v2423 = vadd.f32 %v2220, %v2359
    %v2424 = vadd.f32 %v2222, %v2359
    %v2425 = vadd.f32 %v2224, %v2359
    %v2426 = vadd.f32 %v2226, %v2359
    %v2427 = vadd.f32 %v2228, %v2359
    %v2428 = vadd.f32 %v2230, %v2359
    %v2429 = vadd.f32 %v2232, %v2359
    %v2430 = vadd.f32 %v2234, %v2359
    %v2431 = vadd.f32 %v2236, %v2359
    %v2432 = vadd.f32 %v2238, %v2359
    %v2433 = vadd.f32 %v2240, %v2359
    %v2434 = vadd.f32 %v2242, %v2359
    %v2435 = vadd.f32 %v2244, %v2359
    %v2436 = vadd.f32 %v2246, %v2359
    %v2437 = vadd.f32 %v2248, %v2359
    %v2438 = vadd.f32 %v2250, %v2359
    %v2439 = vadd.f32 %v2252, %v2359
    %v2440 = vadd.f32 %v2254, %v2359
    %v2441 = vadd.f32 %v2256, %v2359
    %v2442 = vadd.f32 %v2258, %v2359
    %v2443 = vadd.f32 %v2260, %v2359
    %v2444 = vadd.f32 %v2262, %v2359
    %v2445 = vadd.f32 %v2264, %v2359
    %v2446 = vadd.f32 %v2266, %v2359
    %v2447 = vadd.f32 %v2268, %v2359
    %v2448 = vadd.f32 %v2270, %v2359
    %v2449 = vadd.f32 %v2272, %v2359
    %v2450 = vadd.f32 %v2274, %v2359
    %v2451 = vadd.f32 %v2276, %v2359
    %v2452 = vadd.f32 %v2278, %v2359
    %v2453 = vadd.f32 %v2280, %v2359
    %v2454 = vadd.f32 %v2282, %v2359
    %v2455 = vadd.f32 %v2284, %v2359
    %v2456 = vadd.f32 %v2286, %v2359
    %v2457 = vadd.f32 %v2288, %v2359
    %v2458 = vadd.f32 %v2290, %v2359
    %v2459 = vadd.f32 %v2292, %v2359
    %v2460 = vadd.f32 %v2294, %v2359
    %v2461 = vadd.f32 %v2296, %v2359
    %v2462 = vadd.f32 %v2298, %v2359
    %v2463 = vadd.f32 %v2300, %v2359
    %v2464 = vadd.f32 %v2302, %v2359
    %v2465 = vadd.f32 %v2304, %v2359
    %v2466 = vadd.f32 %v2306, %v2359
    %v2467 = vadd.f32 %v2308, %v2359
    %v2468 = vadd.f32 %v2310, %v2359
    %v2469 = vadd.f32 %v2312, %v2359
    %v2470 = vadd.f32 %v2314, %v2359
    %v2471 = vadd.f32 %v2316, %v2359
    %v2472 = vadd.f32 %v2318, %v2359
    %v2473 = vadd.f32 %v2320, %v2359
    %v2474 = vadd.f32 %v2322, %v2359
    %v2475 = vadd.f32 %v2324, %v2359
    %v2476 = vadd.f32 %v2326, %v2359
    %v2477 = vadd.f32 %v2328, %v2359
    %v2478 = vadd.f32 %v2330, %v2359
    %v2479 = vadd.f32 %v2332, %v2359
    %v2480 = vadd.f32 %v2334, %v2359
    %v2481 = vadd.f32 %v2336, %v2359
    %v2482 = vadd.f32 %v2338, %v2359
    %v2483 = vadd.f32 %v2340, %v2359
    %v2484 = vadd.f32 %v2342, %v2359
    %v2485 = vadd.f32 %v2344, %v2359
    %v2486 = vadd.f32 %v2346, %v2359
    %v2487 = vadd.f32 %v2348, %v2359
    %v2488 = vadd.f32 %v2350, %v2359
    %v2489 = vsub.f32 0.0, %v2361
    %v2490 = vsub.f32 0.0, %v2362
    %v2491 = vsub.f32 0.0, %v2363
    %v2492 = vsub.f32 0.0, %v2364
    %v2493 = vsub.f32 0.0, %v2365
    %v2494 = vsub.f32 0.0, %v2366
    %v2495 = vsub.f32 0.0, %v2367
    %v2496 = vsub.f32 0.0, %v2368
    %v2497 = vsub.f32 0.0, %v2369
    %v2498 = vsub.f32 0.0, %v2370
    %v2499 = vsub.f32 0.0, %v2371
    %v2500 = vsub.f32 0.0, %v2372
    %v2501 = vsub.f32 0.0, %v2373
    %v2502 = vsub.f32 0.0, %v2374
    %v2503 = vsub.f32 0.0, %v2375
    %v2504 = vsub.f32 0.0, %v2376
    %v2505 = vsub.f32 0.0, %v2377
    %v2506 = vsub.f32 0.0, %v2378
    %v2507 = vsub.f32 0.0, %v2379
    %v2508 = vsub.f32 0.0, %v2380
    %v2509 = vsub.f32 0.0, %v2381
    %v2510 = vsub.f32 0.0, %v2382
    %v2511 = vsub.f32 0.0, %v2383
    %v2512 = vsub.f32 0.0, %v2384
    %v2513 = vsub.f32 0.0, %v2385
    %v2514 = vsub.f32 0.0, %v2386
    %v2515 = vsub.f32 0.0, %v2387
    %v2516 = vsub.f32 0.0, %v2388
    %v2517 = vsub.f32 0.0, %v2389
    %v2518 = vsub.f32 0.0, %v2390
    %v2519 = vsub.f32 0.0, %v2391
    %v2520 = vsub.f32 0.0, %v2392
    %v2521 = vsub.f32 0.0, %v2393
    %v2522 = vsub.f32 0.0, %v2394
    %v2523 = vsub.f32 0.0, %v2395
    %v2524 = vsub.f32 0.0, %v2396
    %v2525 = vsub.f32 0.0, %v2397
    %v2526 = vsub.f32 0.0, %v2398
    %v2527 = vsub.f32 0.0, %v2399
    %v2528 = vsub.f32 0.0, %v2400
    %v2529 = vsub.f32 0.0, %v2401
    %v2530 = vsub.f32 0.0, %v2402
    %v2531 = vsub.f32 0.0, %v2403
    %v2532 = vsub.f32 0.0, %v2404
    %v2533 = vsub.f32 0.0, %v2405
    %v2534 = vsub.f32 0.0, %v2406
    %v2535 = vsub.f32 0.0, %v2407
    %v2536 = vsub.f32 0.0, %v2408
    %v2537 = vsub.f32 0.0, %v2409
    %v2538 = vsub.f32 0.0, %v2410
    %v2539 = vsub.f32 0.0, %v2411
    %v2540 = vsub.f32 0.0, %v2412
    %v2541 = vsub.f32 0.0, %v2413
    %v2542 = vsub.f32 0.0, %v2414
    %v2543 = vsub.f32 0.0, %v2415
    %v2544 = vsub.f32 0.0, %v2416
    %v2545 = vsub.f32 0.0, %v2417
    %v2546 = vsub.f32 0.0, %v2418
    %v2547 = vsub.f32 0.0, %v2419
    %v2548 = vsub.f32 0.0, %v2420
    %v2549 = vsub.f32 0.0, %v2421
    %v2550 = vsub.f32 0.0, %v2422
    %v2551 = vsub.f32 0.0, %v2423
    %v2552 = vsub.f32 0.0, %v2424
    %v2553 = vsub.f32 0.0, %v2425
    %v2554 = vsub.f32 0.0, %v2426
    %v2555 = vsub.f32 0.0, %v2427
    %v2556 = vsub.f32 0.0, %v2428
    %v2557 = vsub.f32 0.0, %v2429
    %v2558 = vsub.f32 0.0, %v2430
    %v2559 = vsub.f32 0.0, %v2431
    %v2560 = vsub.f32 0.0, %v2432
    %v2561 = vsub.f32 0.0, %v2433
    %v2562 = vsub.f32 0.0, %v2434
    %v2563 = vsub.f32 0.0, %v2435
    %v2564 = vsub.f32 0.0, %v2436
    %v2565 = vsub.f32 0.0, %v2437
    %v2566 = vsub.f32 0.0, %v2438
    %v2567 = vsub.f32 0.0, %v2439
    %v2568 = vsub.f32 0.0, %v2440
    %v2569 = vsub.f32 0.0, %v2441
    %v2570 = vsub.f32 0.0, %v2442
    %v2571 = vsub.f32 0.0, %v2443
    %v2572 = vsub.f32 0.0, %v2444
    %v2573 = vsub.f32 0.0, %v2445
    %v2574 = vsub.f32 0.0, %v2446
    %v2575 = vsub.f32 0.0, %v2447
    %v2576 = vsub.f32 0.0, %v2448
    %v2577 = vsub.f32 0.0, %v2449
    %v2578 = vsub.f32 0.0, %v2450
    %v2579 = vsub.f32 0.0, %v2451
    %v2580 = vsub.f32 0.0, %v2452
    %v2581 = vsub.f32 0.0, %v2453
    %v2582 = vsub.f32 0.0, %v2454
    %v2583 = vsub.f32 0.0, %v2455
    %v2584 = vsub.f32 0.0, %v2456
    %v2585 = vsub.f32 0.0, %v2457
    %v2586 = vsub.f32 0.0, %v2458
    %v2587 = vsub.f32 0.0, %v2459
    %v2588 = vsub.f32 0.0, %v2460
    %v2589 = vsub.f32 0.0, %v2461
    %v2590 = vsub.f32 0.0, %v2462
    %v2591 = vsub.f32 0.0, %v2463
    %v2592 = vsub.f32 0.0, %v2464
    %v2593 = vsub.f32 0.0, %v2465
    %v2594 = vsub.f32 0.0, %v2466
    %v2595 = vsub.f32 0.0, %v2467
    %v2596 = vsub.f32 0.0, %v2468
    %v2597 = vsub.f32 0.0, %v2469
    %v2598 = vsub.f32 0.0, %v2470
    %v2599 = vsub.f32 0.0, %v2471
    %v2600 = vsub.f32 0.0, %v2472
    %v2601 = vsub.f32 0.0, %v2473
    %v2602 = vsub.f32 0.0, %v2474
    %v2603 = vsub.f32 0.0, %v2475
    %v2604 = vsub.f32 0.0, %v2476
    %v2605 = vsub.f32 0.0, %v2477
    %v2606 = vsub.f32 0.0, %v2478
    %v2607 = vsub.f32 0.0, %v2479
    %v2608 = vsub.f32 0.0, %v2480
    %v2609 = vsub.f32 0.0, %v2481
    %v2610 = vsub.f32 0.0, %v2482
    %v2611 = vsub.f32 0.0, %v2483
    %v2612 = vsub.f32 0.0, %v2484
    %v2613 = vsub.f32 0.0, %v2485
    %v2614 = vsub.f32 0.0, %v2486
    %v2615 = vsub.f32 0.0, %v2487
    %v2616 = vsub.f32 0.0, %v2488
    %v2617 = vmul.f32 %v2489, 1.442695
    %v2618 = vpow.pop %v2617
    %v2619 = vmul.f32 %v2490, 1.442695
    %v2620 = vpow.pop %v2619
    %v2621 = vmul.f32 %v2491, 1.442695
    %v2622 = vpow.pop %v2621
    %v2623 = vmul.f32 %v2492, 1.442695
    %v2624 = vpow.pop %v2623
    %v2625 = vmul.f32 %v2493, 1.442695
    %v2626 = vpow.pop %v2625
    %v2627 = vmul.f32 %v2494, 1.442695
    %v2628 = vpow.pop %v2627
    %v2629 = vmul.f32 %v2495, 1.442695
    %v2630 = vpow.pop %v2629
    %v2631 = vmul.f32 %v2496, 1.442695
    %v2632 = vpow.pop %v2631
    %v2633 = vmul.f32 %v2497, 1.442695
    %v2634 = vpow.pop %v2633
    %v2635 = vmul.f32 %v2498, 1.442695
    %v2636 = vpow.pop %v2635
    %v2637 = vmul.f32 %v2499, 1.442695
    %v2638 = vpow.pop %v2637
    %v2639 = vmul.f32 %v2500, 1.442695
    %v2640 = vpow.pop %v2639
    %v2641 = vmul.f32 %v2501, 1.442695
    %v2642 = vpow.pop %v2641
    %v2643 = vmul.f32 %v2502, 1.442695
    %v2644 = vpow.pop %v2643
    %v2645 = vmul.f32 %v2503, 1.442695
    %v2646 = vpow.pop %v2645
    %v2647 = vmul.f32 %v2504, 1.442695
    %v2648 = vpow.pop %v2647
    %v2649 = vmul.f32 %v2505, 1.442695
    %v2650 = vpow.pop %v2649
    %v2651 = vmul.f32 %v2506, 1.442695
    %v2652 = vpow.pop %v2651
    %v2653 = vmul.f32 %v2507, 1.442695
    %v2654 = vpow.pop %v2653
    %v2655 = vmul.f32 %v2508, 1.442695
    %v2656 = vpow.pop %v2655
    %v2657 = vmul.f32 %v2509, 1.442695
    %v2658 = vpow.pop %v2657
    %v2659 = vmul.f32 %v2510, 1.442695
    %v2660 = vpow.pop %v2659
    %v2661 = vmul.f32 %v2511, 1.442695
    %v2662 = vpow.pop %v2661
    %v2663 = vmul.f32 %v2512, 1.442695
    %v2664 = vpow.pop %v2663
    %v2665 = vmul.f32 %v2513, 1.442695
    %v2666 = vpow.pop %v2665
    %v2667 = vmul.f32 %v2514, 1.442695
    %v2668 = vpow.pop %v2667
    %v2669 = vmul.f32 %v2515, 1.442695
    %v2670 = vpow.pop %v2669
    %v2671 = vmul.f32 %v2516, 1.442695
    %v2672 = vpow.pop %v2671
    %v2673 = vmul.f32 %v2517, 1.442695
    %v2674 = vpow.pop %v2673
    %v2675 = vmul.f32 %v2518, 1.442695
    %v2676 = vpow.pop %v2675
    %v2677 = vmul.f32 %v2519, 1.442695
    %v2678 = vpow.pop %v2677
    %v2679 = vmul.f32 %v2520, 1.442695
    %v2680 = vpow.pop %v2679
    %v2681 = vmul.f32 %v2521, 1.442695
    %v2682 = vpow.pop %v2681
    %v2683 = vmul.f32 %v2522, 1.442695
    %v2684 = vpow.pop %v2683
    %v2685 = vmul.f32 %v2523, 1.442695
    %v2686 = vpow.pop %v2685
    %v2687 = vmul.f32 %v2524, 1.442695
    %v2688 = vpow.pop %v2687
    %v2689 = vmul.f32 %v2525, 1.442695
    %v2690 = vpow.pop %v2689
    %v2691 = vmul.f32 %v2526, 1.442695
    %v2692 = vpow.pop %v2691
    %v2693 = vmul.f32 %v2527, 1.442695
    %v2694 = vpow.pop %v2693
    %v2695 = vmul.f32 %v2528, 1.442695
    %v2696 = vpow.pop %v2695
    %v2697 = vmul.f32 %v2529, 1.442695
    %v2698 = vpow.pop %v2697
    %v2699 = vmul.f32 %v2530, 1.442695
    %v2700 = vpow.pop %v2699
    %v2701 = vmul.f32 %v2531, 1.442695
    %v2702 = vpow.pop %v2701
    %v2703 = vmul.f32 %v2532, 1.442695
    %v2704 = vpow.pop %v2703
    %v2705 = vmul.f32 %v2533, 1.442695
    %v2706 = vpow.pop %v2705
    %v2707 = vmul.f32 %v2534, 1.442695
    %v2708 = vpow.pop %v2707
    %v2709 = vmul.f32 %v2535, 1.442695
    %v2710 = vpow.pop %v2709
    %v2711 = vmul.f32 %v2536, 1.442695
    %v2712 = vpow.pop %v2711
    %v2713 = vmul.f32 %v2537, 1.442695
    %v2714 = vpow.pop %v2713
    %v2715 = vmul.f32 %v2538, 1.442695
    %v2716 = vpow.pop %v2715
    %v2717 = vmul.f32 %v2539, 1.442695
    %v2718 = vpow.pop %v2717
    %v2719 = vmul.f32 %v2540, 1.442695
    %v2720 = vpow.pop %v2719
    %v2721 = vmul.f32 %v2541, 1.442695
    %v2722 = vpow.pop %v2721
    %v2723 = vmul.f32 %v2542, 1.442695
    %v2724 = vpow.pop %v2723
    %v2725 = vmul.f32 %v2543, 1.442695
    %v2726 = vpow.pop %v2725
    %v2727 = vmul.f32 %v2544, 1.442695
    %v2728 = vpow.pop %v2727
    %v2729 = vmul.f32 %v2545, 1.442695
    %v2730 = vpow.pop %v2729
    %v2731 = vmul.f32 %v2546, 1.442695
    %v2732 = vpow.pop %v2731
    %v2733 = vmul.f32 %v2547, 1.442695
    %v2734 = vpow.pop %v2733
    %v2735 = vmul.f32 %v2548, 1.442695
    %v2736 = vpow.pop %v2735
    %v2737 = vmul.f32 %v2549, 1.442695
    %v2738 = vpow.pop %v2737
    %v2739 = vmul.f32 %v2550, 1.442695
    %v2740 = vpow.pop %v2739
    %v2741 = vmul.f32 %v2551, 1.442695
    %v2742 = vpow.pop %v2741
    %v2743 = vmul.f32 %v2552, 1.442695
    %v2744 = vpow.pop %v2743
    %v2745 = vmul.f32 %v2553, 1.442695
    %v2746 = vpow.pop %v2745
    %v2747 = vmul.f32 %v2554, 1.442695
    %v2748 = vpow.pop %v2747
    %v2749 = vmul.f32 %v2555, 1.442695
    %v2750 = vpow.pop %v2749
    %v2751 = vmul.f32 %v2556, 1.442695
    %v2752 = vpow.pop %v2751
    %v2753 = vmul.f32 %v2557, 1.442695
    %v2754 = vpow.pop %v2753
    %v2755 = vmul.f32 %v2558, 1.442695
    %v2756 = vpow.pop %v2755
    %v2757 = vmul.f32 %v2559, 1.442695
    %v2758 = vpow.pop %v2757
    %v2759 = vmul.f32 %v2560, 1.442695
    %v2760 = vpow.pop %v2759
    %v2761 = vmul.f32 %v2561, 1.442695
    %v2762 = vpow.pop %v2761
    %v2763 = vmul.f32 %v2562, 1.442695
    %v2764 = vpow.pop %v2763
    %v2765 = vmul.f32 %v2563, 1.442695
    %v2766 = vpow.pop %v2765
    %v2767 = vmul.f32 %v2564, 1.442695
    %v2768 = vpow.pop %v2767
    %v2769 = vmul.f32 %v2565, 1.442695
    %v2770 = vpow.pop %v2769
    %v2771 = vmul.f32 %v2566, 1.442695
    %v2772 = vpow.pop %v2771
    %v2773 = vmul.f32 %v2567, 1.442695
    %v2774 = vpow.pop %v2773
    %v2775 = vmul.f32 %v2568, 1.442695
    %v2776 = vpow.pop %v2775
    %v2777 = vmul.f32 %v2569, 1.442695
    %v2778 = vpow.pop %v2777
    %v2779 = vmul.f32 %v2570, 1.442695
    %v2780 = vpow.pop %v2779
    %v2781 = vmul.f32 %v2571, 1.442695
    %v2782 = vpow.pop %v2781
    %v2783 = vmul.f32 %v2572, 1.442695
    %v2784 = vpow.pop %v2783
    %v2785 = vmul.f32 %v2573, 1.442695
    %v2786 = vpow.pop %v2785
    %v2787 = vmul.f32 %v2574, 1.442695
    %v2788 = vpow.pop %v2787
    %v2789 = vmul.f32 %v2575, 1.442695
    %v2790 = vpow.pop %v2789
    %v2791 = vmul.f32 %v2576, 1.442695
    %v2792 = vpow.pop %v2791
    %v2793 = vmul.f32 %v2577, 1.442695
    %v2794 = vpow.pop %v2793
    %v2795 = vmul.f32 %v2578, 1.442695
    %v2796 = vpow.pop %v2795
    %v2797 = vmul.f32 %v2579, 1.442695
    %v2798 = vpow.pop %v2797
    %v2799 = vmul.f32 %v2580, 1.442695
    %v2800 = vpow.pop %v2799
    %v2801 = vmul.f32 %v2581, 1.442695
    %v2802 = vpow.pop %v2801
    %v2803 = vmul.f32 %v2582, 1.442695
    %v2804 = vpow.pop %v2803
    %v2805 = vmul.f32 %v2583, 1.442695
    %v2806 = vpow.pop %v2805
    %v2807 = vmul.f32 %v2584, 1.442695
    %v2808 = vpow.pop %v2807
    %v2809 = vmul.f32 %v2585, 1.442695
    %v2810 = vpow.pop %v2809
    %v2811 = vmul.f32 %v2586, 1.442695
    %v2812 = vpow.pop %v2811
    %v2813 = vmul.f32 %v2587, 1.442695
    %v2814 = vpow.pop %v2813
    %v2815 = vmul.f32 %v2588, 1.442695
    %v2816 = vpow.pop %v2815
    %v2817 = vmul.f32 %v2589, 1.442695
    %v2818 = vpow.pop %v2817
    %v2819 = vmul.f32 %v2590, 1.442695
    %v2820 = vpow.pop %v2819
    %v2821 = vmul.f32 %v2591, 1.442695
    %v2822 = vpow.pop %v2821
    %v2823 = vmul.f32 %v2592, 1.442695
    %v2824 = vpow.pop %v2823
    %v2825 = vmul.f32 %v2593, 1.442695
    %v2826 = vpow.pop %v2825
    %v2827 = vmul.f32 %v2594, 1.442695
    %v2828 = vpow.pop %v2827
    %v2829 = vmul.f32 %v2595, 1.442695
    %v2830 = vpow.pop %v2829
    %v2831 = vmul.f32 %v2596, 1.442695
    %v2832 = vpow.pop %v2831
    %v2833 = vmul.f32 %v2597, 1.442695
    %v2834 = vpow.pop %v2833
    %v2835 = vmul.f32 %v2598, 1.442695
    %v2836 = vpow.pop %v2835
    %v2837 = vmul.f32 %v2599, 1.442695
    %v2838 = vpow.pop %v2837
    %v2839 = vmul.f32 %v2600, 1.442695
    %v2840 = vpow.pop %v2839
    %v2841 = vmul.f32 %v2601, 1.442695
    %v2842 = vpow.pop %v2841
    %v2843 = vmul.f32 %v2602, 1.442695
    %v2844 = vpow.pop %v2843
    %v2845 = vmul.f32 %v2603, 1.442695
    %v2846 = vpow.pop %v2845
    %v2847 = vmul.f32 %v2604, 1.442695
    %v2848 = vpow.pop %v2847
    %v2849 = vmul.f32 %v2605, 1.442695
    %v2850 = vpow.pop %v2849
    %v2851 = vmul.f32 %v2606, 1.442695
    %v2852 = vpow.pop %v2851
    %v2853 = vmul.f32 %v2607, 1.442695
    %v2854 = vpow.pop %v2853
    %v2855 = vmul.f32 %v2608, 1.442695
    %v2856 = vpow.pop %v2855
    %v2857 = vmul.f32 %v2609, 1.442695
    %v2858 = vpow.pop %v2857
    %v2859 = vmul.f32 %v2610, 1.442695
    %v2860 = vpow.pop %v2859
    %v2861 = vmul.f32 %v2611, 1.442695
    %v2862 = vpow.pop %v2861
    %v2863 = vmul.f32 %v2612, 1.442695
    %v2864 = vpow.pop %v2863
    %v2865 = vmul.f32 %v2613, 1.442695
    %v2866 = vpow.pop %v2865
    %v2867 = vmul.f32 %v2614, 1.442695
    %v2868 = vpow.pop %v2867
    %v2869 = vmul.f32 %v2615, 1.442695
    %v2870 = vpow.pop %v2869
    %v2871 = vmul.f32 %v2616, 1.442695
    %v2872 = vpow.pop %v2871
    %v2873 = vadd.f32 %v2618, 1.0
    %v2874 = vadd.f32 %v2620, 1.0
    %v2875 = vadd.f32 %v2622, 1.0
    %v2876 = vadd.f32 %v2624, 1.0
    %v2877 = vadd.f32 %v2626, 1.0
    %v2878 = vadd.f32 %v2628, 1.0
    %v2879 = vadd.f32 %v2630, 1.0
    %v2880 = vadd.f32 %v2632, 1.0
    %v2881 = vadd.f32 %v2634, 1.0
    %v2882 = vadd.f32 %v2636, 1.0
    %v2883 = vadd.f32 %v2638, 1.0
    %v2884 = vadd.f32 %v2640, 1.0
    %v2885 = vadd.f32 %v2642, 1.0
    %v2886 = vadd.f32 %v2644, 1.0
    %v2887 = vadd.f32 %v2646, 1.0
    %v2888 = vadd.f32 %v2648, 1.0
    %v2889 = vadd.f32 %v2650, 1.0
    %v2890 = vadd.f32 %v2652, 1.0
    %v2891 = vadd.f32 %v2654, 1.0
    %v2892 = vadd.f32 %v2656, 1.0
    %v2893 = vadd.f32 %v2658, 1.0
    %v2894 = vadd.f32 %v2660, 1.0
    %v2895 = vadd.f32 %v2662, 1.0
    %v2896 = vadd.f32 %v2664, 1.0
    %v2897 = vadd.f32 %v2666, 1.0
    %v2898 = vadd.f32 %v2668, 1.0
    %v2899 = vadd.f32 %v2670, 1.0
    %v2900 = vadd.f32 %v2672, 1.0
    %v2901 = vadd.f32 %v2674, 1.0
    %v2902 = vadd.f32 %v2676, 1.0
    %v2903 = vadd.f32 %v2678, 1.0
    %v2904 = vadd.f32 %v2680, 1.0
    %v2905 = vadd.f32 %v2682, 1.0
    %v2906 = vadd.f32 %v2684, 1.0
    %v2907 = vadd.f32 %v2686, 1.0
    %v2908 = vadd.f32 %v2688, 1.0
    %v2909 = vadd.f32 %v2690, 1.0
    %v2910 = vadd.f32 %v2692, 1.0
    %v2911 = vadd.f32 %v2694, 1.0
    %v2912 = vadd.f32 %v2696, 1.0
    %v2913 = vadd.f32 %v2698, 1.0
    %v2914 = vadd.f32 %v2700, 1.0
    %v2915 = vadd.f32 %v2702, 1.0
    %v2916 = vadd.f32 %v2704, 1.0
    %v2917 = vadd.f32 %v2706, 1.0
    %v2918 = vadd.f32 %v2708, 1.0
    %v2919 = vadd.f32 %v2710, 1.0
    %v2920 = vadd.f32 %v2712, 1.0
    %v2921 = vadd.f32 %v2714, 1.0
    %v2922 = vadd.f32 %v2716, 1.0
    %v2923 = vadd.f32 %v2718, 1.0
    %v2924 = vadd.f32 %v2720, 1.0
    %v2925 = vadd.f32 %v2722, 1.0
    %v2926 = vadd.f32 %v2724, 1.0
    %v2927 = vadd.f32 %v2726, 1.0
    %v2928 = vadd.f32 %v2728, 1.0
    %v2929 = vadd.f32 %v2730, 1.0
    %v2930 = vadd.f32 %v2732, 1.0
    %v2931 = vadd.f32 %v2734, 1.0
    %v2932 = vadd.f32 %v2736, 1.0
    %v2933 = vadd.f32 %v2738, 1.0
    %v2934 = vadd.f32 %v2740, 1.0
    %v2935 = vadd.f32 %v2742, 1.0
    %v2936 = vadd.f32 %v2744, 1.0
    %v2937 = vadd.f32 %v2746, 1.0
    %v2938 = vadd.f32 %v2748, 1.0
    %v2939 = vadd.f32 %v2750, 1.0
    %v2940 = vadd.f32 %v2752, 1.0
    %v2941 = vadd.f32 %v2754, 1.0
    %v2942 = vadd.f32 %v2756, 1.0
    %v2943 = vadd.f32 %v2758, 1.0
    %v2944 = vadd.f32 %v2760, 1.0
    %v2945 = vadd.f32 %v2762, 1.0
    %v2946 = vadd.f32 %v2764, 1.0
    %v2947 = vadd.f32 %v2766, 1.0
    %v2948 = vadd.f32 %v2768, 1.0
    %v2949 = vadd.f32 %v2770, 1.0
    %v2950 = vadd.f32 %v2772, 1.0
    %v2951 = vadd.f32 %v2774, 1.0
    %v2952 = vadd.f32 %v2776, 1.0
    %v2953 = vadd.f32 %v2778, 1.0
    %v2954 = vadd.f32 %v2780, 1.0
    %v2955 = vadd.f32 %v2782, 1.0
    %v2956 = vadd.f32 %v2784, 1.0
    %v2957 = vadd.f32 %v2786, 1.0
    %v2958 = vadd.f32 %v2788, 1.0
    %v2959 = vadd.f32 %v2790, 1.0
    %v2960 = vadd.f32 %v2792, 1.0
    %v2961 = vadd.f32 %v2794, 1.0
    %v2962 = vadd.f32 %v2796, 1.0
    %v2963 = vadd.f32 %v2798, 1.0
    %v2964 = vadd.f32 %v2800, 1.0
    %v2965 = vadd.f32 %v2802, 1.0
    %v2966 = vadd.f32 %v2804, 1.0
    %v2967 = vadd.f32 %v2806, 1.0
    %v2968 = vadd.f32 %v2808, 1.0
    %v2969 = vadd.f32 %v2810, 1.0
    %v2970 = vadd.f32 %v2812, 1.0
    %v2971 = vadd.f32 %v2814, 1.0
    %v2972 = vadd.f32 %v2816, 1.0
    %v2973 = vadd.f32 %v2818, 1.0
    %v2974 = vadd.f32 %v2820, 1.0
    %v2975 = vadd.f32 %v2822, 1.0
    %v2976 = vadd.f32 %v2824, 1.0
    %v2977 = vadd.f32 %v2826, 1.0
    %v2978 = vadd.f32 %v2828, 1.0
    %v2979 = vadd.f32 %v2830, 1.0
    %v2980 = vadd.f32 %v2832, 1.0
    %v2981 = vadd.f32 %v2834, 1.0
    %v2982 = vadd.f32 %v2836, 1.0
    %v2983 = vadd.f32 %v2838, 1.0
    %v2984 = vadd.f32 %v2840, 1.0
    %v2985 = vadd.f32 %v2842, 1.0
    %v2986 = vadd.f32 %v2844, 1.0
    %v2987 = vadd.f32 %v2846, 1.0
    %v2988 = vadd.f32 %v2848, 1.0
    %v2989 = vadd.f32 %v2850, 1.0
    %v2990 = vadd.f32 %v2852, 1.0
    %v2991 = vadd.f32 %v2854, 1.0
    %v2992 = vadd.f32 %v2856, 1.0
    %v2993 = vadd.f32 %v2858, 1.0
    %v2994 = vadd.f32 %v2860, 1.0
    %v2995 = vadd.f32 %v2862, 1.0
    %v2996 = vadd.f32 %v2864, 1.0
    %v2997 = vadd.f32 %v2866, 1.0
    %v2998 = vadd.f32 %v2868, 1.0
    %v2999 = vadd.f32 %v2870, 1.0
    %v3000 = vadd.f32 %v2872, 1.0
    %v3001 = vrcp.pop %v2873
    %v3002 = vrcp.pop %v2874
    %v3003 = vrcp.pop %v2875
    %v3004 = vrcp.pop %v2876
    %v3005 = vrcp.pop %v2877
    %v3006 = vrcp.pop %v2878
    %v3007 = vrcp.pop %v2879
    %v3008 = vrcp.pop %v2880
    %v3009 = vrcp.pop %v2881
    %v3010 = vrcp.pop %v2882
    %v3011 = vrcp.pop %v2883
    %v3012 = vrcp.pop %v2884
    %v3013 = vrcp.pop %v2885
    %v3014 = vrcp.pop %v2886
    %v3015 = vrcp.pop %v2887
    %v3016 = vrcp.pop %v2888
    %v3017 = vrcp.pop %v2889
    %v3018 = vrcp.pop %v2890
    %v3019 = vrcp.pop %v2891
    %v3020 = vrcp.pop %v2892
    %v3021 = vrcp.pop %v2893
    %v3022 = vrcp.pop %v2894
    %v3023 = vrcp.pop %v2895
    %v3024 = vrcp.pop %v2896
    %v3025 = vrcp.pop %v2897
    %v3026 = vrcp.pop %v2898
    %v3027 = vrcp.pop %v2899
    %v3028 = vrcp.pop %v2900
    %v3029 = vrcp.pop %v2901
    %v3030 = vrcp.pop %v2902
    %v3031 = vrcp.pop %v2903
    %v3032 = vrcp.pop %v2904
    %v3033 = vrcp.pop %v2905
    %v3034 = vrcp.pop %v2906
    %v3035 = vrcp.pop %v2907
    %v3036 = vrcp.pop %v2908
    %v3037 = vrcp.pop %v2909
    %v3038 = vrcp.pop %v2910
    %v3039 = vrcp.pop %v2911
    %v3040 = vrcp.pop %v2912
    %v3041 = vrcp.pop %v2913
    %v3042 = vrcp.pop %v2914
    %v3043 = vrcp.pop %v2915
    %v3044 = vrcp.pop %v2916
    %v3045 = vrcp.pop %v2917
    %v3046 = vrcp.pop %v2918
    %v3047 = vrcp.pop %v2919
    %v3048 = vrcp.pop %v2920
    %v3049 = vrcp.pop %v2921
    %v3050 = vrcp.pop %v2922
    %v3051 = vrcp.pop %v2923
    %v3052 = vrcp.pop %v2924
    %v3053 = vrcp.pop %v2925
    %v3054 = vrcp.pop %v2926
    %v3055 = vrcp.pop %v2927
    %v3056 = vrcp.pop %v2928
    %v3057 = vrcp.pop %v2929
    %v3058 = vrcp.pop %v2930
    %v3059 = vrcp.pop %v2931
    %v3060 = vrcp.pop %v2932
    %v3061 = vrcp.pop %v2933
    %v3062 = vrcp.pop %v2934
    %v3063 = vrcp.pop %v2935
    %v3064 = vrcp.pop %v2936
    %v3065 = vrcp.pop %v2937
    %v3066 = vrcp.pop %v2938
    %v3067 = vrcp.pop %v2939
    %v3068 = vrcp.pop %v2940
    %v3069 = vrcp.pop %v2941
    %v3070 = vrcp.pop %v2942
    %v3071 = vrcp.pop %v2943
    %v3072 = vrcp.pop %v2944
    %v3073 = vrcp.pop %v2945
    %v3074 = vrcp.pop %v2946
    %v3075 = vrcp.pop %v2947
    %v3076 = vrcp.pop %v2948
    %v3077 = vrcp.pop %v2949
    %v3078 = vrcp.pop %v2950
    %v3079 = vrcp.pop %v2951
    %v3080 = vrcp.pop %v2952
    %v3081 = vrcp.pop %v2953
    %v3082 = vrcp.pop %v2954
    %v3083 = vrcp.pop %v2955
    %v3084 = vrcp.pop %v2956
    %v3085 = vrcp.pop %v2957
    %v3086 = vrcp.pop %v2958
    %v3087 = vrcp.pop %v2959
    %v3088 = vrcp.pop %v2960
    %v3089 = vrcp.pop %v2961
    %v3090 = vrcp.pop %v2962
    %v3091 = vrcp.pop %v2963
    %v3092 = vrcp.pop %v2964
    %v3093 = vrcp.pop %v2965
    %v3094 = vrcp.pop %v2966
    %v3095 = vrcp.pop %v2967
    %v3096 = vrcp.pop %v2968
    %v3097 = vrcp.pop %v2969
    %v3098 = vrcp.pop %v2970
    %v3099 = vrcp.pop %v2971
    %v3100 = vrcp.pop %v2972
    %v3101 = vrcp.pop %v2973
    %v3102 = vrcp.pop %v2974
    %v3103 = vrcp.pop %v2975
    %v3104 = vrcp.pop %v2976
    %v3105 = vrcp.pop %v2977
    %v3106 = vrcp.pop %v2978
    %v3107 = vrcp.pop %v2979
    %v3108 = vrcp.pop %v2980
    %v3109 = vrcp.pop %v2981
    %v3110 = vrcp.pop %v2982
    %v3111 = vrcp.pop %v2983
    %v3112 = vrcp.pop %v2984
    %v3113 = vrcp.pop %v2985
    %v3114 = vrcp.pop %v2986
    %v3115 = vrcp.pop %v2987
    %v3116 = vrcp.pop %v2988
    %v3117 = vrcp.pop %v2989
    %v3118 = vrcp.pop %v2990
    %v3119 = vrcp.pop %v2991
    %v3120 = vrcp.pop %v2992
    %v3121 = vrcp.pop %v2993
    %v3122 = vrcp.pop %v2994
    %v3123 = vrcp.pop %v2995
    %v3124 = vrcp.pop %v2996
    %v3125 = vrcp.pop %v2997
    %v3126 = vrcp.pop %v2998
    %v3127 = vrcp.pop %v2999
    %v3128 = vrcp.pop %v3000
    %v3257 = vlaneseq
    %v3258 = vand.u32 %v3257, 127
    %v3259 = vlaneseq
    %v3260 = vshrl.u32 %v3259, 7
    %v3261 = vsub.s32 %v3258, %v3260
    %v3262 = vrot.slane %v3001, %v3261
    %v3263 = vadd.s32 %v3258, 4294967288
    %v3264 = vlaneseq
    %v3265 = vshrl.u32 %v3264, 7
    %v3266 = vsub.s32 %v3263, %v3265
    %v3267 = vrot.slane %v3002, %v3266
    %vm3268 = vcmask 130112
    %v3269 = vsel %vm3268, %v3267, %v3262
    %v3270 = vadd.s32 %v3258, 4294967280
    %v3271 = vlaneseq
    %v3272 = vshrl.u32 %v3271, 7
    %v3273 = vsub.s32 %v3270, %v3272
    %v3274 = vrot.slane %v3003, %v3273
    %vm3275 = vcmask 195712
    %v3276 = vsel %vm3275, %v3274, %v3269
    %v3277 = vadd.s32 %v3258, 4294967272
    %v3278 = vlaneseq
    %v3279 = vshrl.u32 %v3278, 7
    %v3280 = vsub.s32 %v3277, %v3279
    %v3281 = vrot.slane %v3004, %v3280
    %vm3282 = vcmask 261312
    %v3283 = vsel %vm3282, %v3281, %v3276
    %v3284 = vadd.s32 %v3258, 4294967264
    %v3285 = vlaneseq
    %v3286 = vshrl.u32 %v3285, 7
    %v3287 = vsub.s32 %v3284, %v3286
    %v3288 = vrot.slane %v3005, %v3287
    %vm3289 = vcmask 326912
    %v3290 = vsel %vm3289, %v3288, %v3283
    %v3291 = vadd.s32 %v3258, 4294967256
    %v3292 = vlaneseq
    %v3293 = vshrl.u32 %v3292, 7
    %v3294 = vsub.s32 %v3291, %v3293
    %v3295 = vrot.slane %v3006, %v3294
    %vm3296 = vcmask 392512
    %v3297 = vsel %vm3296, %v3295, %v3290
    %v3298 = vadd.s32 %v3258, 4294967248
    %v3299 = vlaneseq
    %v3300 = vshrl.u32 %v3299, 7
    %v3301 = vsub.s32 %v3298, %v3300
    %v3302 = vrot.slane %v3007, %v3301
    %vm3303 = vcmask 458112
    %v3304 = vsel %vm3303, %v3302, %v3297
    %v3305 = vadd.s32 %v3258, 4294967240
    %v3306 = vlaneseq
    %v3307 = vshrl.u32 %v3306, 7
    %v3308 = vsub.s32 %v3305, %v3307
    %v3309 = vrot.slane %v3008, %v3308
    %vm3310 = vcmask 523712
    %v3311 = vsel %vm3310, %v3309, %v3304
    %v3312 = vadd.s32 %v3258, 4294967232
    %v3313 = vlaneseq
    %v3314 = vshrl.u32 %v3313, 7
    %v3315 = vsub.s32 %v3312, %v3314
    %v3316 = vrot.slane %v3009, %v3315
    %vm3317 = vcmask 589312
    %v3318 = vsel %vm3317, %v3316, %v3311
    %v3319 = vadd.s32 %v3258, 4294967224
    %v3320 = vlaneseq
    %v3321 = vshrl.u32 %v3320, 7
    %v3322 = vsub.s32 %v3319, %v3321
    %v3323 = vrot.slane %v3010, %v3322
    %vm3324 = vcmask 654912
    %v3325 = vsel %vm3324, %v3323, %v3318
    %v3326 = vadd.s32 %v3258, 4294967216
    %v3327 = vlaneseq
    %v3328 = vshrl.u32 %v3327, 7
    %v3329 = vsub.s32 %v3326, %v3328
    %v3330 = vrot.slane %v3011, %v3329
    %vm3331 = vcmask 720512
    %v3332 = vsel %vm3331, %v3330, %v3325
    %v3333 = vadd.s32 %v3258, 4294967208
    %v3334 = vlaneseq
    %v3335 = vshrl.u32 %v3334, 7
    %v3336 = vsub.s32 %v3333, %v3335
    %v3337 = vrot.slane %v3012, %v3336
    %vm3338 = vcmask 786112
    %v3339 = vsel %vm3338, %v3337, %v3332
    %v3340 = vadd.s32 %v3258, 4294967200
    %v3341 = vlaneseq
    %v3342 = vshrl.u32 %v3341, 7
    %v3343 = vsub.s32 %v3340, %v3342
    %v3344 = vrot.slane %v3013, %v3343
    %vm3345 = vcmask 851712
    %v3346 = vsel %vm3345, %v3344, %v3339
    %v3347 = vadd.s32 %v3258, 4294967192
    %v3348 = vlaneseq
    %v3349 = vshrl.u32 %v3348, 7
    %v3350 = vsub.s32 %v3347, %v3349
    %v3351 = vrot.slane %v3014, %v3350
    %vm3352 = vcmask 917312
    %v3353 = vsel %vm3352, %v3351, %v3346
    %v3354 = vadd.s32 %v3258, 4294967184
    %v3355 = vlaneseq
    %v3356 = vshrl.u32 %v3355, 7
    %v3357 = vsub.s32 %v3354, %v3356
    %v3358 = vrot.slane %v3015, %v3357
    %vm3359 = vcmask 982912
    %v3360 = vsel %vm3359, %v3358, %v3353
    %v3361 = vadd.s32 %v3258, 4294967176
    %v3362 = vlaneseq
    %v3363 = vshrl.u32 %v3362, 7
    %v3364 = vsub.s32 %v3361, %v3363
    %v3365 = vrot.slane %v3016, %v3364
    %vm3366 = vcmask 1048512
    %v3367 = vsel %vm3366, %v3365, %v3360
    %v3368 = vlaneseq
    %v3369 = vshrl.u32 %v3368, 7
    %v3370 = vsub.s32 %v3258, %v3369
    %v3371 = vrot.slane %v3017, %v3370
    %v3372 = vlaneseq
    %v3373 = vshrl.u32 %v3372, 7
    %v3374 = vsub.s32 %v3263, %v3373
    %v3375 = vrot.slane %v3018, %v3374
    %v3376 = vsel %vm3268, %v3375, %v3371
    %v3377 = vlaneseq
    %v3378 = vshrl.u32 %v3377, 7
    %v3379 = vsub.s32 %v3270, %v3378
    %v3380 = vrot.slane %v3019, %v3379
    %v3381 = vsel %vm3275, %v3380, %v3376
    %v3382 = vlaneseq
    %v3383 = vshrl.u32 %v3382, 7
    %v3384 = vsub.s32 %v3277, %v3383
    %v3385 = vrot.slane %v3020, %v3384
    %v3386 = vsel %vm3282, %v3385, %v3381
    %v3387 = vlaneseq
    %v3388 = vshrl.u32 %v3387, 7
    %v3389 = vsub.s32 %v3284, %v3388
    %v3390 = vrot.slane %v3021, %v3389
    %v3391 = vsel %vm3289, %v3390, %v3386
    %v3392 = vlaneseq
    %v3393 = vshrl.u32 %v3392, 7
    %v3394 = vsub.s32 %v3291, %v3393
    %v3395 = vrot.slane %v3022, %v3394
    %v3396 = vsel %vm3296, %v3395, %v3391
    %v3397 = vlaneseq
    %v3398 = vshrl.u32 %v3397, 7
    %v3399 = vsub.s32 %v3298, %v3398
    %v3400 = vrot.slane %v3023, %v3399
    %v3401 = vsel %vm3303, %v3400, %v3396
    %v3402 = vlaneseq
    %v3403 = vshrl.u32 %v3402, 7
    %v3404 = vsub.s32 %v3305, %v3403
    %v3405 = vrot.slane %v3024, %v3404
    %v3406 = vsel %vm3310, %v3405, %v3401
    %v3407 = vlaneseq
    %v3408 = vshrl.u32 %v3407, 7
    %v3409 = vsub.s32 %v3312, %v3408
    %v3410 = vrot.slane %v3025, %v3409
    %v3411 = vsel %vm3317, %v3410, %v3406
    %v3412 = vlaneseq
    %v3413 = vshrl.u32 %v3412, 7
    %v3414 = vsub.s32 %v3319, %v3413
    %v3415 = vrot.slane %v3026, %v3414
    %v3416 = vsel %vm3324, %v3415, %v3411
    %v3417 = vlaneseq
    %v3418 = vshrl.u32 %v3417, 7
    %v3419 = vsub.s32 %v3326, %v3418
    %v3420 = vrot.slane %v3027, %v3419
    %v3421 = vsel %vm3331, %v3420, %v3416
    %v3422 = vlaneseq
    %v3423 = vshrl.u32 %v3422, 7
    %v3424 = vsub.s32 %v3333, %v3423
    %v3425 = vrot.slane %v3028, %v3424
    %v3426 = vsel %vm3338, %v3425, %v3421
    %v3427 = vlaneseq
    %v3428 = vshrl.u32 %v3427, 7
    %v3429 = vsub.s32 %v3340, %v3428
    %v3430 = vrot.slane %v3029, %v3429
    %v3431 = vsel %vm3345, %v3430, %v3426
    %v3432 = vlaneseq
    %v3433 = vshrl.u32 %v3432, 7
    %v3434 = vsub.s32 %v3347, %v3433
    %v3435 = vrot.slane %v3030, %v3434
    %v3436 = vsel %vm3352, %v3435, %v3431
    %v3437 = vlaneseq
    %v3438 = vshrl.u32 %v3437, 7
    %v3439 = vsub.s32 %v3354, %v3438
    %v3440 = vrot.slane %v3031, %v3439
    %v3441 = vsel %vm3359, %v3440, %v3436
    %v3442 = vlaneseq
    %v3443 = vshrl.u32 %v3442, 7
    %v3444 = vsub.s32 %v3361, %v3443
    %v3445 = vrot.slane %v3032, %v3444
    %v3446 = vsel %vm3366, %v3445, %v3441
    %v3447 = vlaneseq
    %v3448 = vshrl.u32 %v3447, 7
    %v3449 = vsub.s32 %v3258, %v3448
    %v3450 = vrot.slane %v3033, %v3449
    %v3451 = vlaneseq
    %v3452 = vshrl.u32 %v3451, 7
    %v3453 = vsub.s32 %v3263, %v3452
    %v3454 = vrot.slane %v3034, %v3453
    %v3455 = vsel %vm3268, %v3454, %v3450
    %v3456 = vlaneseq
    %v3457 = vshrl.u32 %v3456, 7
    %v3458 = vsub.s32 %v3270, %v3457
    %v3459 = vrot.slane %v3035, %v3458
    %v3460 = vsel %vm3275, %v3459, %v3455
    %v3461 = vlaneseq
    %v3462 = vshrl.u32 %v3461, 7
    %v3463 = vsub.s32 %v3277, %v3462
    %v3464 = vrot.slane %v3036, %v3463
    %v3465 = vsel %vm3282, %v3464, %v3460
    %v3466 = vlaneseq
    %v3467 = vshrl.u32 %v3466, 7
    %v3468 = vsub.s32 %v3284, %v3467
    %v3469 = vrot.slane %v3037, %v3468
    %v3470 = vsel %vm3289, %v3469, %v3465
    %v3471 = vlaneseq
    %v3472 = vshrl.u32 %v3471, 7
    %v3473 = vsub.s32 %v3291, %v3472
    %v3474 = vrot.slane %v3038, %v3473
    %v3475 = vsel %vm3296, %v3474, %v3470
    %v3476 = vlaneseq
    %v3477 = vshrl.u32 %v3476, 7
    %v3478 = vsub.s32 %v3298, %v3477
    %v3479 = vrot.slane %v3039, %v3478
    %v3480 = vsel %vm3303, %v3479, %v3475
    %v3481 = vlaneseq
    %v3482 = vshrl.u32 %v3481, 7
    %v3483 = vsub.s32 %v3305, %v3482
    %v3484 = vrot.slane %v3040, %v3483
    %v3485 = vsel %vm3310, %v3484, %v3480
    %v3486 = vlaneseq
    %v3487 = vshrl.u32 %v3486, 7
    %v3488 = vsub.s32 %v3312, %v3487
    %v3489 = vrot.slane %v3041, %v3488
    %v3490 = vsel %vm3317, %v3489, %v3485
    %v3491 = vlaneseq
    %v3492 = vshrl.u32 %v3491, 7
    %v3493 = vsub.s32 %v3319, %v3492
    %v3494 = vrot.slane %v3042, %v3493
    %v3495 = vsel %vm3324, %v3494, %v3490
    %v3496 = vlaneseq
    %v3497 = vshrl.u32 %v3496, 7
    %v3498 = vsub.s32 %v3326, %v3497
    %v3499 = vrot.slane %v3043, %v3498
    %v3500 = vsel %vm3331, %v3499, %v3495
    %v3501 = vlaneseq
    %v3502 = vshrl.u32 %v3501, 7
    %v3503 = vsub.s32 %v3333, %v3502
    %v3504 = vrot.slane %v3044, %v3503
    %v3505 = vsel %vm3338, %v3504, %v3500
    %v3506 = vlaneseq
    %v3507 = vshrl.u32 %v3506, 7
    %v3508 = vsub.s32 %v3340, %v3507
    %v3509 = vrot.slane %v3045, %v3508
    %v3510 = vsel %vm3345, %v3509, %v3505
    %v3511 = vlaneseq
    %v3512 = vshrl.u32 %v3511, 7
    %v3513 = vsub.s32 %v3347, %v3512
    %v3514 = vrot.slane %v3046, %v3513
    %v3515 = vsel %vm3352, %v3514, %v3510
    %v3516 = vlaneseq
    %v3517 = vshrl.u32 %v3516, 7
    %v3518 = vsub.s32 %v3354, %v3517
    %v3519 = vrot.slane %v3047, %v3518
    %v3520 = vsel %vm3359, %v3519, %v3515
    %v3521 = vlaneseq
    %v3522 = vshrl.u32 %v3521, 7
    %v3523 = vsub.s32 %v3361, %v3522
    %v3524 = vrot.slane %v3048, %v3523
    %v3525 = vsel %vm3366, %v3524, %v3520
    %v3526 = vlaneseq
    %v3527 = vshrl.u32 %v3526, 7
    %v3528 = vsub.s32 %v3258, %v3527
    %v3529 = vrot.slane %v3049, %v3528
    %v3530 = vlaneseq
    %v3531 = vshrl.u32 %v3530, 7
    %v3532 = vsub.s32 %v3263, %v3531
    %v3533 = vrot.slane %v3050, %v3532
    %v3534 = vsel %vm3268, %v3533, %v3529
    %v3535 = vlaneseq
    %v3536 = vshrl.u32 %v3535, 7
    %v3537 = vsub.s32 %v3270, %v3536
    %v3538 = vrot.slane %v3051, %v3537
    %v3539 = vsel %vm3275, %v3538, %v3534
    %v3540 = vlaneseq
    %v3541 = vshrl.u32 %v3540, 7
    %v3542 = vsub.s32 %v3277, %v3541
    %v3543 = vrot.slane %v3052, %v3542
    %v3544 = vsel %vm3282, %v3543, %v3539
    %v3545 = vlaneseq
    %v3546 = vshrl.u32 %v3545, 7
    %v3547 = vsub.s32 %v3284, %v3546
    %v3548 = vrot.slane %v3053, %v3547
    %v3549 = vsel %vm3289, %v3548, %v3544
    %v3550 = vlaneseq
    %v3551 = vshrl.u32 %v3550, 7
    %v3552 = vsub.s32 %v3291, %v3551
    %v3553 = vrot.slane %v3054, %v3552
    %v3554 = vsel %vm3296, %v3553, %v3549
    %v3555 = vlaneseq
    %v3556 = vshrl.u32 %v3555, 7
    %v3557 = vsub.s32 %v3298, %v3556
    %v3558 = vrot.slane %v3055, %v3557
    %v3559 = vsel %vm3303, %v3558, %v3554
    %v3560 = vlaneseq
    %v3561 = vshrl.u32 %v3560, 7
    %v3562 = vsub.s32 %v3305, %v3561
    %v3563 = vrot.slane %v3056, %v3562
    %v3564 = vsel %vm3310, %v3563, %v3559
    %v3565 = vlaneseq
    %v3566 = vshrl.u32 %v3565, 7
    %v3567 = vsub.s32 %v3312, %v3566
    %v3568 = vrot.slane %v3057, %v3567
    %v3569 = vsel %vm3317, %v3568, %v3564
    %v3570 = vlaneseq
    %v3571 = vshrl.u32 %v3570, 7
    %v3572 = vsub.s32 %v3319, %v3571
    %v3573 = vrot.slane %v3058, %v3572
    %v3574 = vsel %vm3324, %v3573, %v3569
    %v3575 = vlaneseq
    %v3576 = vshrl.u32 %v3575, 7
    %v3577 = vsub.s32 %v3326, %v3576
    %v3578 = vrot.slane %v3059, %v3577
    %v3579 = vsel %vm3331, %v3578, %v3574
    %v3580 = vlaneseq
    %v3581 = vshrl.u32 %v3580, 7
    %v3582 = vsub.s32 %v3333, %v3581
    %v3583 = vrot.slane %v3060, %v3582
    %v3584 = vsel %vm3338, %v3583, %v3579
    %v3585 = vlaneseq
    %v3586 = vshrl.u32 %v3585, 7
    %v3587 = vsub.s32 %v3340, %v3586
    %v3588 = vrot.slane %v3061, %v3587
    %v3589 = vsel %vm3345, %v3588, %v3584
    %v3590 = vlaneseq
    %v3591 = vshrl.u32 %v3590, 7
    %v3592 = vsub.s32 %v3347, %v3591
    %v3593 = vrot.slane %v3062, %v3592
    %v3594 = vsel %vm3352, %v3593, %v3589
    %v3595 = vlaneseq
    %v3596 = vshrl.u32 %v3595, 7
    %v3597 = vsub.s32 %v3354, %v3596
    %v3598 = vrot.slane %v3063, %v3597
    %v3599 = vsel %vm3359, %v3598, %v3594
    %v3600 = vlaneseq
    %v3601 = vshrl.u32 %v3600, 7
    %v3602 = vsub.s32 %v3361, %v3601
    %v3603 = vrot.slane %v3064, %v3602
    %v3604 = vsel %vm3366, %v3603, %v3599
    %v3605 = vlaneseq
    %v3606 = vshrl.u32 %v3605, 7
    %v3607 = vsub.s32 %v3258, %v3606
    %v3608 = vrot.slane %v3065, %v3607
    %v3609 = vlaneseq
    %v3610 = vshrl.u32 %v3609, 7
    %v3611 = vsub.s32 %v3263, %v3610
    %v3612 = vrot.slane %v3066, %v3611
    %v3613 = vsel %vm3268, %v3612, %v3608
    %v3614 = vlaneseq
    %v3615 = vshrl.u32 %v3614, 7
    %v3616 = vsub.s32 %v3270, %v3615
    %v3617 = vrot.slane %v3067, %v3616
    %v3618 = vsel %vm3275, %v3617, %v3613
    %v3619 = vlaneseq
    %v3620 = vshrl.u32 %v3619, 7
    %v3621 = vsub.s32 %v3277, %v3620
    %v3622 = vrot.slane %v3068, %v3621
    %v3623 = vsel %vm3282, %v3622, %v3618
    %v3624 = vlaneseq
    %v3625 = vshrl.u32 %v3624, 7
    %v3626 = vsub.s32 %v3284, %v3625
    %v3627 = vrot.slane %v3069, %v3626
    %v3628 = vsel %vm3289, %v3627, %v3623
    %v3629 = vlaneseq
    %v3630 = vshrl.u32 %v3629, 7
    %v3631 = vsub.s32 %v3291, %v3630
    %v3632 = vrot.slane %v3070, %v3631
    %v3633 = vsel %vm3296, %v3632, %v3628
    %v3634 = vlaneseq
    %v3635 = vshrl.u32 %v3634, 7
    %v3636 = vsub.s32 %v3298, %v3635
    %v3637 = vrot.slane %v3071, %v3636
    %v3638 = vsel %vm3303, %v3637, %v3633
    %v3639 = vlaneseq
    %v3640 = vshrl.u32 %v3639, 7
    %v3641 = vsub.s32 %v3305, %v3640
    %v3642 = vrot.slane %v3072, %v3641
    %v3643 = vsel %vm3310, %v3642, %v3638
    %v3644 = vlaneseq
    %v3645 = vshrl.u32 %v3644, 7
    %v3646 = vsub.s32 %v3312, %v3645
    %v3647 = vrot.slane %v3073, %v3646
    %v3648 = vsel %vm3317, %v3647, %v3643
    %v3649 = vlaneseq
    %v3650 = vshrl.u32 %v3649, 7
    %v3651 = vsub.s32 %v3319, %v3650
    %v3652 = vrot.slane %v3074, %v3651
    %v3653 = vsel %vm3324, %v3652, %v3648
    %v3654 = vlaneseq
    %v3655 = vshrl.u32 %v3654, 7
    %v3656 = vsub.s32 %v3326, %v3655
    %v3657 = vrot.slane %v3075, %v3656
    %v3658 = vsel %vm3331, %v3657, %v3653
    %v3659 = vlaneseq
    %v3660 = vshrl.u32 %v3659, 7
    %v3661 = vsub.s32 %v3333, %v3660
    %v3662 = vrot.slane %v3076, %v3661
    %v3663 = vsel %vm3338, %v3662, %v3658
    %v3664 = vlaneseq
    %v3665 = vshrl.u32 %v3664, 7
    %v3666 = vsub.s32 %v3340, %v3665
    %v3667 = vrot.slane %v3077, %v3666
    %v3668 = vsel %vm3345, %v3667, %v3663
    %v3669 = vlaneseq
    %v3670 = vshrl.u32 %v3669, 7
    %v3671 = vsub.s32 %v3347, %v3670
    %v3672 = vrot.slane %v3078, %v3671
    %v3673 = vsel %vm3352, %v3672, %v3668
    %v3674 = vlaneseq
    %v3675 = vshrl.u32 %v3674, 7
    %v3676 = vsub.s32 %v3354, %v3675
    %v3677 = vrot.slane %v3079, %v3676
    %v3678 = vsel %vm3359, %v3677, %v3673
    %v3679 = vlaneseq
    %v3680 = vshrl.u32 %v3679, 7
    %v3681 = vsub.s32 %v3361, %v3680
    %v3682 = vrot.slane %v3080, %v3681
    %v3683 = vsel %vm3366, %v3682, %v3678
    %v3684 = vlaneseq
    %v3685 = vshrl.u32 %v3684, 7
    %v3686 = vsub.s32 %v3258, %v3685
    %v3687 = vrot.slane %v3081, %v3686
    %v3688 = vlaneseq
    %v3689 = vshrl.u32 %v3688, 7
    %v3690 = vsub.s32 %v3263, %v3689
    %v3691 = vrot.slane %v3082, %v3690
    %v3692 = vsel %vm3268, %v3691, %v3687
    %v3693 = vlaneseq
    %v3694 = vshrl.u32 %v3693, 7
    %v3695 = vsub.s32 %v3270, %v3694
    %v3696 = vrot.slane %v3083, %v3695
    %v3697 = vsel %vm3275, %v3696, %v3692
    %v3698 = vlaneseq
    %v3699 = vshrl.u32 %v3698, 7
    %v3700 = vsub.s32 %v3277, %v3699
    %v3701 = vrot.slane %v3084, %v3700
    %v3702 = vsel %vm3282, %v3701, %v3697
    %v3703 = vlaneseq
    %v3704 = vshrl.u32 %v3703, 7
    %v3705 = vsub.s32 %v3284, %v3704
    %v3706 = vrot.slane %v3085, %v3705
    %v3707 = vsel %vm3289, %v3706, %v3702
    %v3708 = vlaneseq
    %v3709 = vshrl.u32 %v3708, 7
    %v3710 = vsub.s32 %v3291, %v3709
    %v3711 = vrot.slane %v3086, %v3710
    %v3712 = vsel %vm3296, %v3711, %v3707
    %v3713 = vlaneseq
    %v3714 = vshrl.u32 %v3713, 7
    %v3715 = vsub.s32 %v3298, %v3714
    %v3716 = vrot.slane %v3087, %v3715
    %v3717 = vsel %vm3303, %v3716, %v3712
    %v3718 = vlaneseq
    %v3719 = vshrl.u32 %v3718, 7
    %v3720 = vsub.s32 %v3305, %v3719
    %v3721 = vrot.slane %v3088, %v3720
    %v3722 = vsel %vm3310, %v3721, %v3717
    %v3723 = vlaneseq
    %v3724 = vshrl.u32 %v3723, 7
    %v3725 = vsub.s32 %v3312, %v3724
    %v3726 = vrot.slane %v3089, %v3725
    %v3727 = vsel %vm3317, %v3726, %v3722
    %v3728 = vlaneseq
    %v3729 = vshrl.u32 %v3728, 7
    %v3730 = vsub.s32 %v3319, %v3729
    %v3731 = vrot.slane %v3090, %v3730
    %v3732 = vsel %vm3324, %v3731, %v3727
    %v3733 = vlaneseq
    %v3734 = vshrl.u32 %v3733, 7
    %v3735 = vsub.s32 %v3326, %v3734
    %v3736 = vrot.slane %v3091, %v3735
    %v3737 = vsel %vm3331, %v3736, %v3732
    %v3738 = vlaneseq
    %v3739 = vshrl.u32 %v3738, 7
    %v3740 = vsub.s32 %v3333, %v3739
    %v3741 = vrot.slane %v3092, %v3740
    %v3742 = vsel %vm3338, %v3741, %v3737
    %v3743 = vlaneseq
    %v3744 = vshrl.u32 %v3743, 7
    %v3745 = vsub.s32 %v3340, %v3744
    %v3746 = vrot.slane %v3093, %v3745
    %v3747 = vsel %vm3345, %v3746, %v3742
    %v3748 = vlaneseq
    %v3749 = vshrl.u32 %v3748, 7
    %v3750 = vsub.s32 %v3347, %v3749
    %v3751 = vrot.slane %v3094, %v3750
    %v3752 = vsel %vm3352, %v3751, %v3747
    %v3753 = vlaneseq
    %v3754 = vshrl.u32 %v3753, 7
    %v3755 = vsub.s32 %v3354, %v3754
    %v3756 = vrot.slane %v3095, %v3755
    %v3757 = vsel %vm3359, %v3756, %v3752
    %v3758 = vlaneseq
    %v3759 = vshrl.u32 %v3758, 7
    %v3760 = vsub.s32 %v3361, %v3759
    %v3761 = vrot.slane %v3096, %v3760
    %v3762 = vsel %vm3366, %v3761, %v3757
    %v3763 = vlaneseq
    %v3764 = vshrl.u32 %v3763, 7
    %v3765 = vsub.s32 %v3258, %v3764
    %v3766 = vrot.slane %v3097, %v3765
    %v3767 = vlaneseq
    %v3768 = vshrl.u32 %v3767, 7
    %v3769 = vsub.s32 %v3263, %v3768
    %v3770 = vrot.slane %v3098, %v3769
    %v3771 = vsel %vm3268, %v3770, %v3766
    %v3772 = vlaneseq
    %v3773 = vshrl.u32 %v3772, 7
    %v3774 = vsub.s32 %v3270, %v3773
    %v3775 = vrot.slane %v3099, %v3774
    %v3776 = vsel %vm3275, %v3775, %v3771
    %v3777 = vlaneseq
    %v3778 = vshrl.u32 %v3777, 7
    %v3779 = vsub.s32 %v3277, %v3778
    %v3780 = vrot.slane %v3100, %v3779
    %v3781 = vsel %vm3282, %v3780, %v3776
    %v3782 = vlaneseq
    %v3783 = vshrl.u32 %v3782, 7
    %v3784 = vsub.s32 %v3284, %v3783
    %v3785 = vrot.slane %v3101, %v3784
    %v3786 = vsel %vm3289, %v3785, %v3781
    %v3787 = vlaneseq
    %v3788 = vshrl.u32 %v3787, 7
    %v3789 = vsub.s32 %v3291, %v3788
    %v3790 = vrot.slane %v3102, %v3789
    %v3791 = vsel %vm3296, %v3790, %v3786
    %v3792 = vlaneseq
    %v3793 = vshrl.u32 %v3792, 7
    %v3794 = vsub.s32 %v3298, %v3793
    %v3795 = vrot.slane %v3103, %v3794
    %v3796 = vsel %vm3303, %v3795, %v3791
    %v3797 = vlaneseq
    %v3798 = vshrl.u32 %v3797, 7
    %v3799 = vsub.s32 %v3305, %v3798
    %v3800 = vrot.slane %v3104, %v3799
    %v3801 = vsel %vm3310, %v3800, %v3796
    %v3802 = vlaneseq
    %v3803 = vshrl.u32 %v3802, 7
    %v3804 = vsub.s32 %v3312, %v3803
    %v3805 = vrot.slane %v3105, %v3804
    %v3806 = vsel %vm3317, %v3805, %v3801
    %v3807 = vlaneseq
    %v3808 = vshrl.u32 %v3807, 7
    %v3809 = vsub.s32 %v3319, %v3808
    %v3810 = vrot.slane %v3106, %v3809
    %v3811 = vsel %vm3324, %v3810, %v3806
    %v3812 = vlaneseq
    %v3813 = vshrl.u32 %v3812, 7
    %v3814 = vsub.s32 %v3326, %v3813
    %v3815 = vrot.slane %v3107, %v3814
    %v3816 = vsel %vm3331, %v3815, %v3811
    %v3817 = vlaneseq
    %v3818 = vshrl.u32 %v3817, 7
    %v3819 = vsub.s32 %v3333, %v3818
    %v3820 = vrot.slane %v3108, %v3819
    %v3821 = vsel %vm3338, %v3820, %v3816
    %v3822 = vlaneseq
    %v3823 = vshrl.u32 %v3822, 7
    %v3824 = vsub.s32 %v3340, %v3823
    %v3825 = vrot.slane %v3109, %v3824
    %v3826 = vsel %vm3345, %v3825, %v3821
    %v3827 = vlaneseq
    %v3828 = vshrl.u32 %v3827, 7
    %v3829 = vsub.s32 %v3347, %v3828
    %v3830 = vrot.slane %v3110, %v3829
    %v3831 = vsel %vm3352, %v3830, %v3826
    %v3832 = vlaneseq
    %v3833 = vshrl.u32 %v3832, 7
    %v3834 = vsub.s32 %v3354, %v3833
    %v3835 = vrot.slane %v3111, %v3834
    %v3836 = vsel %vm3359, %v3835, %v3831
    %v3837 = vlaneseq
    %v3838 = vshrl.u32 %v3837, 7
    %v3839 = vsub.s32 %v3361, %v3838
    %v3840 = vrot.slane %v3112, %v3839
    %v3841 = vsel %vm3366, %v3840, %v3836
    %v3842 = vlaneseq
    %v3843 = vshrl.u32 %v3842, 7
    %v3844 = vsub.s32 %v3258, %v3843
    %v3845 = vrot.slane %v3113, %v3844
    %v3846 = vlaneseq
    %v3847 = vshrl.u32 %v3846, 7
    %v3848 = vsub.s32 %v3263, %v3847
    %v3849 = vrot.slane %v3114, %v3848
    %v3850 = vsel %vm3268, %v3849, %v3845
    %v3851 = vlaneseq
    %v3852 = vshrl.u32 %v3851, 7
    %v3853 = vsub.s32 %v3270, %v3852
    %v3854 = vrot.slane %v3115, %v3853
    %v3855 = vsel %vm3275, %v3854, %v3850
    %v3856 = vlaneseq
    %v3857 = vshrl.u32 %v3856, 7
    %v3858 = vsub.s32 %v3277, %v3857
    %v3859 = vrot.slane %v3116, %v3858
    %v3860 = vsel %vm3282, %v3859, %v3855
    %v3861 = vlaneseq
    %v3862 = vshrl.u32 %v3861, 7
    %v3863 = vsub.s32 %v3284, %v3862
    %v3864 = vrot.slane %v3117, %v3863
    %v3865 = vsel %vm3289, %v3864, %v3860
    %v3866 = vlaneseq
    %v3867 = vshrl.u32 %v3866, 7
    %v3868 = vsub.s32 %v3291, %v3867
    %v3869 = vrot.slane %v3118, %v3868
    %v3870 = vsel %vm3296, %v3869, %v3865
    %v3871 = vlaneseq
    %v3872 = vshrl.u32 %v3871, 7
    %v3873 = vsub.s32 %v3298, %v3872
    %v3874 = vrot.slane %v3119, %v3873
    %v3875 = vsel %vm3303, %v3874, %v3870
    %v3876 = vlaneseq
    %v3877 = vshrl.u32 %v3876, 7
    %v3878 = vsub.s32 %v3305, %v3877
    %v3879 = vrot.slane %v3120, %v3878
    %v3880 = vsel %vm3310, %v3879, %v3875
    %v3881 = vlaneseq
    %v3882 = vshrl.u32 %v3881, 7
    %v3883 = vsub.s32 %v3312, %v3882
    %v3884 = vrot.slane %v3121, %v3883
    %v3885 = vsel %vm3317, %v3884, %v3880
    %v3886 = vlaneseq
    %v3887 = vshrl.u32 %v3886, 7
    %v3888 = vsub.s32 %v3319, %v3887
    %v3889 = vrot.slane %v3122, %v3888
    %v3890 = vsel %vm3324, %v3889, %v3885
    %v3891 = vlaneseq
    %v3892 = vshrl.u32 %v3891, 7
    %v3893 = vsub.s32 %v3326, %v3892
    %v3894 = vrot.slane %v3123, %v3893
    %v3895 = vsel %vm3331, %v3894, %v3890
    %v3896 = vlaneseq
    %v3897 = vshrl.u32 %v3896, 7
    %v3898 = vsub.s32 %v3333, %v3897
    %v3899 = vrot.slane %v3124, %v3898
    %v3900 = vsel %vm3338, %v3899, %v3895
    %v3901 = vlaneseq
    %v3902 = vshrl.u32 %v3901, 7
    %v3903 = vsub.s32 %v3340, %v3902
    %v3904 = vrot.slane %v3125, %v3903
    %v3905 = vsel %vm3345, %v3904, %v3900
    %v3906 = vlaneseq
    %v3907 = vshrl.u32 %v3906, 7
    %v3908 = vsub.s32 %v3347, %v3907
    %v3909 = vrot.slane %v3126, %v3908
    %v3910 = vsel %vm3352, %v3909, %v3905
    %v3911 = vlaneseq
    %v3912 = vshrl.u32 %v3911, 7
    %v3913 = vsub.s32 %v3354, %v3912
    %v3914 = vrot.slane %v3127, %v3913
    %v3915 = vsel %vm3359, %v3914, %v3910
    %v3916 = vlaneseq
    %v3917 = vshrl.u32 %v3916, 7
    %v3918 = vsub.s32 %v3361, %v3917
    %v3919 = vrot.slane %v3128, %v3918
    %v3920 = vsel %vm3366, %v3919, %v3915
    %vm3921 = vcmask 1041409
    %v3922 = vsel %vm3921, %v3446, %v3367
    %vm3923 = vcmask 1042434
    %v3924 = vsel %vm3923, %v3525, %v3922
    %vm3925 = vcmask 1043459
    %v3926 = vsel %vm3925, %v3604, %v3924
    %vm3927 = vcmask 1044484
    %v3928 = vsel %vm3927, %v3683, %v3926
    %vm3929 = vcmask 1045509
    %v3930 = vsel %vm3929, %v3762, %v3928
    %vm3931 = vcmask 1046534
    %v3932 = vsel %vm3931, %v3841, %v3930
    %vm3933 = vcmask 1047559
    %v3934 = vsel %vm3933, %v3920, %v3932
    %3936 = vst [vmem:[#allocation9] sm:$0xff] %v3934
    // Predicated region
    $region42: #{tpu_custom_call.1} parent=1 // pred_check
      _
    $region43: #{tpu_custom_call.1} parent=1 // pred_check_branch
      %3938 = sbr.rel (0) target = $region45
    $region44: #{tpu_custom_call.1} parent=1 // pred_region
      %s3940 = ssub.s32 128, 128
      %3941 = vsyncadd [#allocation5], %s3940
      %s3943 = sshll.u32 [#allocation9], 4
      %s3944 = int_to_ptr.vmem [resolvable:$true] %s3943
      %3946 = dma.vmem_to_hbm [thread:$0]  %s3944, 128, %s7, [#allocation5]
    $region45: #{tpu_custom_call.1} parent=1 // pred_fallthru
      _
    // Predicated region
    $region46: #{tpu_custom_call.1} parent=1 // pred_check
      _
    $region47: #{tpu_custom_call.1} parent=1 // pred_check_branch
      %3948 = sbr.rel (0) target = $region49
    $region48: #{tpu_custom_call.1} parent=1 // pred_region
      %3949 = dma.done [#allocation5], 128
    $region49: #{tpu_custom_call.1} parent=1 // pred_fallthru
      _
    %3950 = vsyncpa [#allocation4], 1
    %3951 = vsyncpa [#allocation7], 1
    %3952 = vsyncpa [#allocation5], 1

</llo_original>
